<compile_context>
chip_gen: v6e
topology: v6e:2x2x1
jax: 0.10.0
libtpu: 0.0.40
codegen_flags: <defaults>
</compile_context>

<pallas_src>
import functools

import numpy as np
import jax
import jax.numpy as jnp
from jax import lax
from jax.experimental import pallas as pl
from jax.experimental.pallas import tpu as pltpu


def _round_up(v, m):
    return ((v + m - 1) // m) * m


def _cdiv(a, b):
    return (a + b - 1) // b


def _window_attention_kernel(x_ref, wqkv_ref, bqkv_ref, wproj_ref, bproj_ref,
                             scale_ref, bias_ref, o_ref, *, N, H, G):
    """One grid step: TB windows of one mask slot, lane-dense (TB, N*C) tiles.

    x_ref:     (TB, N*C)   tokens of TB windows (MXU dtype), lane-dense
    wqkv_ref:  (C, 3C)     fused qkv weight, (in, out) layout
    bqkv_ref:  (1, 3C)     [q_bias, 0, v_bias], f32
    wproj_ref: (C, C)      output projection weight, (in, out) layout
    bproj_ref: (1, C)      output projection bias, f32
    scale_ref: (H,)        per-head logit scale, f32, SMEM
    bias_ref:  (H, S, S)   packed additive bias (rel-pos + mask + block mask)
    o_ref:     (TB, N*C)   output, lane-dense
    """
    TB, NC = x_ref.shape
    C = NC // N
    d = C // H
    M = TB * N
    n_super = TB // G           # attention blocks per grid step
    S = G * N                   # tokens per attention block
    mxu_dtype = wqkv_ref.dtype

    # ---- lane-dense load + relayout to (tokens, C) rows -----------------------
    # Row ordering: r = su*S + i*G + g  (attention block su, token i, window g).
    # Only static sub-slices + a major-axis concat (cheap / always supported).
    x_flat = x_ref[...]                                     # (TB, N*C)
    pieces = []
    for su in range(n_super):
        for i in range(N):
            pieces.append(x_flat[su * G:(su + 1) * G, i * C:(i + 1) * C])
    x2 = jnp.concatenate(pieces, axis=0)                    # (M, C)

    # ---- fused QKV projection: one (M, C) @ (C, 3C) MXU matmul ----------------
    qkv = jnp.dot(x2, wqkv_ref[...], preferred_element_type=jnp.float32)
    qkv = qkv + bqkv_ref[...]                               # (M, 3C), f32
    q = qkv[:, :C]
    k = qkv[:, C:2 * C]
    vm = qkv[:, 2 * C:].astype(mxu_dtype)

    acc = None
    for h in range(H):
        lo, hi = h * d, (h + 1) * d
        qh = q[:, lo:hi].reshape(n_super, S, d)             # major-split reshape
        kh = k[:, lo:hi].reshape(n_super, S, d)
        vh = vm[:, lo:hi].reshape(n_super, S, d)

        # cosine normalization (F.normalize semantics), f32 sum-of-squares;
        # per-head logit scale folded into the q rsqrt factor (SMEM scalar).
        q_ss = jnp.sum(qh * qh, axis=-1, keepdims=True)
        k_ss = jnp.sum(kh * kh, axis=-1, keepdims=True)
        qh = qh * (lax.rsqrt(jnp.maximum(q_ss, 1e-24)) * scale_ref[h])
        kh = kh * lax.rsqrt(jnp.maximum(k_ss, 1e-24))

        # packed-window logits: (n_super, S, d) x (n_super, S, d) -> (n_super, S, S)
        s = lax.dot_general(qh.astype(mxu_dtype), kh.astype(mxu_dtype),
                            (((2,), (2,)), ((0,), (0,))),
                            preferred_element_type=jnp.float32)
        # rel-pos bias + shift mask + (-1e9) cross-window block mask
        s = s + bias_ref[h]

        # softmax (f32 on VPU; exp + approx reciprocal on EUP). Cross-window
        # entries are ~-1e9 so exp underflows to exactly 0 -> exact per-window
        # softmax.
        mx = jnp.max(s, axis=-1, keepdims=True)
        e = jnp.exp(s - mx)
        p = e * pl.reciprocal(jnp.sum(e, axis=-1, keepdims=True), approx=True)

        # attn @ v: (n_super, S, S) x (n_super, S, d) -> (n_super, S, d)
        oh = lax.dot_general(p.astype(mxu_dtype), vh,
                             (((2,), (1,)), ((0,), (0,))),
                             preferred_element_type=jnp.float32)

        # output projection accumulated per head: (M, d) @ (d, C).
        contrib = jnp.dot(oh.reshape(M, d).astype(mxu_dtype),
                          wproj_ref[lo:hi, :],
                          preferred_element_type=jnp.float32)
        acc = contrib if acc is None else acc + contrib

    out = (acc + bproj_ref[...]).astype(o_ref.dtype)        # (M, C)

    # ---- relayout back + lane-dense (TB, N*C) output tile ---------------------
    for su in range(n_super):
        for i in range(N):
            r0 = su * S + i * G
            o_ref[su * G:(su + 1) * G, i * C:(i + 1) * C] = out[r0:r0 + G, :]


def make_params(key, dim, window_size, num_heads):
    """Deterministic synthetic parameters matching the module's shapes."""
    ks = jax.random.split(key, 8)
    return {
        "w_qkv": jax.random.normal(ks[0], (3 * dim, dim), jnp.float32) * 0.05,
        "q_bias": jax.random.normal(ks[1], (dim,), jnp.float32) * 0.02,
        "v_bias": jax.random.normal(ks[2], (dim,), jnp.float32) * 0.02,
        "logit_scale": jnp.log(10.0 * jnp.ones((num_heads, 1, 1), jnp.float32)),
        "cpb_w1": jax.random.normal(ks[3], (512, 1), jnp.float32) * 0.1,
        "cpb_b1": jax.random.normal(ks[4], (512,), jnp.float32) * 0.1,
        "cpb_w2": jax.random.normal(ks[5], (num_heads, 512), jnp.float32) * 0.1,
        "w_proj": jax.random.normal(ks[6], (dim, dim), jnp.float32) * 0.05,
        "b_proj": jax.random.normal(ks[7], (dim,), jnp.float32) * 0.02,
    }


def _relative_position_bias(params, window_size, num_heads,
                            pretrained_window_size=0):
    """cpb_mlp + gather + 16*sigmoid -> (num_heads, W, W). Tiny, input-independent."""
    W = window_size
    rc = jnp.arange(-(W - 1), W, dtype=jnp.float32)
    denom = (pretrained_window_size - 1) if pretrained_window_size > 0 else (W - 1)
    rc = rc / denom * 8.0
    rc = jnp.sign(rc) * jnp.log2(jnp.abs(rc) + 1.0) / np.log2(8)
    rc = rc[:, None]                                            # (2W-1, 1)
    hidden = jax.nn.relu(rc @ params["cpb_w1"].T + params["cpb_b1"])
    table = hidden @ params["cpb_w2"].T                         # (2W-1, H)
    coords = jnp.arange(W)
    idx = coords[:, None] - coords[None, :] + (W - 1)           # (W, W)
    rpb = table[idx.reshape(-1)].reshape(W, W, num_heads)
    rpb = jnp.transpose(rpb, (2, 0, 1))                         # (H, W, W)
    return 16.0 * jax.nn.sigmoid(rpb)


def _choose_block_windows(B, step, max_windows):
    """Pick TB (multiple of `step`): minimize padding waste, then maximize TB."""
    cap = min(_round_up(max_windows, step), _round_up(B, step))
    cap = max(cap, step)
    best_tb, best_key = step, None
    for tb in range(step, cap + 1, step):
        key = (_round_up(B, tb) - B, -tb)
        if best_key is None or key < best_key:
            best_key, best_tb = key, tb
    return best_tb


def window_attention(x, params, window_size, num_heads, pretrained_window_size=0,
                     mask=None, *, block_windows=64, pack_windows=None,
                     mxu_dtype=jnp.bfloat16):
    """Pallas forward of WindowAttention. x: (num_windows*batch, window_size, dim)."""
    B_, N, C = x.shape
    assert N == window_size
    assert C % num_heads == 0
    H = num_heads
    out_dtype = x.dtype

    # ---------- parameter preprocessing (tiny, input-independent glue) ----------
    w_qkv_t = params["w_qkv"].T.astype(mxu_dtype)               # (C, 3C), [q|k|v]
    b_qkv = jnp.concatenate(
        [params["q_bias"], jnp.zeros((C,), jnp.float32), params["v_bias"]]
    ).reshape(1, 3 * C).astype(jnp.float32)
    w_proj_t = params["w_proj"].T.astype(mxu_dtype)             # (C, C)
    b_proj = params["b_proj"].reshape(1, C).astype(jnp.float32)
    # per-head logit scale (clamped / exp'd), read as an SMEM scalar per head
    scale = jnp.exp(jnp.minimum(params["logit_scale"].reshape(H),
                                jnp.log(1.0 / 0.01))).astype(jnp.float32)   # (H,)

    rpb = _relative_position_bias(params, window_size, num_heads,
                                  pretrained_window_size)       # (H, N, N)
    if mask is None:
        nW = 1
        bias_w = rpb[None]                                      # (1, H, N, N)
    else:
        nW = mask.shape[0]
        assert B_ % nW == 0, "num_windows must divide B_"
        bias_w = rpb[None] + mask.astype(jnp.float32)[:, None]  # (nW, H, N, N)
    B = B_ // nW

    # ---------- window packing: G windows per attention block ------------------
    if pack_windows is not None:
        G = max(1, int(pack_windows))
    else:
        G = max(1, 64 // N)          # target ~64-token packed attention blocks
        if G >= 8:
            G = (G // 8) * 8         # keep sub-slabs sublane (8-row) aligned
        elif 8 * N <= 128:
            G = 8
    S = G * N

    # ---------- windows per grid step: minimize padding, keep >=2 steps --------
    step = int(np.lcm(G, 8))
    max_w = block_windows
    if nW == 1:
        # keep at least 2 "parallel" grid steps so both v7x TensorCores get work
        max_w = min(max_w, max(step, _round_up(_cdiv(B, 2), step)))
    TB = _choose_block_windows(B, step, max_w)
    B_pad = _round_up(B, TB)
    n_blocks = B_pad // TB

    # ---------- packed block-diagonal bias: (nW, H, S, S) ----------------------
    # row r = i*G + g (token i of window g); cross-window logits get -1e9 so
    # they softmax to exactly 0 (equivalent to per-window softmax).
    eyeG = jnp.eye(G, dtype=jnp.float32)[None, None, None, :, None, :]
    bias_packed = (eyeG * bias_w[:, :, :, None, :, None]
                   + (1.0 - eyeG) * jnp.float32(-1e9))          # (nW,H,N,G,N,G)
    bias_packed = bias_packed.reshape(nW, H, S, S)

    # ---------- lane-dense streaming layout: (nW, B_pad, N*C), MXU dtype --------
    NC = N * C
    xr = x.reshape(B, nW, NC)
    xr = jnp.transpose(xr, (1, 0, 2)) if nW > 1 else xr.reshape(nW, B, NC)
    if xr.dtype != mxu_dtype:
        xr = xr.astype(mxu_dtype)
    if B_pad != B:
        xr = jnp.pad(xr, ((0, 0), (0, B_pad - B), (0, 0)))

    kernel = functools.partial(_window_attention_kernel, N=N, H=H, G=G)
    out = pl.pallas_call(
        kernel,
        out_shape=jax.ShapeDtypeStruct((nW, B_pad, NC), out_dtype),
        grid=(nW, n_blocks),
        in_specs=[
            pl.BlockSpec((None, TB, NC), lambda w, b: (w, b, 0)),          # x
            pl.BlockSpec((C, 3 * C), lambda w, b: (0, 0)),                 # w_qkv
            pl.BlockSpec((1, 3 * C), lambda w, b: (0, 0)),                 # b_qkv
            pl.BlockSpec((C, C), lambda w, b: (0, 0)),                     # w_proj
            pl.BlockSpec((1, C), lambda w, b: (0, 0)),                     # b_proj
            pl.BlockSpec(memory_space=pltpu.MemorySpace.SMEM),             # scale
            pl.BlockSpec((None, H, S, S), lambda w, b: (w, 0, 0, 0)),      # bias
        ],
        out_specs=pl.BlockSpec((None, TB, NC), lambda w, b: (w, b, 0)),
        compiler_params=pltpu.CompilerParams(
            dimension_semantics=("parallel", "parallel")),
    )(xr, w_qkv_t, b_qkv, w_proj_t, b_proj, scale, bias_packed)

    out = out[:, :B, :]
    out = jnp.transpose(out, (1, 0, 2)) if nW > 1 else out
    return out.reshape(B_, N, C)


def window_attention_ref(x, params, window_size, num_heads,
                         pretrained_window_size=0, mask=None):
    """Pure-JAX reference mirroring the PyTorch forward (dropout = 0)."""
    B_, N, C = x.shape
    d = C // num_heads
    qkv_bias = jnp.concatenate(
        [params["q_bias"], jnp.zeros_like(params["v_bias"]), params["v_bias"]])
    qkv = x @ params["w_qkv"].T + qkv_bias
    qkv = qkv.reshape(B_, N, 3, num_heads, d).transpose(2, 0, 3, 1, 4)
    q, k, v = qkv[0], qkv[1], qkv[2]                           # (B_, H, N, d)
    qn = q / jnp.maximum(jnp.linalg.norm(q, axis=-1, keepdims=True), 1e-12)
    kn = k / jnp.maximum(jnp.linalg.norm(k, axis=-1, keepdims=True), 1e-12)
    attn = qn @ jnp.swapaxes(kn, -2, -1)
    scale = jnp.exp(jnp.minimum(params["logit_scale"], jnp.log(1.0 / 0.01)))
    attn = attn * scale[None]
    rpb = _relative_position_bias(params, window_size, num_heads,
                                  pretrained_window_size)
    attn = attn + rpb[None]
    if mask is not None:
        nW = mask.shape[0]
        attn = attn.reshape(B_ // nW, nW, num_heads, N, N) \
            + mask[None, :, None, :, :]
        attn = attn.reshape(-1, num_heads, N, N)
    attn = jax.nn.softmax(attn, axis=-1)
    out = (attn @ v).transpose(0, 2, 1, 3).reshape(B_, N, C)
    return out @ params["w_proj"].T + params["b_proj"]


if __name__ == "__main__":
    dim, window_size, num_heads = 32, 8, 4
    key = jax.random.PRNGKey(0)
    kx, kp, km, kx2 = jax.random.split(key, 4)
    params = make_params(kp, dim, window_size, num_heads)

    # --- Test 1: no mask, bf16 MXU path, B_ not a multiple of the block size ---
    B_ = 50
    x = jax.random.normal(kx, (B_, window_size, dim), jnp.float32)
    out = window_attention(x, params, window_size, num_heads, mask=None,
                           mxu_dtype=jnp.bfloat16)
    out = jax.block_until_ready(out)
    ref = window_attention_ref(x, params, window_size, num_heads, mask=None)
    # bf16 streaming input + bf16 MXU operands (f32 accumulation).
    np.testing.assert_allclose(np.asarray(out), np.asarray(ref),
                               atol=6e-2, rtol=6e-2)

    # --- Test 2: shifted-window-style mask, f32 MXU path (tighter tolerance) ---
    nW, B = 4, 16
    x2 = jax.random.normal(kx2, (nW * B, window_size, dim), jnp.float32)
    mask_bool = jax.random.bernoulli(km, 0.3, (nW, window_size, window_size))
    mask = jnp.where(mask_bool, -100.0, 0.0).astype(jnp.float32)
    out2 = window_attention(x2, params, window_size, num_heads, mask=mask,
                            mxu_dtype=jnp.float32)
    out2 = jax.block_until_ready(out2)
    ref2 = window_attention_ref(x2, params, window_size, num_heads, mask=mask)
    # tolerance allows for EUP approx-reciprocal softmax and rsqrt normalization.
    np.testing.assert_allclose(np.asarray(out2), np.asarray(ref2),
                               atol=1e-2, rtol=1e-2)

    print("KERNEL_OK")
</pallas_src>

<mosaic_0001>
module attributes {stable_mosaic.version = 11 : i64} {
  func.func @_window_attention_kernel(%arg0: i32, %arg1: i32, %arg2: memref<1x8x256xbf16, #tpu.memory_space<vmem>>, %arg3: memref<32x96xbf16, #tpu.memory_space<vmem>>, %arg4: memref<1x96xf32, #tpu.memory_space<vmem>>, %arg5: memref<32x32xbf16, #tpu.memory_space<vmem>>, %arg6: memref<1x32xf32, #tpu.memory_space<vmem>>, %arg7: memref<4xf32, #tpu.memory_space<smem>>, %arg8: memref<1x4x64x64xf32, #tpu.memory_space<vmem>>, %arg9: memref<1x8x256xf32, #tpu.memory_space<vmem>>) attributes {dimension_semantics = [#tpu.dimension_semantics<parallel>, #tpu.dimension_semantics<parallel>], iteration_bounds = array<i64: 1, 7>, scalar_prefetch = 0 : i64, scratch_operands = 0 : i64, tpu.core_type = #tpu.core_type<tc>, window_params = [{transform_indices = @transform_0, window_bounds = array<i64: 1, 8, 256>}, {pipeline_mode = #tpu.pipeline_mode<synchronous>, transform_indices = @transform_1, window_bounds = array<i64: 32, 96>}, {pipeline_mode = #tpu.pipeline_mode<synchronous>, transform_indices = @transform_2, window_bounds = array<i64: 1, 96>}, {pipeline_mode = #tpu.pipeline_mode<synchronous>, transform_indices = @transform_3, window_bounds = array<i64: 32, 32>}, {pipeline_mode = #tpu.pipeline_mode<synchronous>, transform_indices = @transform_4, window_bounds = array<i64: 1, 32>}, {transform_indices = @transform_5, window_bounds = array<i64: 4>}, {transform_indices = @transform_6, window_bounds = array<i64: 1, 4, 64, 64>}, {transform_indices = @transform_7, window_bounds = array<i64: 1, 8, 256>}]} {
    %c0 = arith.constant 0 : index
    %c0_0 = arith.constant 0 : index
    %c0_1 = arith.constant 0 : index
    %0 = vector.load %arg2[%c0, %c0_0, %c0_1] : memref<1x8x256xbf16, #tpu.memory_space<vmem>>, vector<1x8x256xbf16>
    %1 = vector.shape_cast %0 : vector<1x8x256xbf16> to vector<8x256xbf16>
    %2 = vector.extract_strided_slice %1 {offsets = [0, 0], sizes = [8, 32], strides = [1, 1]} : vector<8x256xbf16> to vector<8x32xbf16>
    %3 = vector.extract_strided_slice %1 {offsets = [0, 32], sizes = [8, 32], strides = [1, 1]} : vector<8x256xbf16> to vector<8x32xbf16>
    %4 = vector.extract_strided_slice %1 {offsets = [0, 64], sizes = [8, 32], strides = [1, 1]} : vector<8x256xbf16> to vector<8x32xbf16>
    %5 = vector.extract_strided_slice %1 {offsets = [0, 96], sizes = [8, 32], strides = [1, 1]} : vector<8x256xbf16> to vector<8x32xbf16>
    %6 = vector.extract_strided_slice %1 {offsets = [0, 128], sizes = [8, 32], strides = [1, 1]} : vector<8x256xbf16> to vector<8x32xbf16>
    %7 = vector.extract_strided_slice %1 {offsets = [0, 160], sizes = [8, 32], strides = [1, 1]} : vector<8x256xbf16> to vector<8x32xbf16>
    %8 = vector.extract_strided_slice %1 {offsets = [0, 192], sizes = [8, 32], strides = [1, 1]} : vector<8x256xbf16> to vector<8x32xbf16>
    %9 = vector.extract_strided_slice %1 {offsets = [0, 224], sizes = [8, 32], strides = [1, 1]} : vector<8x256xbf16> to vector<8x32xbf16>
    %10 = tpu.concatenate %2, %3, %4, %5, %6, %7, %8, %9 in 0 : vector<8x32xbf16>, vector<8x32xbf16>, vector<8x32xbf16>, vector<8x32xbf16>, vector<8x32xbf16>, vector<8x32xbf16>, vector<8x32xbf16>, vector<8x32xbf16> -> vector<64x32xbf16>
    %c0_2 = arith.constant 0 : index
    %c0_3 = arith.constant 0 : index
    %11 = vector.load %arg3[%c0_2, %c0_3] : memref<32x96xbf16, #tpu.memory_space<vmem>>, vector<32x96xbf16>
    %cst = arith.constant dense<0.000000e+00> : vector<64x96xf32>
    %12 = tpu.matmul %10, %11, %cst {dimension_numbers = #tpu.dot_dimension_numbers<[1], [0], [0], [1], [0, 0, 1, 1], [], []>} : vector<64x32xbf16>, vector<32x96xbf16>, vector<64x96xf32> -> vector<64x96xf32>
    %c0_4 = arith.constant 0 : index
    %c0_5 = arith.constant 0 : index
    %13 = vector.load %arg4[%c0_4, %c0_5] : memref<1x96xf32, #tpu.memory_space<vmem>>, vector<1x96xf32>
    %14 = vector.broadcast %13 : vector<1x96xf32> to vector<64x96xf32>
    %15 = arith.addf %12, %14 : vector<64x96xf32>
    %16 = vector.extract_strided_slice %15 {offsets = [0, 0], sizes = [64, 32], strides = [1, 1]} : vector<64x96xf32> to vector<64x32xf32>
    %17 = vector.extract_strided_slice %15 {offsets = [0, 32], sizes = [64, 32], strides = [1, 1]} : vector<64x96xf32> to vector<64x32xf32>
    %18 = vector.extract_strided_slice %15 {offsets = [0, 64], sizes = [64, 32], strides = [1, 1]} : vector<64x96xf32> to vector<64x32xf32>
    %19 = arith.truncf %18 : vector<64x32xf32> to vector<64x32xbf16>
    %20 = vector.extract_strided_slice %16 {offsets = [0, 0], sizes = [64, 8], strides = [1, 1]} : vector<64x32xf32> to vector<64x8xf32>
    %21 = vector.shape_cast %20 : vector<64x8xf32> to vector<1x64x8xf32>
    %22 = vector.extract_strided_slice %17 {offsets = [0, 0], sizes = [64, 8], strides = [1, 1]} : vector<64x32xf32> to vector<64x8xf32>
    %23 = vector.shape_cast %22 : vector<64x8xf32> to vector<1x64x8xf32>
    %24 = vector.extract_strided_slice %19 {offsets = [0, 0], sizes = [64, 8], strides = [1, 1]} : vector<64x32xbf16> to vector<64x8xbf16>
    %25 = vector.shape_cast %24 : vector<64x8xbf16> to vector<1x64x8xbf16>
    %26 = arith.mulf %21, %21 : vector<1x64x8xf32>
    %cst_6 = arith.constant dense<0.000000e+00> : vector<1x64xf32>
    %27 = vector.multi_reduction <add>, %26, %cst_6 [2] : vector<1x64x8xf32> to vector<1x64xf32>
    %28 = vector.shape_cast %27 : vector<1x64xf32> to vector<1x64x1xf32>
    %29 = arith.mulf %23, %23 : vector<1x64x8xf32>
    %cst_7 = arith.constant dense<0.000000e+00> : vector<1x64xf32>
    %30 = vector.multi_reduction <add>, %29, %cst_7 [2] : vector<1x64x8xf32> to vector<1x64xf32>
    %31 = vector.shape_cast %30 : vector<1x64xf32> to vector<1x64x1xf32>
    %cst_8 = arith.constant 1.000000e-24 : f32
    %32 = vector.broadcast %cst_8 : f32 to vector<1x64x1xf32>
    %33 = arith.maximumf %28, %32 : vector<1x64x1xf32>
    %34 = math.rsqrt %33 : vector<1x64x1xf32>
    %c0_9 = arith.constant 0 : index
    %35 = memref.load %arg7[%c0_9] : memref<4xf32, #tpu.memory_space<smem>>
    %36 = vector.broadcast %35 : f32 to vector<1x64x1xf32>
    %37 = arith.mulf %34, %36 : vector<1x64x1xf32>
    %38 = vector.broadcast %37 : vector<1x64x1xf32> to vector<1x64x8xf32>
    %39 = arith.mulf %21, %38 : vector<1x64x8xf32>
    %cst_10 = arith.constant 1.000000e-24 : f32
    %40 = vector.broadcast %cst_10 : f32 to vector<1x64x1xf32>
    %41 = arith.maximumf %31, %40 : vector<1x64x1xf32>
    %42 = math.rsqrt %41 : vector<1x64x1xf32>
    %43 = vector.broadcast %42 : vector<1x64x1xf32> to vector<1x64x8xf32>
    %44 = arith.mulf %23, %43 : vector<1x64x8xf32>
    %45 = arith.truncf %39 : vector<1x64x8xf32> to vector<1x64x8xbf16>
    %46 = arith.truncf %44 : vector<1x64x8xf32> to vector<1x64x8xbf16>
    %cst_11 = arith.constant dense<0.000000e+00> : vector<1x64x64xf32>
    %47 = tpu.matmul %45, %46, %cst_11 {dimension_numbers = #tpu.dot_dimension_numbers<[2], [2], [1], [1], [0, 0, 0, 1, 1, 1], [0], [0]>} : vector<1x64x8xbf16>, vector<1x64x8xbf16>, vector<1x64x64xf32> -> vector<1x64x64xf32>
    %c0_12 = arith.constant 0 : index
    %c0_13 = arith.constant 0 : index
    %c0_14 = arith.constant 0 : index
    %c0_15 = arith.constant 0 : index
    %48 = vector.load %arg8[%c0_12, %c0_13, %c0_14, %c0_15] : memref<1x4x64x64xf32, #tpu.memory_space<vmem>>, vector<1x1x64x64xf32>
    %49 = vector.shape_cast %48 : vector<1x1x64x64xf32> to vector<64x64xf32>
    %50 = vector.shape_cast %49 : vector<64x64xf32> to vector<1x64x64xf32>
    %51 = arith.addf %47, %50 : vector<1x64x64xf32>
    %cst_16 = arith.constant dense<0xFF800000> : vector<1x64xf32>
    %52 = vector.multi_reduction <maximumf>, %51, %cst_16 [2] : vector<1x64x64xf32> to vector<1x64xf32>
    %53 = vector.shape_cast %52 : vector<1x64xf32> to vector<1x64x1xf32>
    %54 = vector.broadcast %53 : vector<1x64x1xf32> to vector<1x64x64xf32>
    %55 = arith.subf %51, %54 : vector<1x64x64xf32>
    %56 = math.exp %55 : vector<1x64x64xf32>
    %cst_17 = arith.constant dense<0.000000e+00> : vector<1x64xf32>
    %57 = vector.multi_reduction <add>, %56, %cst_17 [2] : vector<1x64x64xf32> to vector<1x64xf32>
    %58 = vector.shape_cast %57 : vector<1x64xf32> to vector<1x64x1xf32>
    %59 = tpu.reciprocal %58 {approx = true} : vector<1x64x1xf32> -> vector<1x64x1xf32>
    %60 = vector.broadcast %59 : vector<1x64x1xf32> to vector<1x64x64xf32>
    %61 = arith.mulf %56, %60 : vector<1x64x64xf32>
    %62 = arith.truncf %61 : vector<1x64x64xf32> to vector<1x64x64xbf16>
    %cst_18 = arith.constant dense<0.000000e+00> : vector<1x64x8xf32>
    %63 = tpu.matmul %62, %25, %cst_18 {dimension_numbers = #tpu.dot_dimension_numbers<[2], [1], [1], [2], [0, 0, 0, 1, 1, 2], [0], [0]>} : vector<1x64x64xbf16>, vector<1x64x8xbf16>, vector<1x64x8xf32> -> vector<1x64x8xf32>
    %64 = vector.shape_cast %63 : vector<1x64x8xf32> to vector<64x8xf32>
    %65 = arith.truncf %64 : vector<64x8xf32> to vector<64x8xbf16>
    %c0_19 = arith.constant 0 : index
    %c0_20 = arith.constant 0 : index
    %66 = vector.load %arg5[%c0_19, %c0_20] : memref<32x32xbf16, #tpu.memory_space<vmem>>, vector<8x32xbf16>
    %cst_21 = arith.constant dense<0.000000e+00> : vector<64x32xf32>
    %67 = tpu.matmul %65, %66, %cst_21 {dimension_numbers = #tpu.dot_dimension_numbers<[1], [0], [0], [1], [0, 0, 1, 1], [], []>} : vector<64x8xbf16>, vector<8x32xbf16>, vector<64x32xf32> -> vector<64x32xf32>
    %68 = vector.extract_strided_slice %16 {offsets = [0, 8], sizes = [64, 8], strides = [1, 1]} : vector<64x32xf32> to vector<64x8xf32>
    %69 = vector.shape_cast %68 : vector<64x8xf32> to vector<1x64x8xf32>
    %70 = vector.extract_strided_slice %17 {offsets = [0, 8], sizes = [64, 8], strides = [1, 1]} : vector<64x32xf32> to vector<64x8xf32>
    %71 = vector.shape_cast %70 : vector<64x8xf32> to vector<1x64x8xf32>
    %72 = vector.extract_strided_slice %19 {offsets = [0, 8], sizes = [64, 8], strides = [1, 1]} : vector<64x32xbf16> to vector<64x8xbf16>
    %73 = vector.shape_cast %72 : vector<64x8xbf16> to vector<1x64x8xbf16>
    %74 = arith.mulf %69, %69 : vector<1x64x8xf32>
    %cst_22 = arith.constant dense<0.000000e+00> : vector<1x64xf32>
    %75 = vector.multi_reduction <add>, %74, %cst_22 [2] : vector<1x64x8xf32> to vector<1x64xf32>
    %76 = vector.shape_cast %75 : vector<1x64xf32> to vector<1x64x1xf32>
    %77 = arith.mulf %71, %71 : vector<1x64x8xf32>
    %cst_23 = arith.constant dense<0.000000e+00> : vector<1x64xf32>
    %78 = vector.multi_reduction <add>, %77, %cst_23 [2] : vector<1x64x8xf32> to vector<1x64xf32>
    %79 = vector.shape_cast %78 : vector<1x64xf32> to vector<1x64x1xf32>
    %cst_24 = arith.constant 1.000000e-24 : f32
    %80 = vector.broadcast %cst_24 : f32 to vector<1x64x1xf32>
    %81 = arith.maximumf %76, %80 : vector<1x64x1xf32>
    %82 = math.rsqrt %81 : vector<1x64x1xf32>
    %c1 = arith.constant 1 : index
    %83 = memref.load %arg7[%c1] : memref<4xf32, #tpu.memory_space<smem>>
    %84 = vector.broadcast %83 : f32 to vector<1x64x1xf32>
    %85 = arith.mulf %82, %84 : vector<1x64x1xf32>
    %86 = vector.broadcast %85 : vector<1x64x1xf32> to vector<1x64x8xf32>
    %87 = arith.mulf %69, %86 : vector<1x64x8xf32>
    %cst_25 = arith.constant 1.000000e-24 : f32
    %88 = vector.broadcast %cst_25 : f32 to vector<1x64x1xf32>
    %89 = arith.maximumf %79, %88 : vector<1x64x1xf32>
    %90 = math.rsqrt %89 : vector<1x64x1xf32>
    %91 = vector.broadcast %90 : vector<1x64x1xf32> to vector<1x64x8xf32>
    %92 = arith.mulf %71, %91 : vector<1x64x8xf32>
    %93 = arith.truncf %87 : vector<1x64x8xf32> to vector<1x64x8xbf16>
    %94 = arith.truncf %92 : vector<1x64x8xf32> to vector<1x64x8xbf16>
    %cst_26 = arith.constant dense<0.000000e+00> : vector<1x64x64xf32>
    %95 = tpu.matmul %93, %94, %cst_26 {dimension_numbers = #tpu.dot_dimension_numbers<[2], [2], [1], [1], [0, 0, 0, 1, 1, 1], [0], [0]>} : vector<1x64x8xbf16>, vector<1x64x8xbf16>, vector<1x64x64xf32> -> vector<1x64x64xf32>
    %c0_27 = arith.constant 0 : index
    %c1_28 = arith.constant 1 : index
    %c0_29 = arith.constant 0 : index
    %c0_30 = arith.constant 0 : index
    %96 = vector.load %arg8[%c0_27, %c1_28, %c0_29, %c0_30] : memref<1x4x64x64xf32, #tpu.memory_space<vmem>>, vector<1x1x64x64xf32>
    %97 = vector.shape_cast %96 : vector<1x1x64x64xf32> to vector<64x64xf32>
    %98 = vector.shape_cast %97 : vector<64x64xf32> to vector<1x64x64xf32>
    %99 = arith.addf %95, %98 : vector<1x64x64xf32>
    %cst_31 = arith.constant dense<0xFF800000> : vector<1x64xf32>
    %100 = vector.multi_reduction <maximumf>, %99, %cst_31 [2] : vector<1x64x64xf32> to vector<1x64xf32>
    %101 = vector.shape_cast %100 : vector<1x64xf32> to vector<1x64x1xf32>
    %102 = vector.broadcast %101 : vector<1x64x1xf32> to vector<1x64x64xf32>
    %103 = arith.subf %99, %102 : vector<1x64x64xf32>
    %104 = math.exp %103 : vector<1x64x64xf32>
    %cst_32 = arith.constant dense<0.000000e+00> : vector<1x64xf32>
    %105 = vector.multi_reduction <add>, %104, %cst_32 [2] : vector<1x64x64xf32> to vector<1x64xf32>
    %106 = vector.shape_cast %105 : vector<1x64xf32> to vector<1x64x1xf32>
    %107 = tpu.reciprocal %106 {approx = true} : vector<1x64x1xf32> -> vector<1x64x1xf32>
    %108 = vector.broadcast %107 : vector<1x64x1xf32> to vector<1x64x64xf32>
    %109 = arith.mulf %104, %108 : vector<1x64x64xf32>
    %110 = arith.truncf %109 : vector<1x64x64xf32> to vector<1x64x64xbf16>
    %cst_33 = arith.constant dense<0.000000e+00> : vector<1x64x8xf32>
    %111 = tpu.matmul %110, %73, %cst_33 {dimension_numbers = #tpu.dot_dimension_numbers<[2], [1], [1], [2], [0, 0, 0, 1, 1, 2], [0], [0]>} : vector<1x64x64xbf16>, vector<1x64x8xbf16>, vector<1x64x8xf32> -> vector<1x64x8xf32>
    %112 = vector.shape_cast %111 : vector<1x64x8xf32> to vector<64x8xf32>
    %113 = arith.truncf %112 : vector<64x8xf32> to vector<64x8xbf16>
    %c8 = arith.constant 8 : index
    %c0_34 = arith.constant 0 : index
    %114 = vector.load %arg5[%c8, %c0_34] : memref<32x32xbf16, #tpu.memory_space<vmem>>, vector<8x32xbf16>
    %cst_35 = arith.constant dense<0.000000e+00> : vector<64x32xf32>
    %115 = tpu.matmul %113, %114, %cst_35 {dimension_numbers = #tpu.dot_dimension_numbers<[1], [0], [0], [1], [0, 0, 1, 1], [], []>} : vector<64x8xbf16>, vector<8x32xbf16>, vector<64x32xf32> -> vector<64x32xf32>
    %116 = arith.addf %67, %115 : vector<64x32xf32>
    %117 = vector.extract_strided_slice %16 {offsets = [0, 16], sizes = [64, 8], strides = [1, 1]} : vector<64x32xf32> to vector<64x8xf32>
    %118 = vector.shape_cast %117 : vector<64x8xf32> to vector<1x64x8xf32>
    %119 = vector.extract_strided_slice %17 {offsets = [0, 16], sizes = [64, 8], strides = [1, 1]} : vector<64x32xf32> to vector<64x8xf32>
    %120 = vector.shape_cast %119 : vector<64x8xf32> to vector<1x64x8xf32>
    %121 = vector.extract_strided_slice %19 {offsets = [0, 16], sizes = [64, 8], strides = [1, 1]} : vector<64x32xbf16> to vector<64x8xbf16>
    %122 = vector.shape_cast %121 : vector<64x8xbf16> to vector<1x64x8xbf16>
    %123 = arith.mulf %118, %118 : vector<1x64x8xf32>
    %cst_36 = arith.constant dense<0.000000e+00> : vector<1x64xf32>
    %124 = vector.multi_reduction <add>, %123, %cst_36 [2] : vector<1x64x8xf32> to vector<1x64xf32>
    %125 = vector.shape_cast %124 : vector<1x64xf32> to vector<1x64x1xf32>
    %126 = arith.mulf %120, %120 : vector<1x64x8xf32>
    %cst_37 = arith.constant dense<0.000000e+00> : vector<1x64xf32>
    %127 = vector.multi_reduction <add>, %126, %cst_37 [2] : vector<1x64x8xf32> to vector<1x64xf32>
    %128 = vector.shape_cast %127 : vector<1x64xf32> to vector<1x64x1xf32>
    %cst_38 = arith.constant 1.000000e-24 : f32
    %129 = vector.broadcast %cst_38 : f32 to vector<1x64x1xf32>
    %130 = arith.maximumf %125, %129 : vector<1x64x1xf32>
    %131 = math.rsqrt %130 : vector<1x64x1xf32>
    %c2 = arith.constant 2 : index
    %132 = memref.load %arg7[%c2] : memref<4xf32, #tpu.memory_space<smem>>
    %133 = vector.broadcast %132 : f32 to vector<1x64x1xf32>
    %134 = arith.mulf %131, %133 : vector<1x64x1xf32>
    %135 = vector.broadcast %134 : vector<1x64x1xf32> to vector<1x64x8xf32>
    %136 = arith.mulf %118, %135 : vector<1x64x8xf32>
    %cst_39 = arith.constant 1.000000e-24 : f32
    %137 = vector.broadcast %cst_39 : f32 to vector<1x64x1xf32>
    %138 = arith.maximumf %128, %137 : vector<1x64x1xf32>
    %139 = math.rsqrt %138 : vector<1x64x1xf32>
    %140 = vector.broadcast %139 : vector<1x64x1xf32> to vector<1x64x8xf32>
    %141 = arith.mulf %120, %140 : vector<1x64x8xf32>
    %142 = arith.truncf %136 : vector<1x64x8xf32> to vector<1x64x8xbf16>
    %143 = arith.truncf %141 : vector<1x64x8xf32> to vector<1x64x8xbf16>
    %cst_40 = arith.constant dense<0.000000e+00> : vector<1x64x64xf32>
    %144 = tpu.matmul %142, %143, %cst_40 {dimension_numbers = #tpu.dot_dimension_numbers<[2], [2], [1], [1], [0, 0, 0, 1, 1, 1], [0], [0]>} : vector<1x64x8xbf16>, vector<1x64x8xbf16>, vector<1x64x64xf32> -> vector<1x64x64xf32>
    %c0_41 = arith.constant 0 : index
    %c2_42 = arith.constant 2 : index
    %c0_43 = arith.constant 0 : index
    %c0_44 = arith.constant 0 : index
    %145 = vector.load %arg8[%c0_41, %c2_42, %c0_43, %c0_44] : memref<1x4x64x64xf32, #tpu.memory_space<vmem>>, vector<1x1x64x64xf32>
    %146 = vector.shape_cast %145 : vector<1x1x64x64xf32> to vector<64x64xf32>
    %147 = vector.shape_cast %146 : vector<64x64xf32> to vector<1x64x64xf32>
    %148 = arith.addf %144, %147 : vector<1x64x64xf32>
    %cst_45 = arith.constant dense<0xFF800000> : vector<1x64xf32>
    %149 = vector.multi_reduction <maximumf>, %148, %cst_45 [2] : vector<1x64x64xf32> to vector<1x64xf32>
    %150 = vector.shape_cast %149 : vector<1x64xf32> to vector<1x64x1xf32>
    %151 = vector.broadcast %150 : vector<1x64x1xf32> to vector<1x64x64xf32>
    %152 = arith.subf %148, %151 : vector<1x64x64xf32>
    %153 = math.exp %152 : vector<1x64x64xf32>
    %cst_46 = arith.constant dense<0.000000e+00> : vector<1x64xf32>
    %154 = vector.multi_reduction <add>, %153, %cst_46 [2] : vector<1x64x64xf32> to vector<1x64xf32>
    %155 = vector.shape_cast %154 : vector<1x64xf32> to vector<1x64x1xf32>
    %156 = tpu.reciprocal %155 {approx = true} : vector<1x64x1xf32> -> vector<1x64x1xf32>
    %157 = vector.broadcast %156 : vector<1x64x1xf32> to vector<1x64x64xf32>
    %158 = arith.mulf %153, %157 : vector<1x64x64xf32>
    %159 = arith.truncf %158 : vector<1x64x64xf32> to vector<1x64x64xbf16>
    %cst_47 = arith.constant dense<0.000000e+00> : vector<1x64x8xf32>
    %160 = tpu.matmul %159, %122, %cst_47 {dimension_numbers = #tpu.dot_dimension_numbers<[2], [1], [1], [2], [0, 0, 0, 1, 1, 2], [0], [0]>} : vector<1x64x64xbf16>, vector<1x64x8xbf16>, vector<1x64x8xf32> -> vector<1x64x8xf32>
    %161 = vector.shape_cast %160 : vector<1x64x8xf32> to vector<64x8xf32>
    %162 = arith.truncf %161 : vector<64x8xf32> to vector<64x8xbf16>
    %c16 = arith.constant 16 : index
    %c0_48 = arith.constant 0 : index
    %163 = vector.load %arg5[%c16, %c0_48] : memref<32x32xbf16, #tpu.memory_space<vmem>>, vector<8x32xbf16>
    %cst_49 = arith.constant dense<0.000000e+00> : vector<64x32xf32>
    %164 = tpu.matmul %162, %163, %cst_49 {dimension_numbers = #tpu.dot_dimension_numbers<[1], [0], [0], [1], [0, 0, 1, 1], [], []>} : vector<64x8xbf16>, vector<8x32xbf16>, vector<64x32xf32> -> vector<64x32xf32>
    %165 = arith.addf %116, %164 : vector<64x32xf32>
    %166 = vector.extract_strided_slice %16 {offsets = [0, 24], sizes = [64, 8], strides = [1, 1]} : vector<64x32xf32> to vector<64x8xf32>
    %167 = vector.shape_cast %166 : vector<64x8xf32> to vector<1x64x8xf32>
    %168 = vector.extract_strided_slice %17 {offsets = [0, 24], sizes = [64, 8], strides = [1, 1]} : vector<64x32xf32> to vector<64x8xf32>
    %169 = vector.shape_cast %168 : vector<64x8xf32> to vector<1x64x8xf32>
    %170 = vector.extract_strided_slice %19 {offsets = [0, 24], sizes = [64, 8], strides = [1, 1]} : vector<64x32xbf16> to vector<64x8xbf16>
    %171 = vector.shape_cast %170 : vector<64x8xbf16> to vector<1x64x8xbf16>
    %172 = arith.mulf %167, %167 : vector<1x64x8xf32>
    %cst_50 = arith.constant dense<0.000000e+00> : vector<1x64xf32>
    %173 = vector.multi_reduction <add>, %172, %cst_50 [2] : vector<1x64x8xf32> to vector<1x64xf32>
    %174 = vector.shape_cast %173 : vector<1x64xf32> to vector<1x64x1xf32>
    %175 = arith.mulf %169, %169 : vector<1x64x8xf32>
    %cst_51 = arith.constant dense<0.000000e+00> : vector<1x64xf32>
    %176 = vector.multi_reduction <add>, %175, %cst_51 [2] : vector<1x64x8xf32> to vector<1x64xf32>
    %177 = vector.shape_cast %176 : vector<1x64xf32> to vector<1x64x1xf32>
    %cst_52 = arith.constant 1.000000e-24 : f32
    %178 = vector.broadcast %cst_52 : f32 to vector<1x64x1xf32>
    %179 = arith.maximumf %174, %178 : vector<1x64x1xf32>
    %180 = math.rsqrt %179 : vector<1x64x1xf32>
    %c3 = arith.constant 3 : index
    %181 = memref.load %arg7[%c3] : memref<4xf32, #tpu.memory_space<smem>>
    %182 = vector.broadcast %181 : f32 to vector<1x64x1xf32>
    %183 = arith.mulf %180, %182 : vector<1x64x1xf32>
    %184 = vector.broadcast %183 : vector<1x64x1xf32> to vector<1x64x8xf32>
    %185 = arith.mulf %167, %184 : vector<1x64x8xf32>
    %cst_53 = arith.constant 1.000000e-24 : f32
    %186 = vector.broadcast %cst_53 : f32 to vector<1x64x1xf32>
    %187 = arith.maximumf %177, %186 : vector<1x64x1xf32>
    %188 = math.rsqrt %187 : vector<1x64x1xf32>
    %189 = vector.broadcast %188 : vector<1x64x1xf32> to vector<1x64x8xf32>
    %190 = arith.mulf %169, %189 : vector<1x64x8xf32>
    %191 = arith.truncf %185 : vector<1x64x8xf32> to vector<1x64x8xbf16>
    %192 = arith.truncf %190 : vector<1x64x8xf32> to vector<1x64x8xbf16>
    %cst_54 = arith.constant dense<0.000000e+00> : vector<1x64x64xf32>
    %193 = tpu.matmul %191, %192, %cst_54 {dimension_numbers = #tpu.dot_dimension_numbers<[2], [2], [1], [1], [0, 0, 0, 1, 1, 1], [0], [0]>} : vector<1x64x8xbf16>, vector<1x64x8xbf16>, vector<1x64x64xf32> -> vector<1x64x64xf32>
    %c0_55 = arith.constant 0 : index
    %c3_56 = arith.constant 3 : index
    %c0_57 = arith.constant 0 : index
    %c0_58 = arith.constant 0 : index
    %194 = vector.load %arg8[%c0_55, %c3_56, %c0_57, %c0_58] : memref<1x4x64x64xf32, #tpu.memory_space<vmem>>, vector<1x1x64x64xf32>
    %195 = vector.shape_cast %194 : vector<1x1x64x64xf32> to vector<64x64xf32>
    %196 = vector.shape_cast %195 : vector<64x64xf32> to vector<1x64x64xf32>
    %197 = arith.addf %193, %196 : vector<1x64x64xf32>
    %cst_59 = arith.constant dense<0xFF800000> : vector<1x64xf32>
    %198 = vector.multi_reduction <maximumf>, %197, %cst_59 [2] : vector<1x64x64xf32> to vector<1x64xf32>
    %199 = vector.shape_cast %198 : vector<1x64xf32> to vector<1x64x1xf32>
    %200 = vector.broadcast %199 : vector<1x64x1xf32> to vector<1x64x64xf32>
    %201 = arith.subf %197, %200 : vector<1x64x64xf32>
    %202 = math.exp %201 : vector<1x64x64xf32>
    %cst_60 = arith.constant dense<0.000000e+00> : vector<1x64xf32>
    %203 = vector.multi_reduction <add>, %202, %cst_60 [2] : vector<1x64x64xf32> to vector<1x64xf32>
    %204 = vector.shape_cast %203 : vector<1x64xf32> to vector<1x64x1xf32>
    %205 = tpu.reciprocal %204 {approx = true} : vector<1x64x1xf32> -> vector<1x64x1xf32>
    %206 = vector.broadcast %205 : vector<1x64x1xf32> to vector<1x64x64xf32>
    %207 = arith.mulf %202, %206 : vector<1x64x64xf32>
    %208 = arith.truncf %207 : vector<1x64x64xf32> to vector<1x64x64xbf16>
    %cst_61 = arith.constant dense<0.000000e+00> : vector<1x64x8xf32>
    %209 = tpu.matmul %208, %171, %cst_61 {dimension_numbers = #tpu.dot_dimension_numbers<[2], [1], [1], [2], [0, 0, 0, 1, 1, 2], [0], [0]>} : vector<1x64x64xbf16>, vector<1x64x8xbf16>, vector<1x64x8xf32> -> vector<1x64x8xf32>
    %210 = vector.shape_cast %209 : vector<1x64x8xf32> to vector<64x8xf32>
    %211 = arith.truncf %210 : vector<64x8xf32> to vector<64x8xbf16>
    %c24 = arith.constant 24 : index
    %c0_62 = arith.constant 0 : index
    %212 = vector.load %arg5[%c24, %c0_62] : memref<32x32xbf16, #tpu.memory_space<vmem>>, vector<8x32xbf16>
    %cst_63 = arith.constant dense<0.000000e+00> : vector<64x32xf32>
    %213 = tpu.matmul %211, %212, %cst_63 {dimension_numbers = #tpu.dot_dimension_numbers<[1], [0], [0], [1], [0, 0, 1, 1], [], []>} : vector<64x8xbf16>, vector<8x32xbf16>, vector<64x32xf32> -> vector<64x32xf32>
    %214 = arith.addf %165, %213 : vector<64x32xf32>
    %c0_64 = arith.constant 0 : index
    %c0_65 = arith.constant 0 : index
    %215 = vector.load %arg6[%c0_64, %c0_65] : memref<1x32xf32, #tpu.memory_space<vmem>>, vector<1x32xf32>
    %216 = vector.broadcast %215 : vector<1x32xf32> to vector<64x32xf32>
    %217 = arith.addf %214, %216 : vector<64x32xf32>
    %218 = vector.extract_strided_slice %217 {offsets = [0, 0], sizes = [8, 32], strides = [1, 1]} : vector<64x32xf32> to vector<8x32xf32>
    %c0_66 = arith.constant 0 : index
    %c0_67 = arith.constant 0 : index
    %c0_68 = arith.constant 0 : index
    %219 = vector.load %arg9[%c0_66, %c0_67, %c0_68] : memref<1x8x256xf32, #tpu.memory_space<vmem>>, vector<1x8x32xf32>
    %220 = vector.shape_cast %219 : vector<1x8x32xf32> to vector<8x32xf32>
    %221 = vector.shape_cast %218 : vector<8x32xf32> to vector<1x8x32xf32>
    tpu.vector_store %arg9[%c0_66, %c0_67, %c0_68], %221 {strides = array<i32>} : memref<1x8x256xf32, #tpu.memory_space<vmem>>, vector<1x8x32xf32>,
    %222 = vector.extract_strided_slice %217 {offsets = [8, 0], sizes = [8, 32], strides = [1, 1]} : vector<64x32xf32> to vector<8x32xf32>
    %c0_69 = arith.constant 0 : index
    %c0_70 = arith.constant 0 : index
    %c32 = arith.constant 32 : index
    %223 = vector.load %arg9[%c0_69, %c0_70, %c32] : memref<1x8x256xf32, #tpu.memory_space<vmem>>, vector<1x8x32xf32>
    %224 = vector.shape_cast %223 : vector<1x8x32xf32> to vector<8x32xf32>
    %225 = vector.shape_cast %222 : vector<8x32xf32> to vector<1x8x32xf32>
    tpu.vector_store %arg9[%c0_69, %c0_70, %c32], %225 {strides = array<i32>} : memref<1x8x256xf32, #tpu.memory_space<vmem>>, vector<1x8x32xf32>,
    %226 = vector.extract_strided_slice %217 {offsets = [16, 0], sizes = [8, 32], strides = [1, 1]} : vector<64x32xf32> to vector<8x32xf32>
    %c0_71 = arith.constant 0 : index
    %c0_72 = arith.constant 0 : index
    %c64 = arith.constant 64 : index
    %227 = vector.load %arg9[%c0_71, %c0_72, %c64] : memref<1x8x256xf32, #tpu.memory_space<vmem>>, vector<1x8x32xf32>
    %228 = vector.shape_cast %227 : vector<1x8x32xf32> to vector<8x32xf32>
    %229 = vector.shape_cast %226 : vector<8x32xf32> to vector<1x8x32xf32>
    tpu.vector_store %arg9[%c0_71, %c0_72, %c64], %229 {strides = array<i32>} : memref<1x8x256xf32, #tpu.memory_space<vmem>>, vector<1x8x32xf32>,
    %230 = vector.extract_strided_slice %217 {offsets = [24, 0], sizes = [8, 32], strides = [1, 1]} : vector<64x32xf32> to vector<8x32xf32>
    %c0_73 = arith.constant 0 : index
    %c0_74 = arith.constant 0 : index
    %c96 = arith.constant 96 : index
    %231 = vector.load %arg9[%c0_73, %c0_74, %c96] : memref<1x8x256xf32, #tpu.memory_space<vmem>>, vector<1x8x32xf32>
    %232 = vector.shape_cast %231 : vector<1x8x32xf32> to vector<8x32xf32>
    %233 = vector.shape_cast %230 : vector<8x32xf32> to vector<1x8x32xf32>
    tpu.vector_store %arg9[%c0_73, %c0_74, %c96], %233 {strides = array<i32>} : memref<1x8x256xf32, #tpu.memory_space<vmem>>, vector<1x8x32xf32>,
    %234 = vector.extract_strided_slice %217 {offsets = [32, 0], sizes = [8, 32], strides = [1, 1]} : vector<64x32xf32> to vector<8x32xf32>
    %c0_75 = arith.constant 0 : index
    %c0_76 = arith.constant 0 : index
    %c128 = arith.constant 128 : index
    %235 = vector.load %arg9[%c0_75, %c0_76, %c128] : memref<1x8x256xf32, #tpu.memory_space<vmem>>, vector<1x8x32xf32>
    %236 = vector.shape_cast %235 : vector<1x8x32xf32> to vector<8x32xf32>
    %237 = vector.shape_cast %234 : vector<8x32xf32> to vector<1x8x32xf32>
    tpu.vector_store %arg9[%c0_75, %c0_76, %c128], %237 {strides = array<i32>} : memref<1x8x256xf32, #tpu.memory_space<vmem>>, vector<1x8x32xf32>,
    %238 = vector.extract_strided_slice %217 {offsets = [40, 0], sizes = [8, 32], strides = [1, 1]} : vector<64x32xf32> to vector<8x32xf32>
    %c0_77 = arith.constant 0 : index
    %c0_78 = arith.constant 0 : index
    %c160 = arith.constant 160 : index
    %239 = vector.load %arg9[%c0_77, %c0_78, %c160] : memref<1x8x256xf32, #tpu.memory_space<vmem>>, vector<1x8x32xf32>
    %240 = vector.shape_cast %239 : vector<1x8x32xf32> to vector<8x32xf32>
    %241 = vector.shape_cast %238 : vector<8x32xf32> to vector<1x8x32xf32>
    tpu.vector_store %arg9[%c0_77, %c0_78, %c160], %241 {strides = array<i32>} : memref<1x8x256xf32, #tpu.memory_space<vmem>>, vector<1x8x32xf32>,
    %242 = vector.extract_strided_slice %217 {offsets = [48, 0], sizes = [8, 32], strides = [1, 1]} : vector<64x32xf32> to vector<8x32xf32>
    %c0_79 = arith.constant 0 : index
    %c0_80 = arith.constant 0 : index
    %c192 = arith.constant 192 : index
    %243 = vector.load %arg9[%c0_79, %c0_80, %c192] : memref<1x8x256xf32, #tpu.memory_space<vmem>>, vector<1x8x32xf32>
    %244 = vector.shape_cast %243 : vector<1x8x32xf32> to vector<8x32xf32>
    %245 = vector.shape_cast %242 : vector<8x32xf32> to vector<1x8x32xf32>
    tpu.vector_store %arg9[%c0_79, %c0_80, %c192], %245 {strides = array<i32>} : memref<1x8x256xf32, #tpu.memory_space<vmem>>, vector<1x8x32xf32>,
    %246 = vector.extract_strided_slice %217 {offsets = [56, 0], sizes = [8, 32], strides = [1, 1]} : vector<64x32xf32> to vector<8x32xf32>
    %c0_81 = arith.constant 0 : index
    %c0_82 = arith.constant 0 : index
    %c224 = arith.constant 224 : index
    %247 = vector.load %arg9[%c0_81, %c0_82, %c224] : memref<1x8x256xf32, #tpu.memory_space<vmem>>, vector<1x8x32xf32>
    %248 = vector.shape_cast %247 : vector<1x8x32xf32> to vector<8x32xf32>
    %249 = vector.shape_cast %246 : vector<8x32xf32> to vector<1x8x32xf32>
    tpu.vector_store %arg9[%c0_81, %c0_82, %c224], %249 {strides = array<i32>} : memref<1x8x256xf32, #tpu.memory_space<vmem>>, vector<1x8x32xf32>,
    return
  }
  func.func @transform_0(%arg0: i32, %arg1: i32) -> (i32, i32, i32) {
    %c0_i32 = arith.constant 0 : i32
    %c0_i32_0 = arith.constant 0 : i32
    return %arg0, %arg1, %c0_i32 : i32, i32, i32
  }
  func.func @transform_1(%arg0: i32, %arg1: i32) -> (i32, i32) {
    %c0_i32 = arith.constant 0 : i32
    %c0_i32_0 = arith.constant 0 : i32
    %c0_i32_1 = arith.constant 0 : i32
    return %c0_i32, %c0_i32_0 : i32, i32
  }
  func.func @transform_2(%arg0: i32, %arg1: i32) -> (i32, i32) {
    %c0_i32 = arith.constant 0 : i32
    %c0_i32_0 = arith.constant 0 : i32
    %c0_i32_1 = arith.constant 0 : i32
    return %c0_i32, %c0_i32_0 : i32, i32
  }
  func.func @transform_3(%arg0: i32, %arg1: i32) -> (i32, i32) {
    %c0_i32 = arith.constant 0 : i32
    %c0_i32_0 = arith.constant 0 : i32
    %c0_i32_1 = arith.constant 0 : i32
    return %c0_i32, %c0_i32_0 : i32, i32
  }
  func.func @transform_4(%arg0: i32, %arg1: i32) -> (i32, i32) {
    %c0_i32 = arith.constant 0 : i32
    %c0_i32_0 = arith.constant 0 : i32
    %c0_i32_1 = arith.constant 0 : i32
    return %c0_i32, %c0_i32_0 : i32, i32
  }
  func.func @transform_5(%arg0: i32, %arg1: i32) -> i32 {
    %c0_i32 = arith.constant 0 : i32
    %c0_i32_0 = arith.constant 0 : i32
    return %c0_i32 : i32
  }
  func.func @transform_6(%arg0: i32, %arg1: i32) -> (i32, i32, i32, i32) {
    %c0_i32 = arith.constant 0 : i32
    %c0_i32_0 = arith.constant 0 : i32
    %c0_i32_1 = arith.constant 0 : i32
    %c0_i32_2 = arith.constant 0 : i32
    return %arg0, %c0_i32, %c0_i32_0, %c0_i32_1 : i32, i32, i32, i32
  }
  func.func @transform_7(%arg0: i32, %arg1: i32) -> (i32, i32, i32) {
    %c0_i32 = arith.constant 0 : i32
    %c0_i32_0 = arith.constant 0 : i32
    return %arg0, %arg1, %c0_i32 : i32, i32, i32
  }
}

</mosaic_0001>

<llo_original>
// kernel: tpu_custom_call.1
$region0: #{tpu_custom_call.1}
  #allocation0 [shape = 'u32[]', space=smem, size = 0x4, offset = 0x4, fixed_abs, tag = 'smem constant byte address 0x4 - core index']
  #allocation1 [shape = 'u32[144,128]{1,0:T(1,128)}', space=vmem, size = 0x12000, scoped, tag = 'internal scratch']
  %s0 = inlined_call_operand.hbm [shape: bf16[1,56,256], index: 0, kind: input, shape index: {}]
  %s1 = inlined_call_operand.hbm [shape: bf16[32,96], index: 1, kind: input, shape index: {}]
  %s2 = inlined_call_operand.vmem [shape: f32[1,96], index: 2, kind: input, shape index: {}]
  %s3 = inlined_call_operand.hbm [shape: bf16[32,32], index: 3, kind: input, shape index: {}]
  %s4 = inlined_call_operand.vmem [shape: f32[1,32], index: 4, kind: input, shape index: {}]
  %s5 = inlined_call_operand.vmem [shape: f32[4], index: 5, kind: input, shape index: {}]
  %s6 = inlined_call_operand.hbm [shape: f32[1,4,64,64], index: 6, kind: input, shape index: {}]
  %s7 = inlined_call_operand.hbm [shape: f32[1,56,256], index: 7, kind: output, shape index: {}]
  %s8 = sld [smem:[#allocation0]]
  $region81: #{tpu_custom_call.1} parent=0
    _
  %s10 = ssub.s32 1, %s8
  %s11 = scalar_select 0, %s10, %s8
  $region1: #{tpu_custom_call.1} parent=0
    #allocation2 [shape = 'u8[8192]{0}', space=vmem, size = 0x2000, scoped, tag = 'input window, operand 0']
    #allocation3 [shape = 's32[2]{0}', space=sflag, size = 0x8, scoped, tag = 'scoped memory for tpu_custom_call.1']
    #allocation4 [shape = 's32[2]{0}', space=sflag, size = 0x8, scoped, tag = 'scoped memory for tpu_custom_call.1']
    #allocation5 [shape = 's32[2]{0}', space=sflag, size = 0x8, scoped, tag = 'scoped memory for tpu_custom_call.1']
    #allocation6 [shape = 'u8[8192]{0}', space=vmem, size = 0x2000, scoped, tag = 'input window, operand 1, single buffered']
    #allocation7 [shape = 's32[1]{0}', space=sflag, size = 0x4, scoped, tag = 'scoped memory for tpu_custom_call.1']
    #allocation8 [shape = 'u8[8192]{0}', space=vmem, size = 0x2000, scoped, tag = 'input window, operand 3, single buffered']
    #allocation9 [shape = 'u8[512]{0}', space=smem, size = 0x200, scoped, tag = 'input window, operand 5, single buffered']
    #allocation10 [shape = 'u8[131072]{0}', space=vmem, size = 0x20000, scoped, tag = 'input window, operand 6, single buffered']
    #allocation11 [shape = 's32[1]{0}', space=sflag, size = 0x4, scoped, tag = 'scoped memory for tpu_custom_call.1']
    #allocation12 [shape = 'u8[16384]{0}', space=vmem, size = 0x4000, scoped, tag = 'output window, operand 0']
    %12 = vsyncpa [#allocation3], 0
    %s13 = scalar_lea.sflag [#allocation3], 1
    %14 = vsyncpa %s13, 0
    %15 = vsyncpa [#allocation7], 0
    %16 = vsyncpa [#allocation5], 0
    %17 = vsyncpa [#allocation11], 0
    %18 = vsyncpa [#allocation4], 0
    %s19 = scalar_lea.sflag [#allocation4], 1
    %20 = vsyncpa %s19, 0
    loop: start=0, step=1, limit=9
    $region2: #{tpu_custom_call.1} parent=1 // loop_pre_header
      _
    $region3: #{tpu_custom_call.1} parent=1 // loop_header
      %s22 = sphi 0, %s26
      %p23 = scmp.ge.s32.totalorder %s22, 9
      %s29 = sphi 0, %s41
      %s30 = sphi 0, %s37
      %s31 = sphi 0, %s29
      %s32 = sphi 0, %s30
      %s33 = sphi 0, %s31
      %s34 = sphi 0, %s32
      %s46 = sphi 0, %s48
      %s49 = sphi 0, %s46
      %s50 = sphi 0, %s49
      %s66 = sphi 0, %s50
      %s70 = sphi 0, %s70
      %s72 = sphi 0, %s70
      %s73 = sphi 0, %s72
      %s87 = sphi 0, %s73
      %s91 = sphi 0, %s91
      %s93 = sphi 0, %s91
      %s94 = sphi 0, %s93
      %s108 = sphi 0, %s94
      %s112 = sphi 0, %s112
      %s114 = sphi 0, %s112
      %s115 = sphi 0, %s114
      %s129 = sphi 0, %s115
      %s133 = sphi 0, %s133
      %s135 = sphi 0, %s133
      %s136 = sphi 0, %s135
      %s150 = sphi 0, %s136
      %s154 = sphi 0, %s154
      %s156 = sphi 0, %s154
      %s157 = sphi 0, %s156
      %s171 = sphi 0, %s157
      %s177 = sphi 0, %s179
      %s180 = sphi 0, %s177
      %s181 = sphi 0, %s180
      %s197 = sphi 0, %s181
      %s205 = sphi 0, %s207
      %s208 = sphi 0, %s205
      %s209 = sphi 0, %s208
      %s225 = sphi 0, %s209
    $region4: #{tpu_custom_call.1} parent=1 // loop_header_branch
      %25 = sbr.rel (%p23) target = $region8
    $region5: #{tpu_custom_call.1} parent=1 // loop_body
      %s27 = ssub.s32 %s22, 1
      %s28 = ssub.s32 %s22, 2
      %s35 = sadd.s32 1, %s30
      %p36 = scmp.ge.s32.totalorder %s35, 7
      %s37 = scalar_select %p36, 0, %s35
      %s38 = sadd.s32 1, %s29
      %s39 = scalar_select %p36, %s38, %s29
      %p40 = scmp.ge.s32.totalorder %s39, 1
      %s41 = scalar_select %p40, 0, %s39
      %s42 = ssub.s32 %s29, %s41
      %s43 = ssub.s32 %s30, %s37
      %s44 = sor.u32 %s42, %s43
      %p45 = scmp.eq.s32.totalorder %s44, 0
      %s47 = sadd.s32 %s46, 1
      %s48 = scalar_select %p45, %s46, %s47
      %p51 = pneg %p45
      %p52 = scmp.eq.s32.totalorder %s22, 6
      %p53 = por %p51, %p52
      %p54 = scmp.ne.s32.totalorder %s46, %s49
      %p55 = scmp.eq.s32.totalorder %s22, 0
      %p56 = por %p54, %p55
      %p57 = scmp.ne.s32.totalorder %s46, %s49
      %p58 = scmp.eq.s32.totalorder %s27, 6
      %p59 = por %p57, %p58
      %p60 = scmp.ne.s32.totalorder %s49, %s50
      %p61 = scmp.eq.s32.totalorder %s27, 0
      %p62 = por %p60, %p61
      %p63 = scmp.ne.s32.totalorder %s49, %s50
      %p64 = scmp.eq.s32.totalorder %s28, 6
      %p65 = por %p63, %p64
      %p67 = scmp.ne.s32.totalorder %s50, %s66
      %p68 = scmp.eq.s32.totalorder %s28, 0
      %p69 = por %p67, %p68
      %s71 = sadd.s32 %s70, 1
      %p74 = scmp.eq.s32.totalorder %s22, 6
      %p75 = scmp.ne.s32.totalorder %s70, %s72
      %p76 = scmp.eq.s32.totalorder %s22, 0
      %p77 = por %p75, %p76
      %p78 = scmp.ne.s32.totalorder %s70, %s72
      %p79 = scmp.eq.s32.totalorder %s27, 6
      %p80 = por %p78, %p79
      %p81 = scmp.ne.s32.totalorder %s72, %s73
      %p82 = scmp.eq.s32.totalorder %s27, 0
      %p83 = por %p81, %p82
      %p84 = scmp.ne.s32.totalorder %s72, %s73
      %p85 = scmp.eq.s32.totalorder %s28, 6
      %p86 = por %p84, %p85
      %p88 = scmp.ne.s32.totalorder %s73, %s87
      %p89 = scmp.eq.s32.totalorder %s28, 0
      %p90 = por %p88, %p89
      %s92 = sadd.s32 %s91, 1
      %p95 = scmp.eq.s32.totalorder %s22, 6
      %p96 = scmp.ne.s32.totalorder %s91, %s93
      %p97 = scmp.eq.s32.totalorder %s22, 0
      %p98 = por %p96, %p97
      %p99 = scmp.ne.s32.totalorder %s91, %s93
      %p100 = scmp.eq.s32.totalorder %s27, 6
      %p101 = por %p99, %p100
      %p102 = scmp.ne.s32.totalorder %s93, %s94
      %p103 = scmp.eq.s32.totalorder %s27, 0
      %p104 = por %p102, %p103
      %p105 = scmp.ne.s32.totalorder %s93, %s94
      %p106 = scmp.eq.s32.totalorder %s28, 6
      %p107 = por %p105, %p106
      %p109 = scmp.ne.s32.totalorder %s94, %s108
      %p110 = scmp.eq.s32.totalorder %s28, 0
      %p111 = por %p109, %p110
      %s113 = sadd.s32 %s112, 1
      %p116 = scmp.eq.s32.totalorder %s22, 6
      %p117 = scmp.ne.s32.totalorder %s112, %s114
      %p118 = scmp.eq.s32.totalorder %s22, 0
      %p119 = por %p117, %p118
      %p120 = scmp.ne.s32.totalorder %s112, %s114
      %p121 = scmp.eq.s32.totalorder %s27, 6
      %p122 = por %p120, %p121
      %p123 = scmp.ne.s32.totalorder %s114, %s115
      %p124 = scmp.eq.s32.totalorder %s27, 0
      %p125 = por %p123, %p124
      %p126 = scmp.ne.s32.totalorder %s114, %s115
      %p127 = scmp.eq.s32.totalorder %s28, 6
      %p128 = por %p126, %p127
      %p130 = scmp.ne.s32.totalorder %s115, %s129
      %p131 = scmp.eq.s32.totalorder %s28, 0
      %p132 = por %p130, %p131
      %s134 = sadd.s32 %s133, 1
      %p137 = scmp.eq.s32.totalorder %s22, 6
      %p138 = scmp.ne.s32.totalorder %s133, %s135
      %p139 = scmp.eq.s32.totalorder %s22, 0
      %p140 = por %p138, %p139
      %p141 = scmp.ne.s32.totalorder %s133, %s135
      %p142 = scmp.eq.s32.totalorder %s27, 6
      %p143 = por %p141, %p142
      %p144 = scmp.ne.s32.totalorder %s135, %s136
      %p145 = scmp.eq.s32.totalorder %s27, 0
      %p146 = por %p144, %p145
      %p147 = scmp.ne.s32.totalorder %s135, %s136
      %p148 = scmp.eq.s32.totalorder %s28, 6
      %p149 = por %p147, %p148
      %p151 = scmp.ne.s32.totalorder %s136, %s150
      %p152 = scmp.eq.s32.totalorder %s28, 0
      %p153 = por %p151, %p152
      %s155 = sadd.s32 %s154, 1
      %p158 = scmp.eq.s32.totalorder %s22, 6
      %p159 = scmp.ne.s32.totalorder %s154, %s156
      %p160 = scmp.eq.s32.totalorder %s22, 0
      %p161 = por %p159, %p160
      %p162 = scmp.ne.s32.totalorder %s154, %s156
      %p163 = scmp.eq.s32.totalorder %s27, 6
      %p164 = por %p162, %p163
      %p165 = scmp.ne.s32.totalorder %s156, %s157
      %p166 = scmp.eq.s32.totalorder %s27, 0
      %p167 = por %p165, %p166
      %p168 = scmp.ne.s32.totalorder %s156, %s157
      %p169 = scmp.eq.s32.totalorder %s28, 6
      %p170 = por %p168, %p169
      %p172 = scmp.ne.s32.totalorder %s157, %s171
      %p173 = scmp.eq.s32.totalorder %s28, 0
      %p174 = por %p172, %p173
      %s175 = ssub.s32 %s29, %s41
      %p176 = scmp.eq.s32.totalorder %s175, 0
      %s178 = sadd.s32 %s177, 1
      %s179 = scalar_select %p176, %s177, %s178
      %p182 = pneg %p176
      %p183 = scmp.eq.s32.totalorder %s22, 6
      %p184 = por %p182, %p183
      %p185 = scmp.ne.s32.totalorder %s177, %s180
      %p186 = scmp.eq.s32.totalorder %s22, 0
      %p187 = por %p185, %p186
      %p188 = scmp.ne.s32.totalorder %s177, %s180
      %p189 = scmp.eq.s32.totalorder %s27, 6
      %p190 = por %p188, %p189
      %p191 = scmp.ne.s32.totalorder %s180, %s181
      %p192 = scmp.eq.s32.totalorder %s27, 0
      %p193 = por %p191, %p192
      %p194 = scmp.ne.s32.totalorder %s180, %s181
      %p195 = scmp.eq.s32.totalorder %s28, 6
      %p196 = por %p194, %p195
      %p198 = scmp.ne.s32.totalorder %s181, %s197
      %p199 = scmp.eq.s32.totalorder %s28, 0
      %p200 = por %p198, %p199
      %s201 = ssub.s32 %s29, %s41
      %s202 = ssub.s32 %s30, %s37
      %s203 = sor.u32 %s201, %s202
      %p204 = scmp.eq.s32.totalorder %s203, 0
      %s206 = sadd.s32 %s205, 1
      %s207 = scalar_select %p204, %s205, %s206
      %p210 = pneg %p204
      %p211 = scmp.eq.s32.totalorder %s22, 6
      %p212 = por %p210, %p211
      %p213 = scmp.ne.s32.totalorder %s205, %s208
      %p214 = scmp.eq.s32.totalorder %s22, 0
      %p215 = por %p213, %p214
      %p216 = scmp.ne.s32.totalorder %s205, %s208
      %p217 = scmp.eq.s32.totalorder %s27, 6
      %p218 = por %p216, %p217
      %p219 = scmp.ne.s32.totalorder %s208, %s209
      %p220 = scmp.eq.s32.totalorder %s27, 0
      %p221 = por %p219, %p220
      %p222 = scmp.ne.s32.totalorder %s208, %s209
      %p223 = scmp.eq.s32.totalorder %s28, 6
      %p224 = por %p222, %p223
      %p226 = scmp.ne.s32.totalorder %s209, %s225
      %p227 = scmp.eq.s32.totalorder %s28, 0
      %p228 = por %p226, %p227
      %p229 = scmp.le.s32.totalorder 1, %s22
      %p230 = scmp.lt.s32.totalorder %s22, 8
      %p231 = pnand %p229, %p230
      %p232 = pneg %p231
      // Predicated region
      $region9: #{tpu_custom_call.1} parent=5 // pred_check
        _
      $region10: #{tpu_custom_call.1} parent=5 // pred_check_branch
        %234 = sbr.rel (%p231) target = $region12
      $region11: #{tpu_custom_call.1} parent=5 // pred_region
        %s235 = ssub.s32 %s22, 1
        // Predicated region
        $region13: #{tpu_custom_call.1} parent=11 // pred_check
          %p236 = pneg %p83
        $region14: #{tpu_custom_call.1} parent=11 // pred_check_branch
          %238 = sbr.rel (%p236) target = $region16
        $region15: #{tpu_custom_call.1} parent=11 // pred_region
          %s240 = ssub.s32 256, 256
          %241 = vsyncadd [#allocation7], %s240
          %s242 = sshll.u32 [#allocation6], 4
          %s243 = int_to_ptr.vmem [resolvable:$true] %s242
          %248 = dma.hbm_to_vmem [thread:$0]  %s1, 256, %s243, [#allocation7], 64, 64, 4
        $region16: #{tpu_custom_call.1} parent=11 // pred_fallthru
          _
        // Predicated region
        $region17: #{tpu_custom_call.1} parent=11 // pred_check
          %p249 = pneg %p104
        $region18: #{tpu_custom_call.1} parent=11 // pred_check_branch
          %251 = sbr.rel (%p249) target = $region20
        $region19: #{tpu_custom_call.1} parent=11 // pred_region
          _
        $region20: #{tpu_custom_call.1} parent=11 // pred_fallthru
          _
        // Predicated region
        $region21: #{tpu_custom_call.1} parent=11 // pred_check
          %p252 = pneg %p125
        $region22: #{tpu_custom_call.1} parent=11 // pred_check_branch
          %254 = sbr.rel (%p252) target = $region24
        $region23: #{tpu_custom_call.1} parent=11 // pred_region
          %s256 = ssub.s32 256, 256
          %257 = vsyncadd [#allocation7], %s256
          %s258 = sshll.u32 [#allocation8], 4
          %s259 = int_to_ptr.vmem [resolvable:$true] %s258
          %264 = dma.hbm_to_vmem [thread:$0]  %s3, 256, %s259, [#allocation7], 64, 64, 4
        $region24: #{tpu_custom_call.1} parent=11 // pred_fallthru
          _
        // Predicated region
        $region25: #{tpu_custom_call.1} parent=11 // pred_check
          %p265 = pneg %p146
        $region26: #{tpu_custom_call.1} parent=11 // pred_check_branch
          %267 = sbr.rel (%p265) target = $region28
        $region27: #{tpu_custom_call.1} parent=11 // pred_region
          _
        $region28: #{tpu_custom_call.1} parent=11 // pred_fallthru
          _
        // Predicated region
        $region29: #{tpu_custom_call.1} parent=11 // pred_check
          %p268 = pneg %p167
        $region30: #{tpu_custom_call.1} parent=11 // pred_check_branch
          %270 = sbr.rel (%p268) target = $region32
        $region31: #{tpu_custom_call.1} parent=11 // pred_region
          %s272 = ssub.s32 16, 16
          %273 = vsyncadd [#allocation5], %s272
          %s275 = sshll.u32 %s5, 4
          %s276 = int_to_ptr.vmem [resolvable:$true] %s275
          %278 = dma.vmem_to_smem %s276, 16, [#allocation9], [#allocation5]
        $region32: #{tpu_custom_call.1} parent=11 // pred_fallthru
          _
        // Predicated region
        $region33: #{tpu_custom_call.1} parent=11 // pred_check
          %p279 = pneg %p193
        $region34: #{tpu_custom_call.1} parent=11 // pred_check_branch
          %281 = sbr.rel (%p279) target = $region36
        $region35: #{tpu_custom_call.1} parent=11 // pred_region
          %s283 = ssub.s32 4096, 4096
          %284 = vsyncadd [#allocation11], %s283
          %s285 = smul.addr %s31, 32
          %s286 = smul.addr %s285, 128
          %s287 = scalar_lea.hbm %s6, %s286
          %s288 = sshll.u32 [#allocation10], 4
          %s289 = int_to_ptr.vmem [resolvable:$true] %s288
          %294 = dma.hbm_to_vmem [thread:$0]  %s287, 4096, %s289, [#allocation11], 128, 128, 8
        $region36: #{tpu_custom_call.1} parent=11 // pred_fallthru
          _
      $region12: #{tpu_custom_call.1} parent=5 // pred_fallthru
        _
      %p295 = scmp.lt.s32.totalorder %s22, 7
      // Predicated region
      $region37: #{tpu_custom_call.1} parent=5 // pred_check
        %p296 = pneg %p295
      $region38: #{tpu_custom_call.1} parent=5 // pred_check_branch
        %298 = sbr.rel (%p296) target = $region40
      $region39: #{tpu_custom_call.1} parent=5 // pred_region
        // Predicated region
        $region41: #{tpu_custom_call.1} parent=39 // pred_check
          %p299 = pneg %p56
        $region42: #{tpu_custom_call.1} parent=39 // pred_check_branch
          %301 = sbr.rel (%p299) target = $region44
        $region43: #{tpu_custom_call.1} parent=39 // pred_region
          %s302 = sand.u32 %s46, 1
          %s303 = scalar_lea.sflag [#allocation3], %s302
          %s304 = sand.u32 %s46, 1
          %s305 = smul.addr %s304, 8
          %s306 = scalar_lea.vmem [#allocation2], %s305
          %s308 = ssub.s32 128, 128
          %309 = vsyncadd %s303, %s308
          %s310 = smul.addr %s30, 2
          %s311 = smul.addr %s29, 14
          %s312 = sadd.s32 %s310, %s311
          %s313 = smul.addr %s312, 64
          %s314 = scalar_lea.hbm %s0, %s313
          %s316 = sshll.u32 %s306, 4
          %s317 = int_to_ptr.vmem [resolvable:$true] %s316
          %319 = dma.hbm_to_vmem [thread:$0]  %s314, 128, %s317, %s303
        $region44: #{tpu_custom_call.1} parent=39 // pred_fallthru
          _
      $region40: #{tpu_custom_call.1} parent=5 // pred_fallthru
        _
      %p320 = scmp.le.s32.totalorder 1, %s22
      %p321 = scmp.lt.s32.totalorder %s22, 8
      %p322 = pnand %p320, %p321
      %p323 = pneg %p322
      // Predicated region
      $region45: #{tpu_custom_call.1} parent=5 // pred_check
        _
      $region46: #{tpu_custom_call.1} parent=5 // pred_check_branch
        %325 = sbr.rel (%p322) target = $region48
      $region47: #{tpu_custom_call.1} parent=5 // pred_region
        %s326 = ssub.s32 %s22, 1
        %s327 = sand.u32 %s49, 1
        %s328 = scalar_lea.sflag [#allocation3], %s327
        %s329 = sand.u32 %s49, 1
        %s330 = smul.addr %s329, 8
        %s331 = scalar_lea.vmem [#allocation2], %s330
        // Predicated region
        $region49: #{tpu_custom_call.1} parent=47 // pred_check
          %p332 = pneg %p62
        $region50: #{tpu_custom_call.1} parent=47 // pred_check_branch
          %334 = sbr.rel (%p332) target = $region52
        $region51: #{tpu_custom_call.1} parent=47 // pred_region
          %335 = dma.done %s328, 128
        $region52: #{tpu_custom_call.1} parent=47 // pred_fallthru
          _
        // Predicated region
        $region53: #{tpu_custom_call.1} parent=47 // pred_check
          %p336 = pneg %p83
        $region54: #{tpu_custom_call.1} parent=47 // pred_check_branch
          %338 = sbr.rel (%p336) target = $region56
        $region55: #{tpu_custom_call.1} parent=47 // pred_region
          %339 = dma.done [#allocation7], 256
        $region56: #{tpu_custom_call.1} parent=47 // pred_fallthru
          _
        // Predicated region
        $region57: #{tpu_custom_call.1} parent=47 // pred_check
          %p340 = pneg %p125
        $region58: #{tpu_custom_call.1} parent=47 // pred_check_branch
          %342 = sbr.rel (%p340) target = $region60
        $region59: #{tpu_custom_call.1} parent=47 // pred_region
          %343 = dma.done [#allocation7], 256
        $region60: #{tpu_custom_call.1} parent=47 // pred_fallthru
          _
        // Predicated region
        $region61: #{tpu_custom_call.1} parent=47 // pred_check
          %p344 = pneg %p167
        $region62: #{tpu_custom_call.1} parent=47 // pred_check_branch
          %346 = sbr.rel (%p344) target = $region64
        $region63: #{tpu_custom_call.1} parent=47 // pred_region
          %347 = dma.done [#allocation5], 16
        $region64: #{tpu_custom_call.1} parent=47 // pred_fallthru
          _
        // Predicated region
        $region65: #{tpu_custom_call.1} parent=47 // pred_check
          %p348 = pneg %p193
        $region66: #{tpu_custom_call.1} parent=47 // pred_check_branch
          %350 = sbr.rel (%p348) target = $region68
        $region67: #{tpu_custom_call.1} parent=47 // pred_region
          %351 = dma.done [#allocation11], 4096
        $region68: #{tpu_custom_call.1} parent=47 // pred_fallthru
          _
        %352 = sfence
        %s353 = sand.u32 %s49, 1
        %s354 = scalar_lea.sflag [#allocation3], %s353
        %s355 = sand.u32 %s49, 1
        %s356 = smul.addr %s355, 8
        %s357 = scalar_lea.vmem [#allocation2], %s356
        %p358 = pneg %p62
        %p359 = pneg %p59
        %p360 = pneg %p83
        %p361 = pneg %p80
        %p362 = pneg %p104
        %p363 = pneg %p101
        %p364 = pneg %p125
        %p365 = pneg %p122
        %p366 = pneg %p146
        %p367 = pneg %p143
        %p368 = pneg %p167
        %p369 = pneg %p164
        %p370 = pneg %p193
        %p371 = pneg %p190
        %p372 = pneg %p221
        %p373 = pneg %p218
        %s374 = sand.u32 %s208, 1
        %s375 = scalar_lea.sflag [#allocation4], %s374
        %s376 = sand.u32 %s208, 1
        %s377 = smul.addr %s376, 16
        %s378 = scalar_lea.vmem [#allocation12], %s377
        %v380 = vld [vmem:[%s331] sm:$0xff]
        %v382 = vunpack.c.l.b16 %v380
        %v383 = vpack.c.b16 %v382, %v382
        %384 = vrot.lane.b32.xlu0 %v383, 96
        %v385 = vpop.permute.xlu0 %384
        %386 = vrot.lane.b32.xlu0 %v383, 64
        %v387 = vpop.permute.xlu0 %386
        %388 = vrot.lane.b32.xlu0 %v383, 32
        %v389 = vpop.permute.xlu0 %388
        %v390 = vunpack.c.h.b16 %v380
        %v391 = vpack.c.b16 %v390, %v390
        %392 = vrot.lane.b32.xlu0 %v391, 96
        %v393 = vpop.permute.xlu0 %392
        %394 = vrot.lane.b32.xlu0 %v391, 64
        %v395 = vpop.permute.xlu0 %394
        %396 = vrot.lane.b32.xlu0 %v391, 32
        %v397 = vpop.permute.xlu0 %396
        %vm398 = vcmask 1043456
        %v401 = vsel %vm398, %v380, %v385
        %v404 = vsel %vm398, %v387, %v389
        %v407 = vsel %vm398, %v391, %v393
        %v410 = vsel %vm398, %v395, %v397
        %v411 = vld [vmem:[#allocation6] sm:$0xf]
        %v412 = vld [vmem:[#allocation6 + $0x4] sm:$0xf]
        %v413 = vld [vmem:[#allocation6 + $0x8] sm:$0xf]
        %v414 = vld [vmem:[#allocation6 + $0xc] sm:$0xf]
        %v415 = vld [vmem:[%s2] sm:$0x1]
        %v417 = vlaneseq
        %v418 = vshrl.u32 %v417, 7
        %v419 = vsub.s32 0, %v418
        %v420 = vrot.slane %v415, %v419
        %v426 = vunpack.c.l.b16 %v411
        %v427 = vunpack.c.l.b16 %v412
        %v428 = vunpack.c.l.b16 %v413
        %v429 = vunpack.c.l.b16 %v414
        %v430 = vpack.c.b16 %v427, %v426
        %v431 = vpack.c.b16 %v429, %v428
        %vm434 = vcmask 261120
        %v435 = vsel %vm434, %v401, 0
        %v437 = vsel %vm434, %v404, 0
        %v439 = vsel %vm434, %v407, 0
        %v441 = vsel %vm434, %v410, 0
        %443 = vmatprep.subr.bf16.mxu0 0
        %444 = vmatpush1.bf16.msra.mxu0 0
        %445 = vmatprep.subr.bf16.mxu0 0
        %446 = vmatpush1.bf16.msra.mxu0 0
        %447 = vmatprep.subr.bf16.mxu0 0
        %448 = vmatpush1.bf16.msra.mxu0 0
        %449 = vmatprep.subr.bf16.mxu0 0
        %450 = vmatpush1.bf16.msra.mxu0 0
        %451 = vmatprep.subr.bf16.mxu0 0
        %452 = vmatpush1.bf16.msra.mxu0 0
        %453 = vmatprep.subr.bf16.mxu0 0
        %454 = vmatpush1.bf16.msra.mxu0 0
        %455 = vmatprep.subr.bf16.mxu0 0
        %456 = vmatpush1.bf16.msra.mxu0 %v431
        %457 = vmatprep.subr.bf16.mxu0 0
        %458 = vmatpush1.bf16.msra.mxu0 %v430
        %459 = vmatprep.subr.bf16.mxu0 0
        %460 = vmatpush2.bf16.msra.mxu0 0
        %461 = vmatprep.subr.bf16.mxu0 0
        %462 = vmatpush2.bf16.msra.mxu0 0
        %463 = vmatprep.subr.bf16.mxu0 0
        %464 = vmatpush2.bf16.msra.mxu0 0
        %465 = vmatprep.subr.bf16.mxu0 0
        %466 = vmatpush2.bf16.msra.mxu0 0
        %467 = vmatprep.subr.bf16.mxu0 0
        %468 = vmatpush2.bf16.msra.mxu0 0
        %469 = vmatprep.subr.bf16.mxu0 0
        %470 = vmatpush2.bf16.msra.mxu0 0
        %471 = vmatprep.subr.bf16.mxu0 0
        %472 = vmatpush2.bf16.msra.mxu0 0
        %473 = vmatprep.subr.bf16.mxu0 0
        %474 = vmatpush2.bf16.msra.mxu0 0
        %475 = vmatprep.mubr.bf16.mxu0 0
        %476 = vmatmul.mubr.bf16.gmra.mxu0 %v435
        %v477 = vpop.f32.mrf.mxu0
        %v478 = vadd.f32 %v420, %v477
        %v479 = vpop.f32.mrf.mxu0
        %v480 = vpop.f32.mrf.mxu0
        %v481 = vadd.f32 %v420, %v480
        %v482 = vpop.f32.mrf.mxu0
        %483 = vmatprep.mubr.bf16.mxu0 0
        %484 = vmatmul.mubr.bf16.gmra.mxu0 %v437
        %v485 = vpop.f32.mrf.mxu0
        %v486 = vadd.f32 %v420, %v485
        %v487 = vpop.f32.mrf.mxu0
        %v488 = vpop.f32.mrf.mxu0
        %v489 = vadd.f32 %v420, %v488
        %v490 = vpop.f32.mrf.mxu0
        %491 = vmatprep.mubr.bf16.mxu0 0
        %492 = vmatmul.mubr.bf16.gmra.mxu0 %v439
        %v493 = vpop.f32.mrf.mxu0
        %v494 = vadd.f32 %v420, %v493
        %v495 = vpop.f32.mrf.mxu0
        %v496 = vpop.f32.mrf.mxu0
        %v497 = vadd.f32 %v420, %v496
        %v498 = vpop.f32.mrf.mxu0
        %499 = vmatprep.mubr.bf16.mxu0 0
        %500 = vmatmul.mubr.bf16.gmra.mxu0 %v441
        %v501 = vpop.f32.mrf.mxu0
        %v502 = vadd.f32 %v420, %v501
        %v503 = vpop.f32.mrf.mxu0
        %v504 = vpop.f32.mrf.mxu0
        %v505 = vadd.f32 %v420, %v504
        %v506 = vpop.f32.mrf.mxu0
        %507 = vdwg.mxu0
        %v508 = vpack.c.bf16 %v481, %v478
        %v509 = vpack.c.bf16 %v489, %v486
        %v510 = vpack.c.bf16 %v497, %v494
        %v511 = vpack.c.bf16 %v505, %v502
        %v512 = vmul.f32 %v478, %v478
        %v513 = vmul.f32 %v481, %v481
        %v514 = vmul.f32 %v486, %v486
        %v515 = vmul.f32 %v489, %v489
        %v516 = vmul.f32 %v494, %v494
        %v517 = vmul.f32 %v497, %v497
        %v518 = vmul.f32 %v502, %v502
        %v519 = vmul.f32 %v505, %v505
        %vm520 = vcmask 64512
        %v521 = vsel %vm520, %v512, 0.0
        %522 = vadd.xlane.f32.xlu0 %v521
        %v523 = vpop.xlane.xlu0 %522
        %v524 = vsel %vm520, %v513, 0.0
        %525 = vadd.xlane.f32.xlu0 %v524
        %v526 = vpop.xlane.xlu0 %525
        %v527 = vsel %vm520, %v514, 0.0
        %528 = vadd.xlane.f32.xlu0 %v527
        %v529 = vpop.xlane.xlu0 %528
        %v530 = vsel %vm520, %v515, 0.0
        %531 = vadd.xlane.f32.xlu0 %v530
        %v532 = vpop.xlane.xlu0 %531
        %v533 = vsel %vm520, %v516, 0.0
        %534 = vadd.xlane.f32.xlu0 %v533
        %v535 = vpop.xlane.xlu0 %534
        %v536 = vsel %vm520, %v517, 0.0
        %537 = vadd.xlane.f32.xlu0 %v536
        %v538 = vpop.xlane.xlu0 %537
        %v539 = vsel %vm520, %v518, 0.0
        %540 = vadd.xlane.f32.xlu0 %v539
        %v541 = vpop.xlane.xlu0 %540
        %v542 = vsel %vm520, %v519, 0.0
        %543 = vadd.xlane.f32.xlu0 %v542
        %v544 = vpop.xlane.xlu0 %543
        %553 = vrot.lane.b32.xlu0 %v512, 96
        %v554 = vpop.permute.xlu0 %553
        %555 = vrot.lane.b32.xlu0 %v513, 96
        %v556 = vpop.permute.xlu0 %555
        %557 = vrot.lane.b32.xlu0 %v514, 96
        %v558 = vpop.permute.xlu0 %557
        %559 = vrot.lane.b32.xlu0 %v515, 96
        %v560 = vpop.permute.xlu0 %559
        %561 = vrot.lane.b32.xlu0 %v516, 96
        %v562 = vpop.permute.xlu0 %561
        %563 = vrot.lane.b32.xlu0 %v517, 96
        %v564 = vpop.permute.xlu0 %563
        %565 = vrot.lane.b32.xlu0 %v518, 96
        %v566 = vpop.permute.xlu0 %565
        %567 = vrot.lane.b32.xlu0 %v519, 96
        %v568 = vpop.permute.xlu0 %567
        %v577 = vsel %vm520, %v554, 0.0
        %578 = vadd.xlane.f32.xlu0 %v577
        %v579 = vpop.xlane.xlu0 %578
        %v580 = vsel %vm520, %v556, 0.0
        %581 = vadd.xlane.f32.xlu0 %v580
        %v582 = vpop.xlane.xlu0 %581
        %v583 = vsel %vm520, %v558, 0.0
        %584 = vadd.xlane.f32.xlu0 %v583
        %v585 = vpop.xlane.xlu0 %584
        %v586 = vsel %vm520, %v560, 0.0
        %587 = vadd.xlane.f32.xlu0 %v586
        %v588 = vpop.xlane.xlu0 %587
        %v589 = vsel %vm520, %v562, 0.0
        %590 = vadd.xlane.f32.xlu0 %v589
        %v591 = vpop.xlane.xlu0 %590
        %v592 = vsel %vm520, %v564, 0.0
        %593 = vadd.xlane.f32.xlu0 %v592
        %v594 = vpop.xlane.xlu0 %593
        %v595 = vsel %vm520, %v566, 0.0
        %596 = vadd.xlane.f32.xlu0 %v595
        %v597 = vpop.xlane.xlu0 %596
        %v598 = vsel %vm520, %v568, 0.0
        %599 = vadd.xlane.f32.xlu0 %v598
        %v600 = vpop.xlane.xlu0 %599
        %v601 = vmax.f32 %v523, 1e-24
        %v602 = vmax.f32 %v526, 1e-24
        %v603 = vmax.f32 %v529, 1e-24
        %v604 = vmax.f32 %v532, 1e-24
        %v605 = vmax.f32 %v535, 1e-24
        %v606 = vmax.f32 %v538, 1e-24
        %v607 = vmax.f32 %v541, 1e-24
        %v608 = vmax.f32 %v544, 1e-24
        %v609 = vrsqrt.pop %v601
        %v610 = vrsqrt.pop %v602
        %v611 = vrsqrt.pop %v603
        %v612 = vrsqrt.pop %v604
        %v613 = vrsqrt.pop %v605
        %v614 = vrsqrt.pop %v606
        %v615 = vrsqrt.pop %v607
        %v616 = vrsqrt.pop %v608
        %s617 = sld [smem:[#allocation9]]
        %v618 = vstv %s617
        %v619 = vmul.f32 %v609, %v618
        %v620 = vmul.f32 %v610, %v618
        %v621 = vmul.f32 %v611, %v618
        %v622 = vmul.f32 %v612, %v618
        %v623 = vmul.f32 %v613, %v618
        %v624 = vmul.f32 %v614, %v618
        %v625 = vmul.f32 %v615, %v618
        %v626 = vmul.f32 %v616, %v618
        %v627 = vmul.f32 %v478, %v619
        %v628 = vmul.f32 %v481, %v620
        %v629 = vmul.f32 %v486, %v621
        %v630 = vmul.f32 %v489, %v622
        %v631 = vmul.f32 %v494, %v623
        %v632 = vmul.f32 %v497, %v624
        %v633 = vmul.f32 %v502, %v625
        %v634 = vmul.f32 %v505, %v626
        %v635 = vmax.f32 %v579, 1e-24
        %v636 = vmax.f32 %v582, 1e-24
        %v637 = vmax.f32 %v585, 1e-24
        %v638 = vmax.f32 %v588, 1e-24
        %v639 = vmax.f32 %v591, 1e-24
        %v640 = vmax.f32 %v594, 1e-24
        %v641 = vmax.f32 %v597, 1e-24
        %v642 = vmax.f32 %v600, 1e-24
        %v643 = vrsqrt.pop %v635
        %v644 = vrsqrt.pop %v636
        %v645 = vrsqrt.pop %v637
        %v646 = vrsqrt.pop %v638
        %v647 = vrsqrt.pop %v639
        %v648 = vrsqrt.pop %v640
        %v649 = vrsqrt.pop %v641
        %v650 = vrsqrt.pop %v642
        %v651 = vmul.f32 %v478, %v643
        %v652 = vmul.f32 %v481, %v644
        %v653 = vmul.f32 %v486, %v645
        %v654 = vmul.f32 %v489, %v646
        %v655 = vmul.f32 %v494, %v647
        %v656 = vmul.f32 %v497, %v648
        %v657 = vmul.f32 %v502, %v649
        %v658 = vmul.f32 %v505, %v650
        %v659 = vpack.c.bf16 %v628, %v627
        %v660 = vpack.c.bf16 %v630, %v629
        %v661 = vpack.c.bf16 %v632, %v631
        %v662 = vpack.c.bf16 %v634, %v633
        %v663 = vpack.c.bf16 %v652, %v651
        %v664 = vpack.c.bf16 %v654, %v653
        %v665 = vpack.c.bf16 %v656, %v655
        %v666 = vpack.c.bf16 %v658, %v657
        %v667 = vld [vmem:[#allocation10] sm:$0xff]
        %v668 = vld [vmem:[#allocation10 + $0x8] sm:$0xff]
        %v669 = vld [vmem:[#allocation10 + $0x10] sm:$0xff]
        %v670 = vld [vmem:[#allocation10 + $0x18] sm:$0xff]
        %v671 = vld [vmem:[#allocation10 + $0x20] sm:$0xff]
        %v672 = vld [vmem:[#allocation10 + $0x28] sm:$0xff]
        %v673 = vld [vmem:[#allocation10 + $0x30] sm:$0xff]
        %v674 = vld [vmem:[#allocation10 + $0x38] sm:$0xff]
        %679 = vrot.lane.b32.xlu0 %v663, 96
        %v680 = vpop.permute.xlu0 %679
        %681 = vrot.lane.b32.xlu0 %v664, 96
        %v682 = vpop.permute.xlu0 %681
        %683 = vrot.lane.b32.xlu0 %v665, 96
        %v684 = vpop.permute.xlu0 %683
        %685 = vrot.lane.b32.xlu0 %v666, 96
        %v686 = vpop.permute.xlu0 %685
        %v688 = vsel %vm520, %v659, 0
        %v691 = vsel %vm520, %v660, 0
        %v694 = vsel %vm520, %v661, 0
        %v697 = vsel %vm520, %v662, 0
        %v700 = vsel %vm520, %v680, 0
        %v703 = vsel %vm520, %v682, 0
        %v706 = vsel %vm520, %v684, 0
        %v709 = vsel %vm520, %v686, 0
        %711 = vmatprep.subr.bf16.mxu0 0
        %712 = vmatpush1.bf16.xpose.msra.mxu0 0
        %713 = vmatprep.subr.bf16.mxu0 0
        %714 = vmatpush1.bf16.xpose.msra.mxu0 0
        %715 = vmatprep.subr.bf16.mxu0 0
        %716 = vmatpush1.bf16.xpose.msra.mxu0 0
        %717 = vmatprep.subr.bf16.mxu0 0
        %718 = vmatpush1.bf16.xpose.msra.mxu0 0
        %719 = vmatprep.subr.bf16.mxu0 0
        %720 = vmatpush1.bf16.xpose.msra.mxu0 %v709
        %721 = vmatprep.subr.bf16.mxu0 0
        %722 = vmatpush1.bf16.xpose.msra.mxu0 %v706
        %723 = vmatprep.subr.bf16.mxu0 0
        %724 = vmatpush1.bf16.xpose.msra.mxu0 %v703
        %725 = vmatprep.subr.bf16.mxu0 0
        %726 = vmatpush1.bf16.xpose.msra.mxu0 %v700
        %727 = vmatprep.subr.bf16.mxu0 0
        %728 = vmatpush2.bf16.xpose.msra.mxu0 0
        %729 = vmatprep.subr.bf16.mxu0 0
        %730 = vmatpush2.bf16.xpose.msra.mxu0 0
        %731 = vmatprep.subr.bf16.mxu0 0
        %732 = vmatpush2.bf16.xpose.msra.mxu0 0
        %733 = vmatprep.subr.bf16.mxu0 0
        %734 = vmatpush2.bf16.xpose.msra.mxu0 0
        %735 = vmatprep.subr.bf16.mxu0 0
        %736 = vmatpush2.bf16.xpose.msra.mxu0 0
        %737 = vmatprep.subr.bf16.mxu0 0
        %738 = vmatpush2.bf16.xpose.msra.mxu0 0
        %739 = vmatprep.subr.bf16.mxu0 0
        %740 = vmatpush2.bf16.xpose.msra.mxu0 0
        %741 = vmatprep.subr.bf16.mxu0 0
        %742 = vmatpush2.bf16.xpose.msra.mxu0 0
        %743 = vmatprep.mubr.bf16.mxu0 0
        %744 = vmatmul.mubr.bf16.gmra.mxu0 %v688
        %v745 = vpop.f32.mrf.mxu0
        %v746 = vadd.f32 %v667, %v745
        %v747 = vpop.f32.mrf.mxu0
        %v748 = vpop.f32.mrf.mxu0
        %v749 = vadd.f32 %v668, %v748
        %v750 = vpop.f32.mrf.mxu0
        %751 = vmatprep.mubr.bf16.mxu0 0
        %752 = vmatmul.mubr.bf16.gmra.mxu0 %v691
        %v753 = vpop.f32.mrf.mxu0
        %v754 = vadd.f32 %v669, %v753
        %v755 = vpop.f32.mrf.mxu0
        %v756 = vpop.f32.mrf.mxu0
        %v757 = vadd.f32 %v670, %v756
        %v758 = vpop.f32.mrf.mxu0
        %759 = vmatprep.mubr.bf16.mxu0 0
        %760 = vmatmul.mubr.bf16.gmra.mxu0 %v694
        %v761 = vpop.f32.mrf.mxu0
        %v762 = vadd.f32 %v671, %v761
        %v763 = vpop.f32.mrf.mxu0
        %v764 = vpop.f32.mrf.mxu0
        %v765 = vadd.f32 %v672, %v764
        %v766 = vpop.f32.mrf.mxu0
        %767 = vmatprep.mubr.bf16.mxu0 0
        %768 = vmatmul.mubr.bf16.gmra.mxu0 %v697
        %v769 = vpop.f32.mrf.mxu0
        %v770 = vadd.f32 %v673, %v769
        %v771 = vpop.f32.mrf.mxu0
        %v772 = vpop.f32.mrf.mxu0
        %v773 = vadd.f32 %v674, %v772
        %v774 = vpop.f32.mrf.mxu0
        %775 = vdwg.mxu0
        %vm776 = vcmask 523264
        %v777 = vsel %vm776, %v746, -inf
        %778 = vmax.xlane.f32.xlu0 %v777
        %v779 = vpop.xlane.xlu0 %778
        %v780 = vsel %vm776, %v749, -inf
        %781 = vmax.xlane.f32.xlu0 %v780
        %v782 = vpop.xlane.xlu0 %781
        %v783 = vsel %vm776, %v754, -inf
        %784 = vmax.xlane.f32.xlu0 %v783
        %v785 = vpop.xlane.xlu0 %784
        %v786 = vsel %vm776, %v757, -inf
        %787 = vmax.xlane.f32.xlu0 %v786
        %v788 = vpop.xlane.xlu0 %787
        %v789 = vsel %vm776, %v762, -inf
        %790 = vmax.xlane.f32.xlu0 %v789
        %v791 = vpop.xlane.xlu0 %790
        %v792 = vsel %vm776, %v765, -inf
        %793 = vmax.xlane.f32.xlu0 %v792
        %v794 = vpop.xlane.xlu0 %793
        %v795 = vsel %vm776, %v770, -inf
        %796 = vmax.xlane.f32.xlu0 %v795
        %v797 = vpop.xlane.xlu0 %796
        %v798 = vsel %vm776, %v773, -inf
        %799 = vmax.xlane.f32.xlu0 %v798
        %v800 = vpop.xlane.xlu0 %799
        %v801 = vsub.f32 %v746, %v779
        %v802 = vsub.f32 %v749, %v782
        %v803 = vsub.f32 %v754, %v785
        %v804 = vsub.f32 %v757, %v788
        %v805 = vsub.f32 %v762, %v791
        %v806 = vsub.f32 %v765, %v794
        %v807 = vsub.f32 %v770, %v797
        %v808 = vsub.f32 %v773, %v800
        %v809 = vmul.f32 %v801, 1.442695
        %v810 = vpow.pop %v809
        %v811 = vmul.f32 %v802, 1.442695
        %v812 = vpow.pop %v811
        %v813 = vmul.f32 %v803, 1.442695
        %v814 = vpow.pop %v813
        %v815 = vmul.f32 %v804, 1.442695
        %v816 = vpow.pop %v815
        %v817 = vmul.f32 %v805, 1.442695
        %v818 = vpow.pop %v817
        %v819 = vmul.f32 %v806, 1.442695
        %v820 = vpow.pop %v819
        %v821 = vmul.f32 %v807, 1.442695
        %v822 = vpow.pop %v821
        %v823 = vmul.f32 %v808, 1.442695
        %v824 = vpow.pop %v823
        %v825 = vsel %vm776, %v810, 0.0
        %826 = vadd.xlane.f32.xlu0 %v825
        %v827 = vpop.xlane.xlu0 %826
        %v828 = vsel %vm776, %v812, 0.0
        %829 = vadd.xlane.f32.xlu0 %v828
        %v830 = vpop.xlane.xlu0 %829
        %v831 = vsel %vm776, %v814, 0.0
        %832 = vadd.xlane.f32.xlu0 %v831
        %v833 = vpop.xlane.xlu0 %832
        %v834 = vsel %vm776, %v816, 0.0
        %835 = vadd.xlane.f32.xlu0 %v834
        %v836 = vpop.xlane.xlu0 %835
        %v837 = vsel %vm776, %v818, 0.0
        %838 = vadd.xlane.f32.xlu0 %v837
        %v839 = vpop.xlane.xlu0 %838
        %v840 = vsel %vm776, %v820, 0.0
        %841 = vadd.xlane.f32.xlu0 %v840
        %v842 = vpop.xlane.xlu0 %841
        %v843 = vsel %vm776, %v822, 0.0
        %844 = vadd.xlane.f32.xlu0 %v843
        %v845 = vpop.xlane.xlu0 %844
        %v846 = vsel %vm776, %v824, 0.0
        %847 = vadd.xlane.f32.xlu0 %v846
        %v848 = vpop.xlane.xlu0 %847
        %v849 = vrcp.pop %v827
        %v850 = vrcp.pop %v830
        %v851 = vrcp.pop %v833
        %v852 = vrcp.pop %v836
        %v853 = vrcp.pop %v839
        %v854 = vrcp.pop %v842
        %v855 = vrcp.pop %v845
        %v856 = vrcp.pop %v848
        %v857 = vmul.f32 %v810, %v849
        %v858 = vmul.f32 %v812, %v850
        %v859 = vmul.f32 %v814, %v851
        %v860 = vmul.f32 %v816, %v852
        %v861 = vmul.f32 %v818, %v853
        %v862 = vmul.f32 %v820, %v854
        %v863 = vmul.f32 %v822, %v855
        %v864 = vmul.f32 %v824, %v856
        %v865 = vpack.c.bf16 %v858, %v857
        %v866 = vpack.c.bf16 %v860, %v859
        %v867 = vpack.c.bf16 %v862, %v861
        %v868 = vpack.c.bf16 %v864, %v863
        %873 = vrot.lane.b32.xlu0 %v508, 64
        %v874 = vpop.permute.xlu0 %873
        %875 = vrot.lane.b32.xlu0 %v509, 64
        %v876 = vpop.permute.xlu0 %875
        %877 = vrot.lane.b32.xlu0 %v510, 64
        %v878 = vpop.permute.xlu0 %877
        %879 = vrot.lane.b32.xlu0 %v511, 64
        %v880 = vpop.permute.xlu0 %879
        %v886 = vsel %vm776, %v865, 0
        %v889 = vsel %vm776, %v866, 0
        %v892 = vsel %vm776, %v867, 0
        %v895 = vsel %vm776, %v868, 0
        %897 = vmatprep.subr.bf16.mxu0 0
        %898 = vmatpush1.bf16.msra.mxu0 0
        %899 = vmatprep.subr.bf16.mxu0 0
        %900 = vmatpush1.bf16.msra.mxu0 0
        %901 = vmatprep.subr.bf16.mxu0 0
        %902 = vmatpush1.bf16.msra.mxu0 0
        %903 = vmatprep.subr.bf16.mxu0 0
        %904 = vmatpush1.bf16.msra.mxu0 0
        %905 = vmatprep.subr.bf16.mxu0 0
        %906 = vmatpush1.bf16.msra.mxu0 %v880
        %907 = vmatprep.subr.bf16.mxu0 0
        %908 = vmatpush1.bf16.msra.mxu0 %v878
        %909 = vmatprep.subr.bf16.mxu0 0
        %910 = vmatpush1.bf16.msra.mxu0 %v876
        %911 = vmatprep.subr.bf16.mxu0 0
        %912 = vmatpush1.bf16.msra.mxu0 %v874
        %913 = vmatprep.subr.bf16.mxu0 0
        %914 = vmatpush2.bf16.msra.mxu0 0
        %915 = vmatprep.subr.bf16.mxu0 0
        %916 = vmatpush2.bf16.msra.mxu0 0
        %917 = vmatprep.subr.bf16.mxu0 0
        %918 = vmatpush2.bf16.msra.mxu0 0
        %919 = vmatprep.subr.bf16.mxu0 0
        %920 = vmatpush2.bf16.msra.mxu0 0
        %921 = vmatprep.subr.bf16.mxu0 0
        %922 = vmatpush2.bf16.msra.mxu0 0
        %923 = vmatprep.subr.bf16.mxu0 0
        %924 = vmatpush2.bf16.msra.mxu0 0
        %925 = vmatprep.subr.bf16.mxu0 0
        %926 = vmatpush2.bf16.msra.mxu0 0
        %927 = vmatprep.subr.bf16.mxu0 0
        %928 = vmatpush2.bf16.msra.mxu0 0
        %929 = vmatprep.mubr.bf16.mxu0 0
        %930 = vmatmul.mubr.bf16.gmra.mxu0 %v886
        %v931 = vpop.f32.mrf.mxu0
        %v932 = vadd.f32 0.0, %v931
        %v933 = vpop.f32.mrf.mxu0
        %v934 = vpop.f32.mrf.mxu0
        %v935 = vadd.f32 0.0, %v934
        %v936 = vpop.f32.mrf.mxu0
        %937 = vmatprep.mubr.bf16.mxu0 0
        %938 = vmatmul.mubr.bf16.gmra.mxu0 %v889
        %v939 = vpop.f32.mrf.mxu0
        %v940 = vadd.f32 0.0, %v939
        %v941 = vpop.f32.mrf.mxu0
        %v942 = vpop.f32.mrf.mxu0
        %v943 = vadd.f32 0.0, %v942
        %v944 = vpop.f32.mrf.mxu0
        %945 = vmatprep.mubr.bf16.mxu0 0
        %946 = vmatmul.mubr.bf16.gmra.mxu0 %v892
        %v947 = vpop.f32.mrf.mxu0
        %v948 = vadd.f32 0.0, %v947
        %v949 = vpop.f32.mrf.mxu0
        %v950 = vpop.f32.mrf.mxu0
        %v951 = vadd.f32 0.0, %v950
        %v952 = vpop.f32.mrf.mxu0
        %953 = vmatprep.mubr.bf16.mxu0 0
        %954 = vmatmul.mubr.bf16.gmra.mxu0 %v895
        %v955 = vpop.f32.mrf.mxu0
        %v956 = vadd.f32 0.0, %v955
        %v957 = vpop.f32.mrf.mxu0
        %v958 = vpop.f32.mrf.mxu0
        %v959 = vadd.f32 0.0, %v958
        %v960 = vpop.f32.mrf.mxu0
        %961 = vdwg.mxu0
        %v962 = vpack.c.bf16 %v935, %v932
        %v963 = vpack.c.bf16 %v943, %v940
        %v964 = vpack.c.bf16 %v951, %v948
        %v965 = vpack.c.bf16 %v959, %v956
        %v966 = vld [vmem:[#allocation8] sm:$0xf]
        %967 = vrot.lane.b32.xlu0 %v512, 120
        %v968 = vpop.permute.xlu0 %967
        %969 = vrot.lane.b32.xlu0 %v513, 120
        %v970 = vpop.permute.xlu0 %969
        %971 = vrot.lane.b32.xlu0 %v514, 120
        %v972 = vpop.permute.xlu0 %971
        %973 = vrot.lane.b32.xlu0 %v515, 120
        %v974 = vpop.permute.xlu0 %973
        %975 = vrot.lane.b32.xlu0 %v516, 120
        %v976 = vpop.permute.xlu0 %975
        %977 = vrot.lane.b32.xlu0 %v517, 120
        %v978 = vpop.permute.xlu0 %977
        %979 = vrot.lane.b32.xlu0 %v518, 120
        %v980 = vpop.permute.xlu0 %979
        %981 = vrot.lane.b32.xlu0 %v519, 120
        %v982 = vpop.permute.xlu0 %981
        %v991 = vsel %vm520, %v968, 0.0
        %992 = vadd.xlane.f32.xlu0 %v991
        %v993 = vpop.xlane.xlu0 %992
        %v994 = vsel %vm520, %v970, 0.0
        %995 = vadd.xlane.f32.xlu0 %v994
        %v996 = vpop.xlane.xlu0 %995
        %v997 = vsel %vm520, %v972, 0.0
        %998 = vadd.xlane.f32.xlu0 %v997
        %v999 = vpop.xlane.xlu0 %998
        %v1000 = vsel %vm520, %v974, 0.0
        %1001 = vadd.xlane.f32.xlu0 %v1000
        %v1002 = vpop.xlane.xlu0 %1001
        %v1003 = vsel %vm520, %v976, 0.0
        %1004 = vadd.xlane.f32.xlu0 %v1003
        %v1005 = vpop.xlane.xlu0 %1004
        %v1006 = vsel %vm520, %v978, 0.0
        %1007 = vadd.xlane.f32.xlu0 %v1006
        %v1008 = vpop.xlane.xlu0 %1007
        %v1009 = vsel %vm520, %v980, 0.0
        %1010 = vadd.xlane.f32.xlu0 %v1009
        %v1011 = vpop.xlane.xlu0 %1010
        %v1012 = vsel %vm520, %v982, 0.0
        %1013 = vadd.xlane.f32.xlu0 %v1012
        %v1014 = vpop.xlane.xlu0 %1013
        %1015 = vrot.lane.b32.xlu0 %v512, 88
        %v1016 = vpop.permute.xlu0 %1015
        %1017 = vrot.lane.b32.xlu0 %v513, 88
        %v1018 = vpop.permute.xlu0 %1017
        %1019 = vrot.lane.b32.xlu0 %v514, 88
        %v1020 = vpop.permute.xlu0 %1019
        %1021 = vrot.lane.b32.xlu0 %v515, 88
        %v1022 = vpop.permute.xlu0 %1021
        %1023 = vrot.lane.b32.xlu0 %v516, 88
        %v1024 = vpop.permute.xlu0 %1023
        %1025 = vrot.lane.b32.xlu0 %v517, 88
        %v1026 = vpop.permute.xlu0 %1025
        %1027 = vrot.lane.b32.xlu0 %v518, 88
        %v1028 = vpop.permute.xlu0 %1027
        %1029 = vrot.lane.b32.xlu0 %v519, 88
        %v1030 = vpop.permute.xlu0 %1029
        %v1039 = vsel %vm520, %v1016, 0.0
        %1040 = vadd.xlane.f32.xlu0 %v1039
        %v1041 = vpop.xlane.xlu0 %1040
        %v1042 = vsel %vm520, %v1018, 0.0
        %1043 = vadd.xlane.f32.xlu0 %v1042
        %v1044 = vpop.xlane.xlu0 %1043
        %v1045 = vsel %vm520, %v1020, 0.0
        %1046 = vadd.xlane.f32.xlu0 %v1045
        %v1047 = vpop.xlane.xlu0 %1046
        %v1048 = vsel %vm520, %v1022, 0.0
        %1049 = vadd.xlane.f32.xlu0 %v1048
        %v1050 = vpop.xlane.xlu0 %1049
        %v1051 = vsel %vm520, %v1024, 0.0
        %1052 = vadd.xlane.f32.xlu0 %v1051
        %v1053 = vpop.xlane.xlu0 %1052
        %v1054 = vsel %vm520, %v1026, 0.0
        %1055 = vadd.xlane.f32.xlu0 %v1054
        %v1056 = vpop.xlane.xlu0 %1055
        %v1057 = vsel %vm520, %v1028, 0.0
        %1058 = vadd.xlane.f32.xlu0 %v1057
        %v1059 = vpop.xlane.xlu0 %1058
        %v1060 = vsel %vm520, %v1030, 0.0
        %1061 = vadd.xlane.f32.xlu0 %v1060
        %v1062 = vpop.xlane.xlu0 %1061
        %v1063 = vmax.f32 %v993, 1e-24
        %v1064 = vmax.f32 %v996, 1e-24
        %v1065 = vmax.f32 %v999, 1e-24
        %v1066 = vmax.f32 %v1002, 1e-24
        %v1067 = vmax.f32 %v1005, 1e-24
        %v1068 = vmax.f32 %v1008, 1e-24
        %v1069 = vmax.f32 %v1011, 1e-24
        %v1070 = vmax.f32 %v1014, 1e-24
        %v1071 = vrsqrt.pop %v1063
        %v1072 = vrsqrt.pop %v1064
        %v1073 = vrsqrt.pop %v1065
        %v1074 = vrsqrt.pop %v1066
        %v1075 = vrsqrt.pop %v1067
        %v1076 = vrsqrt.pop %v1068
        %v1077 = vrsqrt.pop %v1069
        %v1078 = vrsqrt.pop %v1070
        %s1079 = sld [smem:[#allocation9 + $0x1]]
        %v1080 = vstv %s1079
        %v1081 = vmul.f32 %v1071, %v1080
        %v1082 = vmul.f32 %v1072, %v1080
        %v1083 = vmul.f32 %v1073, %v1080
        %v1084 = vmul.f32 %v1074, %v1080
        %v1085 = vmul.f32 %v1075, %v1080
        %v1086 = vmul.f32 %v1076, %v1080
        %v1087 = vmul.f32 %v1077, %v1080
        %v1088 = vmul.f32 %v1078, %v1080
        %v1089 = vmul.f32 %v478, %v1081
        %v1090 = vmul.f32 %v481, %v1082
        %v1091 = vmul.f32 %v486, %v1083
        %v1092 = vmul.f32 %v489, %v1084
        %v1093 = vmul.f32 %v494, %v1085
        %v1094 = vmul.f32 %v497, %v1086
        %v1095 = vmul.f32 %v502, %v1087
        %v1096 = vmul.f32 %v505, %v1088
        %v1097 = vmax.f32 %v1041, 1e-24
        %v1098 = vmax.f32 %v1044, 1e-24
        %v1099 = vmax.f32 %v1047, 1e-24
        %v1100 = vmax.f32 %v1050, 1e-24
        %v1101 = vmax.f32 %v1053, 1e-24
        %v1102 = vmax.f32 %v1056, 1e-24
        %v1103 = vmax.f32 %v1059, 1e-24
        %v1104 = vmax.f32 %v1062, 1e-24
        %v1105 = vrsqrt.pop %v1097
        %v1106 = vrsqrt.pop %v1098
        %v1107 = vrsqrt.pop %v1099
        %v1108 = vrsqrt.pop %v1100
        %v1109 = vrsqrt.pop %v1101
        %v1110 = vrsqrt.pop %v1102
        %v1111 = vrsqrt.pop %v1103
        %v1112 = vrsqrt.pop %v1104
        %v1113 = vmul.f32 %v478, %v1105
        %v1114 = vmul.f32 %v481, %v1106
        %v1115 = vmul.f32 %v486, %v1107
        %v1116 = vmul.f32 %v489, %v1108
        %v1117 = vmul.f32 %v494, %v1109
        %v1118 = vmul.f32 %v497, %v1110
        %v1119 = vmul.f32 %v502, %v1111
        %v1120 = vmul.f32 %v505, %v1112
        %v1121 = vpack.c.bf16 %v1090, %v1089
        %v1122 = vpack.c.bf16 %v1092, %v1091
        %v1123 = vpack.c.bf16 %v1094, %v1093
        %v1124 = vpack.c.bf16 %v1096, %v1095
        %v1125 = vpack.c.bf16 %v1114, %v1113
        %v1126 = vpack.c.bf16 %v1116, %v1115
        %v1127 = vpack.c.bf16 %v1118, %v1117
        %v1128 = vpack.c.bf16 %v1120, %v1119
        %s1129 = scalar_lea.vmem [#allocation10], 64
        %v1130 = vld [vmem:[%s1129] sm:$0xff]
        %v1131 = vld [vmem:[%s1129 + $0x8] sm:$0xff]
        %v1132 = vld [vmem:[%s1129 + $0x10] sm:$0xff]
        %v1133 = vld [vmem:[%s1129 + $0x18] sm:$0xff]
        %v1134 = vld [vmem:[%s1129 + $0x20] sm:$0xff]
        %v1135 = vld [vmem:[%s1129 + $0x28] sm:$0xff]
        %v1136 = vld [vmem:[%s1129 + $0x30] sm:$0xff]
        %v1137 = vld [vmem:[%s1129 + $0x38] sm:$0xff]
        %1142 = vrot.lane.b32.xlu0 %v1121, 120
        %v1143 = vpop.permute.xlu0 %1142
        %1144 = vrot.lane.b32.xlu0 %v1122, 120
        %v1145 = vpop.permute.xlu0 %1144
        %1146 = vrot.lane.b32.xlu0 %v1123, 120
        %v1147 = vpop.permute.xlu0 %1146
        %1148 = vrot.lane.b32.xlu0 %v1124, 120
        %v1149 = vpop.permute.xlu0 %1148
        %1154 = vrot.lane.b32.xlu0 %v1125, 88
        %v1155 = vpop.permute.xlu0 %1154
        %1156 = vrot.lane.b32.xlu0 %v1126, 88
        %v1157 = vpop.permute.xlu0 %1156
        %1158 = vrot.lane.b32.xlu0 %v1127, 88
        %v1159 = vpop.permute.xlu0 %1158
        %1160 = vrot.lane.b32.xlu0 %v1128, 88
        %v1161 = vpop.permute.xlu0 %1160
        %v1163 = vsel %vm520, %v1143, 0
        %v1166 = vsel %vm520, %v1145, 0
        %v1169 = vsel %vm520, %v1147, 0
        %v1172 = vsel %vm520, %v1149, 0
        %v1175 = vsel %vm520, %v1155, 0
        %v1178 = vsel %vm520, %v1157, 0
        %v1181 = vsel %vm520, %v1159, 0
        %v1184 = vsel %vm520, %v1161, 0
        %1186 = vmatprep.subr.bf16.mxu0 0
        %1187 = vmatpush1.bf16.xpose.msra.mxu0 0
        %1188 = vmatprep.subr.bf16.mxu0 0
        %1189 = vmatpush1.bf16.xpose.msra.mxu0 0
        %1190 = vmatprep.subr.bf16.mxu0 0
        %1191 = vmatpush1.bf16.xpose.msra.mxu0 0
        %1192 = vmatprep.subr.bf16.mxu0 0
        %1193 = vmatpush1.bf16.xpose.msra.mxu0 0
        %1194 = vmatprep.subr.bf16.mxu0 0
        %1195 = vmatpush1.bf16.xpose.msra.mxu0 %v1184
        %1196 = vmatprep.subr.bf16.mxu0 0
        %1197 = vmatpush1.bf16.xpose.msra.mxu0 %v1181
        %1198 = vmatprep.subr.bf16.mxu0 0
        %1199 = vmatpush1.bf16.xpose.msra.mxu0 %v1178
        %1200 = vmatprep.subr.bf16.mxu0 0
        %1201 = vmatpush1.bf16.xpose.msra.mxu0 %v1175
        %1202 = vmatprep.subr.bf16.mxu0 0
        %1203 = vmatpush2.bf16.xpose.msra.mxu0 0
        %1204 = vmatprep.subr.bf16.mxu0 0
        %1205 = vmatpush2.bf16.xpose.msra.mxu0 0
        %1206 = vmatprep.subr.bf16.mxu0 0
        %1207 = vmatpush2.bf16.xpose.msra.mxu0 0
        %1208 = vmatprep.subr.bf16.mxu0 0
        %1209 = vmatpush2.bf16.xpose.msra.mxu0 0
        %1210 = vmatprep.subr.bf16.mxu0 0
        %1211 = vmatpush2.bf16.xpose.msra.mxu0 0
        %1212 = vmatprep.subr.bf16.mxu0 0
        %1213 = vmatpush2.bf16.xpose.msra.mxu0 0
        %1214 = vmatprep.subr.bf16.mxu0 0
        %1215 = vmatpush2.bf16.xpose.msra.mxu0 0
        %1216 = vmatprep.subr.bf16.mxu0 0
        %1217 = vmatpush2.bf16.xpose.msra.mxu0 0
        %1218 = vmatprep.mubr.bf16.mxu0 0
        %1219 = vmatmul.mubr.bf16.gmra.mxu0 %v1163
        %v1220 = vpop.f32.mrf.mxu0
        %v1221 = vadd.f32 %v1130, %v1220
        %v1222 = vpop.f32.mrf.mxu0
        %v1223 = vpop.f32.mrf.mxu0
        %v1224 = vadd.f32 %v1131, %v1223
        %v1225 = vpop.f32.mrf.mxu0
        %1226 = vmatprep.mubr.bf16.mxu0 0
        %1227 = vmatmul.mubr.bf16.gmra.mxu0 %v1166
        %v1228 = vpop.f32.mrf.mxu0
        %v1229 = vadd.f32 %v1132, %v1228
        %v1230 = vpop.f32.mrf.mxu0
        %v1231 = vpop.f32.mrf.mxu0
        %v1232 = vadd.f32 %v1133, %v1231
        %v1233 = vpop.f32.mrf.mxu0
        %1234 = vmatprep.mubr.bf16.mxu0 0
        %1235 = vmatmul.mubr.bf16.gmra.mxu0 %v1169
        %v1236 = vpop.f32.mrf.mxu0
        %v1237 = vadd.f32 %v1134, %v1236
        %v1238 = vpop.f32.mrf.mxu0
        %v1239 = vpop.f32.mrf.mxu0
        %v1240 = vadd.f32 %v1135, %v1239
        %v1241 = vpop.f32.mrf.mxu0
        %1242 = vmatprep.mubr.bf16.mxu0 0
        %1243 = vmatmul.mubr.bf16.gmra.mxu0 %v1172
        %v1244 = vpop.f32.mrf.mxu0
        %v1245 = vadd.f32 %v1136, %v1244
        %v1246 = vpop.f32.mrf.mxu0
        %v1247 = vpop.f32.mrf.mxu0
        %v1248 = vadd.f32 %v1137, %v1247
        %v1249 = vpop.f32.mrf.mxu0
        %1250 = vdwg.mxu0
        %v1251 = vsel %vm776, %v1221, -inf
        %1252 = vmax.xlane.f32.xlu0 %v1251
        %v1253 = vpop.xlane.xlu0 %1252
        %v1254 = vsel %vm776, %v1224, -inf
        %1255 = vmax.xlane.f32.xlu0 %v1254
        %v1256 = vpop.xlane.xlu0 %1255
        %v1257 = vsel %vm776, %v1229, -inf
        %1258 = vmax.xlane.f32.xlu0 %v1257
        %v1259 = vpop.xlane.xlu0 %1258
        %v1260 = vsel %vm776, %v1232, -inf
        %1261 = vmax.xlane.f32.xlu0 %v1260
        %v1262 = vpop.xlane.xlu0 %1261
        %v1263 = vsel %vm776, %v1237, -inf
        %1264 = vmax.xlane.f32.xlu0 %v1263
        %v1265 = vpop.xlane.xlu0 %1264
        %v1266 = vsel %vm776, %v1240, -inf
        %1267 = vmax.xlane.f32.xlu0 %v1266
        %v1268 = vpop.xlane.xlu0 %1267
        %v1269 = vsel %vm776, %v1245, -inf
        %1270 = vmax.xlane.f32.xlu0 %v1269
        %v1271 = vpop.xlane.xlu0 %1270
        %v1272 = vsel %vm776, %v1248, -inf
        %1273 = vmax.xlane.f32.xlu0 %v1272
        %v1274 = vpop.xlane.xlu0 %1273
        %v1275 = vsub.f32 %v1221, %v1253
        %v1276 = vsub.f32 %v1224, %v1256
        %v1277 = vsub.f32 %v1229, %v1259
        %v1278 = vsub.f32 %v1232, %v1262
        %v1279 = vsub.f32 %v1237, %v1265
        %v1280 = vsub.f32 %v1240, %v1268
        %v1281 = vsub.f32 %v1245, %v1271
        %v1282 = vsub.f32 %v1248, %v1274
        %v1283 = vmul.f32 %v1275, 1.442695
        %v1284 = vpow.pop %v1283
        %v1285 = vmul.f32 %v1276, 1.442695
        %v1286 = vpow.pop %v1285
        %v1287 = vmul.f32 %v1277, 1.442695
        %v1288 = vpow.pop %v1287
        %v1289 = vmul.f32 %v1278, 1.442695
        %v1290 = vpow.pop %v1289
        %v1291 = vmul.f32 %v1279, 1.442695
        %v1292 = vpow.pop %v1291
        %v1293 = vmul.f32 %v1280, 1.442695
        %v1294 = vpow.pop %v1293
        %v1295 = vmul.f32 %v1281, 1.442695
        %v1296 = vpow.pop %v1295
        %v1297 = vmul.f32 %v1282, 1.442695
        %v1298 = vpow.pop %v1297
        %v1299 = vsel %vm776, %v1284, 0.0
        %1300 = vadd.xlane.f32.xlu0 %v1299
        %v1301 = vpop.xlane.xlu0 %1300
        %v1302 = vsel %vm776, %v1286, 0.0
        %1303 = vadd.xlane.f32.xlu0 %v1302
        %v1304 = vpop.xlane.xlu0 %1303
        %v1305 = vsel %vm776, %v1288, 0.0
        %1306 = vadd.xlane.f32.xlu0 %v1305
        %v1307 = vpop.xlane.xlu0 %1306
        %v1308 = vsel %vm776, %v1290, 0.0
        %1309 = vadd.xlane.f32.xlu0 %v1308
        %v1310 = vpop.xlane.xlu0 %1309
        %v1311 = vsel %vm776, %v1292, 0.0
        %1312 = vadd.xlane.f32.xlu0 %v1311
        %v1313 = vpop.xlane.xlu0 %1312
        %v1314 = vsel %vm776, %v1294, 0.0
        %1315 = vadd.xlane.f32.xlu0 %v1314
        %v1316 = vpop.xlane.xlu0 %1315
        %v1317 = vsel %vm776, %v1296, 0.0
        %1318 = vadd.xlane.f32.xlu0 %v1317
        %v1319 = vpop.xlane.xlu0 %1318
        %v1320 = vsel %vm776, %v1298, 0.0
        %1321 = vadd.xlane.f32.xlu0 %v1320
        %v1322 = vpop.xlane.xlu0 %1321
        %v1323 = vrcp.pop %v1301
        %v1324 = vrcp.pop %v1304
        %v1325 = vrcp.pop %v1307
        %v1326 = vrcp.pop %v1310
        %v1327 = vrcp.pop %v1313
        %v1328 = vrcp.pop %v1316
        %v1329 = vrcp.pop %v1319
        %v1330 = vrcp.pop %v1322
        %v1331 = vmul.f32 %v1284, %v1323
        %v1332 = vmul.f32 %v1286, %v1324
        %v1333 = vmul.f32 %v1288, %v1325
        %v1334 = vmul.f32 %v1290, %v1326
        %v1335 = vmul.f32 %v1292, %v1327
        %v1336 = vmul.f32 %v1294, %v1328
        %v1337 = vmul.f32 %v1296, %v1329
        %v1338 = vmul.f32 %v1298, %v1330
        %v1339 = vpack.c.bf16 %v1332, %v1331
        %v1340 = vpack.c.bf16 %v1334, %v1333
        %v1341 = vpack.c.bf16 %v1336, %v1335
        %v1342 = vpack.c.bf16 %v1338, %v1337
        %1343 = vrot.lane.b32.xlu0 %v508, 56
        %v1344 = vpop.permute.xlu0 %1343
        %1345 = vrot.lane.b32.xlu0 %v509, 56
        %v1346 = vpop.permute.xlu0 %1345
        %1347 = vrot.lane.b32.xlu0 %v510, 56
        %v1348 = vpop.permute.xlu0 %1347
        %1349 = vrot.lane.b32.xlu0 %v511, 56
        %v1350 = vpop.permute.xlu0 %1349
        %v1356 = vsel %vm776, %v1339, 0
        %v1359 = vsel %vm776, %v1340, 0
        %v1362 = vsel %vm776, %v1341, 0
        %v1365 = vsel %vm776, %v1342, 0
        %1367 = vmatprep.subr.bf16.mxu0 0
        %1368 = vmatpush1.bf16.msra.mxu0 0
        %1369 = vmatprep.subr.bf16.mxu0 0
        %1370 = vmatpush1.bf16.msra.mxu0 0
        %1371 = vmatprep.subr.bf16.mxu0 0
        %1372 = vmatpush1.bf16.msra.mxu0 0
        %1373 = vmatprep.subr.bf16.mxu0 0
        %1374 = vmatpush1.bf16.msra.mxu0 0
        %1375 = vmatprep.subr.bf16.mxu0 0
        %1376 = vmatpush1.bf16.msra.mxu0 %v1350
        %1377 = vmatprep.subr.bf16.mxu0 0
        %1378 = vmatpush1.bf16.msra.mxu0 %v1348
        %1379 = vmatprep.subr.bf16.mxu0 0
        %1380 = vmatpush1.bf16.msra.mxu0 %v1346
        %1381 = vmatprep.subr.bf16.mxu0 0
        %1382 = vmatpush1.bf16.msra.mxu0 %v1344
        %1383 = vmatprep.subr.bf16.mxu0 0
        %1384 = vmatpush2.bf16.msra.mxu0 0
        %1385 = vmatprep.subr.bf16.mxu0 0
        %1386 = vmatpush2.bf16.msra.mxu0 0
        %1387 = vmatprep.subr.bf16.mxu0 0
        %1388 = vmatpush2.bf16.msra.mxu0 0
        %1389 = vmatprep.subr.bf16.mxu0 0
        %1390 = vmatpush2.bf16.msra.mxu0 0
        %1391 = vmatprep.subr.bf16.mxu0 0
        %1392 = vmatpush2.bf16.msra.mxu0 0
        %1393 = vmatprep.subr.bf16.mxu0 0
        %1394 = vmatpush2.bf16.msra.mxu0 0
        %1395 = vmatprep.subr.bf16.mxu0 0
        %1396 = vmatpush2.bf16.msra.mxu0 0
        %1397 = vmatprep.subr.bf16.mxu0 0
        %1398 = vmatpush2.bf16.msra.mxu0 0
        %1399 = vmatprep.mubr.bf16.mxu0 0
        %1400 = vmatmul.mubr.bf16.gmra.mxu0 %v1356
        %v1401 = vpop.f32.mrf.mxu0
        %v1402 = vadd.f32 0.0, %v1401
        %v1403 = vpop.f32.mrf.mxu0
        %v1404 = vpop.f32.mrf.mxu0
        %v1405 = vadd.f32 0.0, %v1404
        %v1406 = vpop.f32.mrf.mxu0
        %1407 = vmatprep.mubr.bf16.mxu0 0
        %1408 = vmatmul.mubr.bf16.gmra.mxu0 %v1359
        %v1409 = vpop.f32.mrf.mxu0
        %v1410 = vadd.f32 0.0, %v1409
        %v1411 = vpop.f32.mrf.mxu0
        %v1412 = vpop.f32.mrf.mxu0
        %v1413 = vadd.f32 0.0, %v1412
        %v1414 = vpop.f32.mrf.mxu0
        %1415 = vmatprep.mubr.bf16.mxu0 0
        %1416 = vmatmul.mubr.bf16.gmra.mxu0 %v1362
        %v1417 = vpop.f32.mrf.mxu0
        %v1418 = vadd.f32 0.0, %v1417
        %v1419 = vpop.f32.mrf.mxu0
        %v1420 = vpop.f32.mrf.mxu0
        %v1421 = vadd.f32 0.0, %v1420
        %v1422 = vpop.f32.mrf.mxu0
        %1423 = vmatprep.mubr.bf16.mxu0 0
        %1424 = vmatmul.mubr.bf16.gmra.mxu0 %v1365
        %v1425 = vpop.f32.mrf.mxu0
        %v1426 = vadd.f32 0.0, %v1425
        %v1427 = vpop.f32.mrf.mxu0
        %v1428 = vpop.f32.mrf.mxu0
        %v1429 = vadd.f32 0.0, %v1428
        %v1430 = vpop.f32.mrf.mxu0
        %1431 = vdwg.mxu0
        %v1432 = vpack.c.bf16 %v1405, %v1402
        %v1433 = vpack.c.bf16 %v1413, %v1410
        %v1434 = vpack.c.bf16 %v1421, %v1418
        %v1435 = vpack.c.bf16 %v1429, %v1426
        %v1436 = vld [vmem:[#allocation8 + $0x4] sm:$0xf]
        %v1438 = vsel %vm520, %v1432, 0
        %v1441 = vsel %vm520, %v1433, 0
        %v1444 = vsel %vm520, %v1434, 0
        %v1447 = vsel %vm520, %v1435, 0
        %v1450 = vsel %vm398, %v1436, 0
        %1452 = vmatprep.subr.bf16.mxu0 0
        %1453 = vmatpush1.bf16.msra.mxu0 0
        %1454 = vmatprep.subr.bf16.mxu0 0
        %1455 = vmatpush1.bf16.msra.mxu0 0
        %1456 = vmatprep.subr.bf16.mxu0 0
        %1457 = vmatpush1.bf16.msra.mxu0 0
        %1458 = vmatprep.subr.bf16.mxu0 0
        %1459 = vmatpush1.bf16.msra.mxu0 0
        %1460 = vmatprep.subr.bf16.mxu0 0
        %1461 = vmatpush1.bf16.msra.mxu0 0
        %1462 = vmatprep.subr.bf16.mxu0 0
        %1463 = vmatpush1.bf16.msra.mxu0 0
        %1464 = vmatprep.subr.bf16.mxu0 0
        %1465 = vmatpush1.bf16.msra.mxu0 0
        %1466 = vmatprep.subr.bf16.mxu0 0
        %1467 = vmatpush1.bf16.msra.mxu0 %v1450
        %1468 = vmatprep.subr.bf16.mxu0 0
        %1469 = vmatpush2.bf16.msra.mxu0 0
        %1470 = vmatprep.subr.bf16.mxu0 0
        %1471 = vmatpush2.bf16.msra.mxu0 0
        %1472 = vmatprep.subr.bf16.mxu0 0
        %1473 = vmatpush2.bf16.msra.mxu0 0
        %1474 = vmatprep.subr.bf16.mxu0 0
        %1475 = vmatpush2.bf16.msra.mxu0 0
        %1476 = vmatprep.subr.bf16.mxu0 0
        %1477 = vmatpush2.bf16.msra.mxu0 0
        %1478 = vmatprep.subr.bf16.mxu0 0
        %1479 = vmatpush2.bf16.msra.mxu0 0
        %1480 = vmatprep.subr.bf16.mxu0 0
        %1481 = vmatpush2.bf16.msra.mxu0 0
        %1482 = vmatprep.subr.bf16.mxu0 0
        %1483 = vmatpush2.bf16.msra.mxu0 0
        %1484 = vmatprep.mubr.bf16.mxu0 0
        %1485 = vmatmul.mubr.bf16.gmra.mxu0 %v1438
        %v1486 = vpop.f32.mrf.mxu0
        %v1487 = vadd.f32 0.0, %v1486
        %v1488 = vpop.f32.mrf.mxu0
        %v1489 = vpop.f32.mrf.mxu0
        %v1490 = vadd.f32 0.0, %v1489
        %v1491 = vpop.f32.mrf.mxu0
        %1492 = vmatprep.mubr.bf16.mxu0 0
        %1493 = vmatmul.mubr.bf16.gmra.mxu0 %v1441
        %v1494 = vpop.f32.mrf.mxu0
        %v1495 = vadd.f32 0.0, %v1494
        %v1496 = vpop.f32.mrf.mxu0
        %v1497 = vpop.f32.mrf.mxu0
        %v1498 = vadd.f32 0.0, %v1497
        %v1499 = vpop.f32.mrf.mxu0
        %1500 = vmatprep.mubr.bf16.mxu0 0
        %1501 = vmatmul.mubr.bf16.gmra.mxu0 %v1444
        %v1502 = vpop.f32.mrf.mxu0
        %v1503 = vadd.f32 0.0, %v1502
        %v1504 = vpop.f32.mrf.mxu0
        %v1505 = vpop.f32.mrf.mxu0
        %v1506 = vadd.f32 0.0, %v1505
        %v1507 = vpop.f32.mrf.mxu0
        %1508 = vmatprep.mubr.bf16.mxu0 0
        %1509 = vmatmul.mubr.bf16.gmra.mxu0 %v1447
        %v1510 = vpop.f32.mrf.mxu0
        %v1511 = vadd.f32 0.0, %v1510
        %v1512 = vpop.f32.mrf.mxu0
        %v1513 = vpop.f32.mrf.mxu0
        %v1514 = vadd.f32 0.0, %v1513
        %v1515 = vpop.f32.mrf.mxu0
        %1516 = vdwg.mxu0
        %v1518 = vsel %vm520, %v962, 0
        %v1521 = vsel %vm520, %v963, 0
        %v1524 = vsel %vm520, %v964, 0
        %v1527 = vsel %vm520, %v965, 0
        %v1530 = vsel %vm398, %v966, 0
        %1532 = vmatprep.subr.bf16.mxu0 0
        %1533 = vmatpush1.bf16.msra.mxu0 0
        %1534 = vmatprep.subr.bf16.mxu0 0
        %1535 = vmatpush1.bf16.msra.mxu0 0
        %1536 = vmatprep.subr.bf16.mxu0 0
        %1537 = vmatpush1.bf16.msra.mxu0 0
        %1538 = vmatprep.subr.bf16.mxu0 0
        %1539 = vmatpush1.bf16.msra.mxu0 0
        %1540 = vmatprep.subr.bf16.mxu0 0
        %1541 = vmatpush1.bf16.msra.mxu0 0
        %1542 = vmatprep.subr.bf16.mxu0 0
        %1543 = vmatpush1.bf16.msra.mxu0 0
        %1544 = vmatprep.subr.bf16.mxu0 0
        %1545 = vmatpush1.bf16.msra.mxu0 0
        %1546 = vmatprep.subr.bf16.mxu0 0
        %1547 = vmatpush1.bf16.msra.mxu0 %v1530
        %1548 = vmatprep.subr.bf16.mxu0 0
        %1549 = vmatpush2.bf16.msra.mxu0 0
        %1550 = vmatprep.subr.bf16.mxu0 0
        %1551 = vmatpush2.bf16.msra.mxu0 0
        %1552 = vmatprep.subr.bf16.mxu0 0
        %1553 = vmatpush2.bf16.msra.mxu0 0
        %1554 = vmatprep.subr.bf16.mxu0 0
        %1555 = vmatpush2.bf16.msra.mxu0 0
        %1556 = vmatprep.subr.bf16.mxu0 0
        %1557 = vmatpush2.bf16.msra.mxu0 0
        %1558 = vmatprep.subr.bf16.mxu0 0
        %1559 = vmatpush2.bf16.msra.mxu0 0
        %1560 = vmatprep.subr.bf16.mxu0 0
        %1561 = vmatpush2.bf16.msra.mxu0 0
        %1562 = vmatprep.subr.bf16.mxu0 0
        %1563 = vmatpush2.bf16.msra.mxu0 0
        %1564 = vmatprep.mubr.bf16.mxu0 0
        %1565 = vmatmul.mubr.bf16.gmra.mxu0 %v1518
        %v1566 = vpop.f32.mrf.mxu0
        %v1567 = vadd.f32 %v1487, %v1566
        %v1568 = vpop.f32.mrf.mxu0
        %v1569 = vpop.f32.mrf.mxu0
        %v1570 = vadd.f32 %v1490, %v1569
        %v1571 = vpop.f32.mrf.mxu0
        %1572 = vmatprep.mubr.bf16.mxu0 0
        %1573 = vmatmul.mubr.bf16.gmra.mxu0 %v1521
        %v1574 = vpop.f32.mrf.mxu0
        %v1575 = vadd.f32 %v1495, %v1574
        %v1576 = vpop.f32.mrf.mxu0
        %v1577 = vpop.f32.mrf.mxu0
        %v1578 = vadd.f32 %v1498, %v1577
        %v1579 = vpop.f32.mrf.mxu0
        %1580 = vmatprep.mubr.bf16.mxu0 0
        %1581 = vmatmul.mubr.bf16.gmra.mxu0 %v1524
        %v1582 = vpop.f32.mrf.mxu0
        %v1583 = vadd.f32 %v1503, %v1582
        %v1584 = vpop.f32.mrf.mxu0
        %v1585 = vpop.f32.mrf.mxu0
        %v1586 = vadd.f32 %v1506, %v1585
        %v1587 = vpop.f32.mrf.mxu0
        %1588 = vmatprep.mubr.bf16.mxu0 0
        %1589 = vmatmul.mubr.bf16.gmra.mxu0 %v1527
        %v1590 = vpop.f32.mrf.mxu0
        %v1591 = vadd.f32 %v1511, %v1590
        %v1592 = vpop.f32.mrf.mxu0
        %v1593 = vpop.f32.mrf.mxu0
        %v1594 = vadd.f32 %v1514, %v1593
        %v1595 = vpop.f32.mrf.mxu0
        %1596 = vdwg.mxu0
        %1597 = vrot.lane.b32.xlu0 %v512, 112
        %v1598 = vpop.permute.xlu0 %1597
        %1599 = vrot.lane.b32.xlu0 %v513, 112
        %v1600 = vpop.permute.xlu0 %1599
        %1601 = vrot.lane.b32.xlu0 %v514, 112
        %v1602 = vpop.permute.xlu0 %1601
        %1603 = vrot.lane.b32.xlu0 %v515, 112
        %v1604 = vpop.permute.xlu0 %1603
        %1605 = vrot.lane.b32.xlu0 %v516, 112
        %v1606 = vpop.permute.xlu0 %1605
        %1607 = vrot.lane.b32.xlu0 %v517, 112
        %v1608 = vpop.permute.xlu0 %1607
        %1609 = vrot.lane.b32.xlu0 %v518, 112
        %v1610 = vpop.permute.xlu0 %1609
        %1611 = vrot.lane.b32.xlu0 %v519, 112
        %v1612 = vpop.permute.xlu0 %1611
        %v1621 = vsel %vm520, %v1598, 0.0
        %1622 = vadd.xlane.f32.xlu0 %v1621
        %v1623 = vpop.xlane.xlu0 %1622
        %v1624 = vsel %vm520, %v1600, 0.0
        %1625 = vadd.xlane.f32.xlu0 %v1624
        %v1626 = vpop.xlane.xlu0 %1625
        %v1627 = vsel %vm520, %v1602, 0.0
        %1628 = vadd.xlane.f32.xlu0 %v1627
        %v1629 = vpop.xlane.xlu0 %1628
        %v1630 = vsel %vm520, %v1604, 0.0
        %1631 = vadd.xlane.f32.xlu0 %v1630
        %v1632 = vpop.xlane.xlu0 %1631
        %v1633 = vsel %vm520, %v1606, 0.0
        %1634 = vadd.xlane.f32.xlu0 %v1633
        %v1635 = vpop.xlane.xlu0 %1634
        %v1636 = vsel %vm520, %v1608, 0.0
        %1637 = vadd.xlane.f32.xlu0 %v1636
        %v1638 = vpop.xlane.xlu0 %1637
        %v1639 = vsel %vm520, %v1610, 0.0
        %1640 = vadd.xlane.f32.xlu0 %v1639
        %v1641 = vpop.xlane.xlu0 %1640
        %v1642 = vsel %vm520, %v1612, 0.0
        %1643 = vadd.xlane.f32.xlu0 %v1642
        %v1644 = vpop.xlane.xlu0 %1643
        %1645 = vrot.lane.b32.xlu0 %v512, 80
        %v1646 = vpop.permute.xlu0 %1645
        %1647 = vrot.lane.b32.xlu0 %v513, 80
        %v1648 = vpop.permute.xlu0 %1647
        %1649 = vrot.lane.b32.xlu0 %v514, 80
        %v1650 = vpop.permute.xlu0 %1649
        %1651 = vrot.lane.b32.xlu0 %v515, 80
        %v1652 = vpop.permute.xlu0 %1651
        %1653 = vrot.lane.b32.xlu0 %v516, 80
        %v1654 = vpop.permute.xlu0 %1653
        %1655 = vrot.lane.b32.xlu0 %v517, 80
        %v1656 = vpop.permute.xlu0 %1655
        %1657 = vrot.lane.b32.xlu0 %v518, 80
        %v1658 = vpop.permute.xlu0 %1657
        %1659 = vrot.lane.b32.xlu0 %v519, 80
        %v1660 = vpop.permute.xlu0 %1659
        %v1669 = vsel %vm520, %v1646, 0.0
        %1670 = vadd.xlane.f32.xlu0 %v1669
        %v1671 = vpop.xlane.xlu0 %1670
        %v1672 = vsel %vm520, %v1648, 0.0
        %1673 = vadd.xlane.f32.xlu0 %v1672
        %v1674 = vpop.xlane.xlu0 %1673
        %v1675 = vsel %vm520, %v1650, 0.0
        %1676 = vadd.xlane.f32.xlu0 %v1675
        %v1677 = vpop.xlane.xlu0 %1676
        %v1678 = vsel %vm520, %v1652, 0.0
        %1679 = vadd.xlane.f32.xlu0 %v1678
        %v1680 = vpop.xlane.xlu0 %1679
        %v1681 = vsel %vm520, %v1654, 0.0
        %1682 = vadd.xlane.f32.xlu0 %v1681
        %v1683 = vpop.xlane.xlu0 %1682
        %v1684 = vsel %vm520, %v1656, 0.0
        %1685 = vadd.xlane.f32.xlu0 %v1684
        %v1686 = vpop.xlane.xlu0 %1685
        %v1687 = vsel %vm520, %v1658, 0.0
        %1688 = vadd.xlane.f32.xlu0 %v1687
        %v1689 = vpop.xlane.xlu0 %1688
        %v1690 = vsel %vm520, %v1660, 0.0
        %1691 = vadd.xlane.f32.xlu0 %v1690
        %v1692 = vpop.xlane.xlu0 %1691
        %v1693 = vmax.f32 %v1623, 1e-24
        %v1694 = vmax.f32 %v1626, 1e-24
        %v1695 = vmax.f32 %v1629, 1e-24
        %v1696 = vmax.f32 %v1632, 1e-24
        %v1697 = vmax.f32 %v1635, 1e-24
        %v1698 = vmax.f32 %v1638, 1e-24
        %v1699 = vmax.f32 %v1641, 1e-24
        %v1700 = vmax.f32 %v1644, 1e-24
        %v1701 = vrsqrt.pop %v1693
        %v1702 = vrsqrt.pop %v1694
        %v1703 = vrsqrt.pop %v1695
        %v1704 = vrsqrt.pop %v1696
        %v1705 = vrsqrt.pop %v1697
        %v1706 = vrsqrt.pop %v1698
        %v1707 = vrsqrt.pop %v1699
        %v1708 = vrsqrt.pop %v1700
        %s1709 = sld [smem:[#allocation9 + $0x2]]
        %v1710 = vstv %s1709
        %v1711 = vmul.f32 %v1701, %v1710
        %v1712 = vmul.f32 %v1702, %v1710
        %v1713 = vmul.f32 %v1703, %v1710
        %v1714 = vmul.f32 %v1704, %v1710
        %v1715 = vmul.f32 %v1705, %v1710
        %v1716 = vmul.f32 %v1706, %v1710
        %v1717 = vmul.f32 %v1707, %v1710
        %v1718 = vmul.f32 %v1708, %v1710
        %v1719 = vmul.f32 %v478, %v1711
        %v1720 = vmul.f32 %v481, %v1712
        %v1721 = vmul.f32 %v486, %v1713
        %v1722 = vmul.f32 %v489, %v1714
        %v1723 = vmul.f32 %v494, %v1715
        %v1724 = vmul.f32 %v497, %v1716
        %v1725 = vmul.f32 %v502, %v1717
        %v1726 = vmul.f32 %v505, %v1718
        %v1727 = vmax.f32 %v1671, 1e-24
        %v1728 = vmax.f32 %v1674, 1e-24
        %v1729 = vmax.f32 %v1677, 1e-24
        %v1730 = vmax.f32 %v1680, 1e-24
        %v1731 = vmax.f32 %v1683, 1e-24
        %v1732 = vmax.f32 %v1686, 1e-24
        %v1733 = vmax.f32 %v1689, 1e-24
        %v1734 = vmax.f32 %v1692, 1e-24
        %v1735 = vrsqrt.pop %v1727
        %v1736 = vrsqrt.pop %v1728
        %v1737 = vrsqrt.pop %v1729
        %v1738 = vrsqrt.pop %v1730
        %v1739 = vrsqrt.pop %v1731
        %v1740 = vrsqrt.pop %v1732
        %v1741 = vrsqrt.pop %v1733
        %v1742 = vrsqrt.pop %v1734
        %v1743 = vmul.f32 %v478, %v1735
        %v1744 = vmul.f32 %v481, %v1736
        %v1745 = vmul.f32 %v486, %v1737
        %v1746 = vmul.f32 %v489, %v1738
        %v1747 = vmul.f32 %v494, %v1739
        %v1748 = vmul.f32 %v497, %v1740
        %v1749 = vmul.f32 %v502, %v1741
        %v1750 = vmul.f32 %v505, %v1742
        %v1751 = vpack.c.bf16 %v1720, %v1719
        %v1752 = vpack.c.bf16 %v1722, %v1721
        %v1753 = vpack.c.bf16 %v1724, %v1723
        %v1754 = vpack.c.bf16 %v1726, %v1725
        %v1755 = vpack.c.bf16 %v1744, %v1743
        %v1756 = vpack.c.bf16 %v1746, %v1745
        %v1757 = vpack.c.bf16 %v1748, %v1747
        %v1758 = vpack.c.bf16 %v1750, %v1749
        %s1759 = scalar_lea.vmem [#allocation10], 128
        %v1760 = vld [vmem:[%s1759] sm:$0xff]
        %v1761 = vld [vmem:[%s1759 + $0x8] sm:$0xff]
        %v1762 = vld [vmem:[%s1759 + $0x10] sm:$0xff]
        %v1763 = vld [vmem:[%s1759 + $0x18] sm:$0xff]
        %v1764 = vld [vmem:[%s1759 + $0x20] sm:$0xff]
        %v1765 = vld [vmem:[%s1759 + $0x28] sm:$0xff]
        %v1766 = vld [vmem:[%s1759 + $0x30] sm:$0xff]
        %v1767 = vld [vmem:[%s1759 + $0x38] sm:$0xff]
        %1772 = vrot.lane.b32.xlu0 %v1751, 112
        %v1773 = vpop.permute.xlu0 %1772
        %1774 = vrot.lane.b32.xlu0 %v1752, 112
        %v1775 = vpop.permute.xlu0 %1774
        %1776 = vrot.lane.b32.xlu0 %v1753, 112
        %v1777 = vpop.permute.xlu0 %1776
        %1778 = vrot.lane.b32.xlu0 %v1754, 112
        %v1779 = vpop.permute.xlu0 %1778
        %1784 = vrot.lane.b32.xlu0 %v1755, 80
        %v1785 = vpop.permute.xlu0 %1784
        %1786 = vrot.lane.b32.xlu0 %v1756, 80
        %v1787 = vpop.permute.xlu0 %1786
        %1788 = vrot.lane.b32.xlu0 %v1757, 80
        %v1789 = vpop.permute.xlu0 %1788
        %1790 = vrot.lane.b32.xlu0 %v1758, 80
        %v1791 = vpop.permute.xlu0 %1790
        %v1793 = vsel %vm520, %v1773, 0
        %v1796 = vsel %vm520, %v1775, 0
        %v1799 = vsel %vm520, %v1777, 0
        %v1802 = vsel %vm520, %v1779, 0
        %v1805 = vsel %vm520, %v1785, 0
        %v1808 = vsel %vm520, %v1787, 0
        %v1811 = vsel %vm520, %v1789, 0
        %v1814 = vsel %vm520, %v1791, 0
        %1816 = vmatprep.subr.bf16.mxu0 0
        %1817 = vmatpush1.bf16.xpose.msra.mxu0 0
        %1818 = vmatprep.subr.bf16.mxu0 0
        %1819 = vmatpush1.bf16.xpose.msra.mxu0 0
        %1820 = vmatprep.subr.bf16.mxu0 0
        %1821 = vmatpush1.bf16.xpose.msra.mxu0 0
        %1822 = vmatprep.subr.bf16.mxu0 0
        %1823 = vmatpush1.bf16.xpose.msra.mxu0 0
        %1824 = vmatprep.subr.bf16.mxu0 0
        %1825 = vmatpush1.bf16.xpose.msra.mxu0 %v1814
        %1826 = vmatprep.subr.bf16.mxu0 0
        %1827 = vmatpush1.bf16.xpose.msra.mxu0 %v1811
        %1828 = vmatprep.subr.bf16.mxu0 0
        %1829 = vmatpush1.bf16.xpose.msra.mxu0 %v1808
        %1830 = vmatprep.subr.bf16.mxu0 0
        %1831 = vmatpush1.bf16.xpose.msra.mxu0 %v1805
        %1832 = vmatprep.subr.bf16.mxu0 0
        %1833 = vmatpush2.bf16.xpose.msra.mxu0 0
        %1834 = vmatprep.subr.bf16.mxu0 0
        %1835 = vmatpush2.bf16.xpose.msra.mxu0 0
        %1836 = vmatprep.subr.bf16.mxu0 0
        %1837 = vmatpush2.bf16.xpose.msra.mxu0 0
        %1838 = vmatprep.subr.bf16.mxu0 0
        %1839 = vmatpush2.bf16.xpose.msra.mxu0 0
        %1840 = vmatprep.subr.bf16.mxu0 0
        %1841 = vmatpush2.bf16.xpose.msra.mxu0 0
        %1842 = vmatprep.subr.bf16.mxu0 0
        %1843 = vmatpush2.bf16.xpose.msra.mxu0 0
        %1844 = vmatprep.subr.bf16.mxu0 0
        %1845 = vmatpush2.bf16.xpose.msra.mxu0 0
        %1846 = vmatprep.subr.bf16.mxu0 0
        %1847 = vmatpush2.bf16.xpose.msra.mxu0 0
        %1848 = vmatprep.mubr.bf16.mxu0 0
        %1849 = vmatmul.mubr.bf16.gmra.mxu0 %v1793
        %v1850 = vpop.f32.mrf.mxu0
        %v1851 = vadd.f32 %v1760, %v1850
        %v1852 = vpop.f32.mrf.mxu0
        %v1853 = vpop.f32.mrf.mxu0
        %v1854 = vadd.f32 %v1761, %v1853
        %v1855 = vpop.f32.mrf.mxu0
        %1856 = vmatprep.mubr.bf16.mxu0 0
        %1857 = vmatmul.mubr.bf16.gmra.mxu0 %v1796
        %v1858 = vpop.f32.mrf.mxu0
        %v1859 = vadd.f32 %v1762, %v1858
        %v1860 = vpop.f32.mrf.mxu0
        %v1861 = vpop.f32.mrf.mxu0
        %v1862 = vadd.f32 %v1763, %v1861
        %v1863 = vpop.f32.mrf.mxu0
        %1864 = vmatprep.mubr.bf16.mxu0 0
        %1865 = vmatmul.mubr.bf16.gmra.mxu0 %v1799
        %v1866 = vpop.f32.mrf.mxu0
        %v1867 = vadd.f32 %v1764, %v1866
        %v1868 = vpop.f32.mrf.mxu0
        %v1869 = vpop.f32.mrf.mxu0
        %v1870 = vadd.f32 %v1765, %v1869
        %v1871 = vpop.f32.mrf.mxu0
        %1872 = vmatprep.mubr.bf16.mxu0 0
        %1873 = vmatmul.mubr.bf16.gmra.mxu0 %v1802
        %v1874 = vpop.f32.mrf.mxu0
        %v1875 = vadd.f32 %v1766, %v1874
        %v1876 = vpop.f32.mrf.mxu0
        %v1877 = vpop.f32.mrf.mxu0
        %v1878 = vadd.f32 %v1767, %v1877
        %v1879 = vpop.f32.mrf.mxu0
        %1880 = vdwg.mxu0
        %v1881 = vsel %vm776, %v1851, -inf
        %1882 = vmax.xlane.f32.xlu0 %v1881
        %v1883 = vpop.xlane.xlu0 %1882
        %v1884 = vsel %vm776, %v1854, -inf
        %1885 = vmax.xlane.f32.xlu0 %v1884
        %v1886 = vpop.xlane.xlu0 %1885
        %v1887 = vsel %vm776, %v1859, -inf
        %1888 = vmax.xlane.f32.xlu0 %v1887
        %v1889 = vpop.xlane.xlu0 %1888
        %v1890 = vsel %vm776, %v1862, -inf
        %1891 = vmax.xlane.f32.xlu0 %v1890
        %v1892 = vpop.xlane.xlu0 %1891
        %v1893 = vsel %vm776, %v1867, -inf
        %1894 = vmax.xlane.f32.xlu0 %v1893
        %v1895 = vpop.xlane.xlu0 %1894
        %v1896 = vsel %vm776, %v1870, -inf
        %1897 = vmax.xlane.f32.xlu0 %v1896
        %v1898 = vpop.xlane.xlu0 %1897
        %v1899 = vsel %vm776, %v1875, -inf
        %1900 = vmax.xlane.f32.xlu0 %v1899
        %v1901 = vpop.xlane.xlu0 %1900
        %v1902 = vsel %vm776, %v1878, -inf
        %1903 = vmax.xlane.f32.xlu0 %v1902
        %v1904 = vpop.xlane.xlu0 %1903
        %v1905 = vsub.f32 %v1851, %v1883
        %v1906 = vsub.f32 %v1854, %v1886
        %v1907 = vsub.f32 %v1859, %v1889
        %v1908 = vsub.f32 %v1862, %v1892
        %v1909 = vsub.f32 %v1867, %v1895
        %v1910 = vsub.f32 %v1870, %v1898
        %v1911 = vsub.f32 %v1875, %v1901
        %v1912 = vsub.f32 %v1878, %v1904
        %v1913 = vmul.f32 %v1905, 1.442695
        %v1914 = vpow.pop %v1913
        %v1915 = vmul.f32 %v1906, 1.442695
        %v1916 = vpow.pop %v1915
        %v1917 = vmul.f32 %v1907, 1.442695
        %v1918 = vpow.pop %v1917
        %v1919 = vmul.f32 %v1908, 1.442695
        %v1920 = vpow.pop %v1919
        %v1921 = vmul.f32 %v1909, 1.442695
        %v1922 = vpow.pop %v1921
        %v1923 = vmul.f32 %v1910, 1.442695
        %v1924 = vpow.pop %v1923
        %v1925 = vmul.f32 %v1911, 1.442695
        %v1926 = vpow.pop %v1925
        %v1927 = vmul.f32 %v1912, 1.442695
        %v1928 = vpow.pop %v1927
        %v1929 = vsel %vm776, %v1914, 0.0
        %1930 = vadd.xlane.f32.xlu0 %v1929
        %v1931 = vpop.xlane.xlu0 %1930
        %v1932 = vsel %vm776, %v1916, 0.0
        %1933 = vadd.xlane.f32.xlu0 %v1932
        %v1934 = vpop.xlane.xlu0 %1933
        %v1935 = vsel %vm776, %v1918, 0.0
        %1936 = vadd.xlane.f32.xlu0 %v1935
        %v1937 = vpop.xlane.xlu0 %1936
        %v1938 = vsel %vm776, %v1920, 0.0
        %1939 = vadd.xlane.f32.xlu0 %v1938
        %v1940 = vpop.xlane.xlu0 %1939
        %v1941 = vsel %vm776, %v1922, 0.0
        %1942 = vadd.xlane.f32.xlu0 %v1941
        %v1943 = vpop.xlane.xlu0 %1942
        %v1944 = vsel %vm776, %v1924, 0.0
        %1945 = vadd.xlane.f32.xlu0 %v1944
        %v1946 = vpop.xlane.xlu0 %1945
        %v1947 = vsel %vm776, %v1926, 0.0
        %1948 = vadd.xlane.f32.xlu0 %v1947
        %v1949 = vpop.xlane.xlu0 %1948
        %v1950 = vsel %vm776, %v1928, 0.0
        %1951 = vadd.xlane.f32.xlu0 %v1950
        %v1952 = vpop.xlane.xlu0 %1951
        %v1953 = vrcp.pop %v1931
        %v1954 = vrcp.pop %v1934
        %v1955 = vrcp.pop %v1937
        %v1956 = vrcp.pop %v1940
        %v1957 = vrcp.pop %v1943
        %v1958 = vrcp.pop %v1946
        %v1959 = vrcp.pop %v1949
        %v1960 = vrcp.pop %v1952
        %v1961 = vmul.f32 %v1914, %v1953
        %v1962 = vmul.f32 %v1916, %v1954
        %v1963 = vmul.f32 %v1918, %v1955
        %v1964 = vmul.f32 %v1920, %v1956
        %v1965 = vmul.f32 %v1922, %v1957
        %v1966 = vmul.f32 %v1924, %v1958
        %v1967 = vmul.f32 %v1926, %v1959
        %v1968 = vmul.f32 %v1928, %v1960
        %v1969 = vpack.c.bf16 %v1962, %v1961
        %v1970 = vpack.c.bf16 %v1964, %v1963
        %v1971 = vpack.c.bf16 %v1966, %v1965
        %v1972 = vpack.c.bf16 %v1968, %v1967
        %1973 = vrot.lane.b32.xlu0 %v508, 48
        %v1974 = vpop.permute.xlu0 %1973
        %1975 = vrot.lane.b32.xlu0 %v509, 48
        %v1976 = vpop.permute.xlu0 %1975
        %1977 = vrot.lane.b32.xlu0 %v510, 48
        %v1978 = vpop.permute.xlu0 %1977
        %1979 = vrot.lane.b32.xlu0 %v511, 48
        %v1980 = vpop.permute.xlu0 %1979
        %v1986 = vsel %vm776, %v1969, 0
        %v1989 = vsel %vm776, %v1970, 0
        %v1992 = vsel %vm776, %v1971, 0
        %v1995 = vsel %vm776, %v1972, 0
        %1997 = vmatprep.subr.bf16.mxu0 0
        %1998 = vmatpush1.bf16.msra.mxu0 0
        %1999 = vmatprep.subr.bf16.mxu0 0
        %2000 = vmatpush1.bf16.msra.mxu0 0
        %2001 = vmatprep.subr.bf16.mxu0 0
        %2002 = vmatpush1.bf16.msra.mxu0 0
        %2003 = vmatprep.subr.bf16.mxu0 0
        %2004 = vmatpush1.bf16.msra.mxu0 0
        %2005 = vmatprep.subr.bf16.mxu0 0
        %2006 = vmatpush1.bf16.msra.mxu0 %v1980
        %2007 = vmatprep.subr.bf16.mxu0 0
        %2008 = vmatpush1.bf16.msra.mxu0 %v1978
        %2009 = vmatprep.subr.bf16.mxu0 0
        %2010 = vmatpush1.bf16.msra.mxu0 %v1976
        %2011 = vmatprep.subr.bf16.mxu0 0
        %2012 = vmatpush1.bf16.msra.mxu0 %v1974
        %2013 = vmatprep.subr.bf16.mxu0 0
        %2014 = vmatpush2.bf16.msra.mxu0 0
        %2015 = vmatprep.subr.bf16.mxu0 0
        %2016 = vmatpush2.bf16.msra.mxu0 0
        %2017 = vmatprep.subr.bf16.mxu0 0
        %2018 = vmatpush2.bf16.msra.mxu0 0
        %2019 = vmatprep.subr.bf16.mxu0 0
        %2020 = vmatpush2.bf16.msra.mxu0 0
        %2021 = vmatprep.subr.bf16.mxu0 0
        %2022 = vmatpush2.bf16.msra.mxu0 0
        %2023 = vmatprep.subr.bf16.mxu0 0
        %2024 = vmatpush2.bf16.msra.mxu0 0
        %2025 = vmatprep.subr.bf16.mxu0 0
        %2026 = vmatpush2.bf16.msra.mxu0 0
        %2027 = vmatprep.subr.bf16.mxu0 0
        %2028 = vmatpush2.bf16.msra.mxu0 0
        %2029 = vmatprep.mubr.bf16.mxu0 0
        %2030 = vmatmul.mubr.bf16.gmra.mxu0 %v1986
        %v2031 = vpop.f32.mrf.mxu0
        %v2032 = vadd.f32 0.0, %v2031
        %v2033 = vpop.f32.mrf.mxu0
        %v2034 = vpop.f32.mrf.mxu0
        %v2035 = vadd.f32 0.0, %v2034
        %v2036 = vpop.f32.mrf.mxu0
        %2037 = vmatprep.mubr.bf16.mxu0 0
        %2038 = vmatmul.mubr.bf16.gmra.mxu0 %v1989
        %v2039 = vpop.f32.mrf.mxu0
        %v2040 = vadd.f32 0.0, %v2039
        %v2041 = vpop.f32.mrf.mxu0
        %v2042 = vpop.f32.mrf.mxu0
        %v2043 = vadd.f32 0.0, %v2042
        %v2044 = vpop.f32.mrf.mxu0
        %2045 = vmatprep.mubr.bf16.mxu0 0
        %2046 = vmatmul.mubr.bf16.gmra.mxu0 %v1992
        %v2047 = vpop.f32.mrf.mxu0
        %v2048 = vadd.f32 0.0, %v2047
        %v2049 = vpop.f32.mrf.mxu0
        %v2050 = vpop.f32.mrf.mxu0
        %v2051 = vadd.f32 0.0, %v2050
        %v2052 = vpop.f32.mrf.mxu0
        %2053 = vmatprep.mubr.bf16.mxu0 0
        %2054 = vmatmul.mubr.bf16.gmra.mxu0 %v1995
        %v2055 = vpop.f32.mrf.mxu0
        %v2056 = vadd.f32 0.0, %v2055
        %v2057 = vpop.f32.mrf.mxu0
        %v2058 = vpop.f32.mrf.mxu0
        %v2059 = vadd.f32 0.0, %v2058
        %v2060 = vpop.f32.mrf.mxu0
        %2061 = vdwg.mxu0
        %v2062 = vpack.c.bf16 %v2035, %v2032
        %v2063 = vpack.c.bf16 %v2043, %v2040
        %v2064 = vpack.c.bf16 %v2051, %v2048
        %v2065 = vpack.c.bf16 %v2059, %v2056
        %v2066 = vld [vmem:[#allocation8 + $0x8] sm:$0xf]
        %v2068 = vsel %vm520, %v2062, 0
        %v2071 = vsel %vm520, %v2063, 0
        %v2074 = vsel %vm520, %v2064, 0
        %v2077 = vsel %vm520, %v2065, 0
        %v2080 = vsel %vm398, %v2066, 0
        %2082 = vmatprep.subr.bf16.mxu0 0
        %2083 = vmatpush1.bf16.msra.mxu0 0
        %2084 = vmatprep.subr.bf16.mxu0 0
        %2085 = vmatpush1.bf16.msra.mxu0 0
        %2086 = vmatprep.subr.bf16.mxu0 0
        %2087 = vmatpush1.bf16.msra.mxu0 0
        %2088 = vmatprep.subr.bf16.mxu0 0
        %2089 = vmatpush1.bf16.msra.mxu0 0
        %2090 = vmatprep.subr.bf16.mxu0 0
        %2091 = vmatpush1.bf16.msra.mxu0 0
        %2092 = vmatprep.subr.bf16.mxu0 0
        %2093 = vmatpush1.bf16.msra.mxu0 0
        %2094 = vmatprep.subr.bf16.mxu0 0
        %2095 = vmatpush1.bf16.msra.mxu0 0
        %2096 = vmatprep.subr.bf16.mxu0 0
        %2097 = vmatpush1.bf16.msra.mxu0 %v2080
        %2098 = vmatprep.subr.bf16.mxu0 0
        %2099 = vmatpush2.bf16.msra.mxu0 0
        %2100 = vmatprep.subr.bf16.mxu0 0
        %2101 = vmatpush2.bf16.msra.mxu0 0
        %2102 = vmatprep.subr.bf16.mxu0 0
        %2103 = vmatpush2.bf16.msra.mxu0 0
        %2104 = vmatprep.subr.bf16.mxu0 0
        %2105 = vmatpush2.bf16.msra.mxu0 0
        %2106 = vmatprep.subr.bf16.mxu0 0
        %2107 = vmatpush2.bf16.msra.mxu0 0
        %2108 = vmatprep.subr.bf16.mxu0 0
        %2109 = vmatpush2.bf16.msra.mxu0 0
        %2110 = vmatprep.subr.bf16.mxu0 0
        %2111 = vmatpush2.bf16.msra.mxu0 0
        %2112 = vmatprep.subr.bf16.mxu0 0
        %2113 = vmatpush2.bf16.msra.mxu0 0
        %2114 = vmatprep.mubr.bf16.mxu0 0
        %2115 = vmatmul.mubr.bf16.gmra.mxu0 %v2068
        %v2116 = vpop.f32.mrf.mxu0
        %v2117 = vadd.f32 0.0, %v2116
        %v2118 = vpop.f32.mrf.mxu0
        %v2119 = vpop.f32.mrf.mxu0
        %v2120 = vadd.f32 0.0, %v2119
        %v2121 = vpop.f32.mrf.mxu0
        %2122 = vmatprep.mubr.bf16.mxu0 0
        %2123 = vmatmul.mubr.bf16.gmra.mxu0 %v2071
        %v2124 = vpop.f32.mrf.mxu0
        %v2125 = vadd.f32 0.0, %v2124
        %v2126 = vpop.f32.mrf.mxu0
        %v2127 = vpop.f32.mrf.mxu0
        %v2128 = vadd.f32 0.0, %v2127
        %v2129 = vpop.f32.mrf.mxu0
        %2130 = vmatprep.mubr.bf16.mxu0 0
        %2131 = vmatmul.mubr.bf16.gmra.mxu0 %v2074
        %v2132 = vpop.f32.mrf.mxu0
        %v2133 = vadd.f32 0.0, %v2132
        %v2134 = vpop.f32.mrf.mxu0
        %v2135 = vpop.f32.mrf.mxu0
        %v2136 = vadd.f32 0.0, %v2135
        %v2137 = vpop.f32.mrf.mxu0
        %2138 = vmatprep.mubr.bf16.mxu0 0
        %2139 = vmatmul.mubr.bf16.gmra.mxu0 %v2077
        %v2140 = vpop.f32.mrf.mxu0
        %v2141 = vadd.f32 0.0, %v2140
        %v2142 = vpop.f32.mrf.mxu0
        %v2143 = vpop.f32.mrf.mxu0
        %v2144 = vadd.f32 0.0, %v2143
        %v2145 = vpop.f32.mrf.mxu0
        %2146 = vdwg.mxu0
        %v2147 = vadd.f32 %v1567, %v2117
        %v2148 = vadd.f32 %v1570, %v2120
        %v2149 = vadd.f32 %v1575, %v2125
        %v2150 = vadd.f32 %v1578, %v2128
        %v2151 = vadd.f32 %v1583, %v2133
        %v2152 = vadd.f32 %v1586, %v2136
        %v2153 = vadd.f32 %v1591, %v2141
        %v2154 = vadd.f32 %v1594, %v2144
        %2155 = vrot.lane.b32.xlu0 %v512, 104
        %v2156 = vpop.permute.xlu0 %2155
        %2157 = vrot.lane.b32.xlu0 %v513, 104
        %v2158 = vpop.permute.xlu0 %2157
        %2159 = vrot.lane.b32.xlu0 %v514, 104
        %v2160 = vpop.permute.xlu0 %2159
        %2161 = vrot.lane.b32.xlu0 %v515, 104
        %v2162 = vpop.permute.xlu0 %2161
        %2163 = vrot.lane.b32.xlu0 %v516, 104
        %v2164 = vpop.permute.xlu0 %2163
        %2165 = vrot.lane.b32.xlu0 %v517, 104
        %v2166 = vpop.permute.xlu0 %2165
        %2167 = vrot.lane.b32.xlu0 %v518, 104
        %v2168 = vpop.permute.xlu0 %2167
        %2169 = vrot.lane.b32.xlu0 %v519, 104
        %v2170 = vpop.permute.xlu0 %2169
        %v2179 = vsel %vm520, %v2156, 0.0
        %2180 = vadd.xlane.f32.xlu0 %v2179
        %v2181 = vpop.xlane.xlu0 %2180
        %v2182 = vsel %vm520, %v2158, 0.0
        %2183 = vadd.xlane.f32.xlu0 %v2182
        %v2184 = vpop.xlane.xlu0 %2183
        %v2185 = vsel %vm520, %v2160, 0.0
        %2186 = vadd.xlane.f32.xlu0 %v2185
        %v2187 = vpop.xlane.xlu0 %2186
        %v2188 = vsel %vm520, %v2162, 0.0
        %2189 = vadd.xlane.f32.xlu0 %v2188
        %v2190 = vpop.xlane.xlu0 %2189
        %v2191 = vsel %vm520, %v2164, 0.0
        %2192 = vadd.xlane.f32.xlu0 %v2191
        %v2193 = vpop.xlane.xlu0 %2192
        %v2194 = vsel %vm520, %v2166, 0.0
        %2195 = vadd.xlane.f32.xlu0 %v2194
        %v2196 = vpop.xlane.xlu0 %2195
        %v2197 = vsel %vm520, %v2168, 0.0
        %2198 = vadd.xlane.f32.xlu0 %v2197
        %v2199 = vpop.xlane.xlu0 %2198
        %v2200 = vsel %vm520, %v2170, 0.0
        %2201 = vadd.xlane.f32.xlu0 %v2200
        %v2202 = vpop.xlane.xlu0 %2201
        %2203 = vrot.lane.b32.xlu0 %v512, 72
        %v2204 = vpop.permute.xlu0 %2203
        %2205 = vrot.lane.b32.xlu0 %v513, 72
        %v2206 = vpop.permute.xlu0 %2205
        %2207 = vrot.lane.b32.xlu0 %v514, 72
        %v2208 = vpop.permute.xlu0 %2207
        %2209 = vrot.lane.b32.xlu0 %v515, 72
        %v2210 = vpop.permute.xlu0 %2209
        %2211 = vrot.lane.b32.xlu0 %v516, 72
        %v2212 = vpop.permute.xlu0 %2211
        %2213 = vrot.lane.b32.xlu0 %v517, 72
        %v2214 = vpop.permute.xlu0 %2213
        %2215 = vrot.lane.b32.xlu0 %v518, 72
        %v2216 = vpop.permute.xlu0 %2215
        %2217 = vrot.lane.b32.xlu0 %v519, 72
        %v2218 = vpop.permute.xlu0 %2217
        %v2227 = vsel %vm520, %v2204, 0.0
        %2228 = vadd.xlane.f32.xlu0 %v2227
        %v2229 = vpop.xlane.xlu0 %2228
        %v2230 = vsel %vm520, %v2206, 0.0
        %2231 = vadd.xlane.f32.xlu0 %v2230
        %v2232 = vpop.xlane.xlu0 %2231
        %v2233 = vsel %vm520, %v2208, 0.0
        %2234 = vadd.xlane.f32.xlu0 %v2233
        %v2235 = vpop.xlane.xlu0 %2234
        %v2236 = vsel %vm520, %v2210, 0.0
        %2237 = vadd.xlane.f32.xlu0 %v2236
        %v2238 = vpop.xlane.xlu0 %2237
        %v2239 = vsel %vm520, %v2212, 0.0
        %2240 = vadd.xlane.f32.xlu0 %v2239
        %v2241 = vpop.xlane.xlu0 %2240
        %v2242 = vsel %vm520, %v2214, 0.0
        %2243 = vadd.xlane.f32.xlu0 %v2242
        %v2244 = vpop.xlane.xlu0 %2243
        %v2245 = vsel %vm520, %v2216, 0.0
        %2246 = vadd.xlane.f32.xlu0 %v2245
        %v2247 = vpop.xlane.xlu0 %2246
        %v2248 = vsel %vm520, %v2218, 0.0
        %2249 = vadd.xlane.f32.xlu0 %v2248
        %v2250 = vpop.xlane.xlu0 %2249
        %v2251 = vmax.f32 %v2181, 1e-24
        %v2252 = vmax.f32 %v2184, 1e-24
        %v2253 = vmax.f32 %v2187, 1e-24
        %v2254 = vmax.f32 %v2190, 1e-24
        %v2255 = vmax.f32 %v2193, 1e-24
        %v2256 = vmax.f32 %v2196, 1e-24
        %v2257 = vmax.f32 %v2199, 1e-24
        %v2258 = vmax.f32 %v2202, 1e-24
        %v2259 = vrsqrt.pop %v2251
        %v2260 = vrsqrt.pop %v2252
        %v2261 = vrsqrt.pop %v2253
        %v2262 = vrsqrt.pop %v2254
        %v2263 = vrsqrt.pop %v2255
        %v2264 = vrsqrt.pop %v2256
        %v2265 = vrsqrt.pop %v2257
        %v2266 = vrsqrt.pop %v2258
        %s2267 = sld [smem:[#allocation9 + $0x3]]
        %v2268 = vstv %s2267
        %v2269 = vmul.f32 %v2259, %v2268
        %v2270 = vmul.f32 %v2260, %v2268
        %v2271 = vmul.f32 %v2261, %v2268
        %v2272 = vmul.f32 %v2262, %v2268
        %v2273 = vmul.f32 %v2263, %v2268
        %v2274 = vmul.f32 %v2264, %v2268
        %v2275 = vmul.f32 %v2265, %v2268
        %v2276 = vmul.f32 %v2266, %v2268
        %v2277 = vmul.f32 %v478, %v2269
        %v2278 = vmul.f32 %v481, %v2270
        %v2279 = vmul.f32 %v486, %v2271
        %v2280 = vmul.f32 %v489, %v2272
        %v2281 = vmul.f32 %v494, %v2273
        %v2282 = vmul.f32 %v497, %v2274
        %v2283 = vmul.f32 %v502, %v2275
        %v2284 = vmul.f32 %v505, %v2276
        %v2285 = vmax.f32 %v2229, 1e-24
        %v2286 = vmax.f32 %v2232, 1e-24
        %v2287 = vmax.f32 %v2235, 1e-24
        %v2288 = vmax.f32 %v2238, 1e-24
        %v2289 = vmax.f32 %v2241, 1e-24
        %v2290 = vmax.f32 %v2244, 1e-24
        %v2291 = vmax.f32 %v2247, 1e-24
        %v2292 = vmax.f32 %v2250, 1e-24
        %v2293 = vrsqrt.pop %v2285
        %v2294 = vrsqrt.pop %v2286
        %v2295 = vrsqrt.pop %v2287
        %v2296 = vrsqrt.pop %v2288
        %v2297 = vrsqrt.pop %v2289
        %v2298 = vrsqrt.pop %v2290
        %v2299 = vrsqrt.pop %v2291
        %v2300 = vrsqrt.pop %v2292
        %v2301 = vmul.f32 %v478, %v2293
        %v2302 = vmul.f32 %v481, %v2294
        %v2303 = vmul.f32 %v486, %v2295
        %v2304 = vmul.f32 %v489, %v2296
        %v2305 = vmul.f32 %v494, %v2297
        %v2306 = vmul.f32 %v497, %v2298
        %v2307 = vmul.f32 %v502, %v2299
        %v2308 = vmul.f32 %v505, %v2300
        %v2309 = vpack.c.bf16 %v2278, %v2277
        %v2310 = vpack.c.bf16 %v2280, %v2279
        %v2311 = vpack.c.bf16 %v2282, %v2281
        %v2312 = vpack.c.bf16 %v2284, %v2283
        %v2313 = vpack.c.bf16 %v2302, %v2301
        %v2314 = vpack.c.bf16 %v2304, %v2303
        %v2315 = vpack.c.bf16 %v2306, %v2305
        %v2316 = vpack.c.bf16 %v2308, %v2307
        %s2317 = scalar_lea.vmem [#allocation10], 192
        %v2318 = vld [vmem:[%s2317] sm:$0xff]
        %v2319 = vld [vmem:[%s2317 + $0x8] sm:$0xff]
        %v2320 = vld [vmem:[%s2317 + $0x10] sm:$0xff]
        %v2321 = vld [vmem:[%s2317 + $0x18] sm:$0xff]
        %v2322 = vld [vmem:[%s2317 + $0x20] sm:$0xff]
        %v2323 = vld [vmem:[%s2317 + $0x28] sm:$0xff]
        %v2324 = vld [vmem:[%s2317 + $0x30] sm:$0xff]
        %v2325 = vld [vmem:[%s2317 + $0x38] sm:$0xff]
        %2330 = vrot.lane.b32.xlu0 %v2309, 104
        %v2331 = vpop.permute.xlu0 %2330
        %2332 = vrot.lane.b32.xlu0 %v2310, 104
        %v2333 = vpop.permute.xlu0 %2332
        %2334 = vrot.lane.b32.xlu0 %v2311, 104
        %v2335 = vpop.permute.xlu0 %2334
        %2336 = vrot.lane.b32.xlu0 %v2312, 104
        %v2337 = vpop.permute.xlu0 %2336
        %2342 = vrot.lane.b32.xlu0 %v2313, 72
        %v2343 = vpop.permute.xlu0 %2342
        %2344 = vrot.lane.b32.xlu0 %v2314, 72
        %v2345 = vpop.permute.xlu0 %2344
        %2346 = vrot.lane.b32.xlu0 %v2315, 72
        %v2347 = vpop.permute.xlu0 %2346
        %2348 = vrot.lane.b32.xlu0 %v2316, 72
        %v2349 = vpop.permute.xlu0 %2348
        %v2351 = vsel %vm520, %v2331, 0
        %v2354 = vsel %vm520, %v2333, 0
        %v2357 = vsel %vm520, %v2335, 0
        %v2360 = vsel %vm520, %v2337, 0
        %v2363 = vsel %vm520, %v2343, 0
        %v2366 = vsel %vm520, %v2345, 0
        %v2369 = vsel %vm520, %v2347, 0
        %v2372 = vsel %vm520, %v2349, 0
        %2374 = vmatprep.subr.bf16.mxu0 0
        %2375 = vmatpush1.bf16.xpose.msra.mxu0 0
        %2376 = vmatprep.subr.bf16.mxu0 0
        %2377 = vmatpush1.bf16.xpose.msra.mxu0 0
        %2378 = vmatprep.subr.bf16.mxu0 0
        %2379 = vmatpush1.bf16.xpose.msra.mxu0 0
        %2380 = vmatprep.subr.bf16.mxu0 0
        %2381 = vmatpush1.bf16.xpose.msra.mxu0 0
        %2382 = vmatprep.subr.bf16.mxu0 0
        %2383 = vmatpush1.bf16.xpose.msra.mxu0 %v2372
        %2384 = vmatprep.subr.bf16.mxu0 0
        %2385 = vmatpush1.bf16.xpose.msra.mxu0 %v2369
        %2386 = vmatprep.subr.bf16.mxu0 0
        %2387 = vmatpush1.bf16.xpose.msra.mxu0 %v2366
        %2388 = vmatprep.subr.bf16.mxu0 0
        %2389 = vmatpush1.bf16.xpose.msra.mxu0 %v2363
        %2390 = vmatprep.subr.bf16.mxu0 0
        %2391 = vmatpush2.bf16.xpose.msra.mxu0 0
        %2392 = vmatprep.subr.bf16.mxu0 0
        %2393 = vmatpush2.bf16.xpose.msra.mxu0 0
        %2394 = vmatprep.subr.bf16.mxu0 0
        %2395 = vmatpush2.bf16.xpose.msra.mxu0 0
        %2396 = vmatprep.subr.bf16.mxu0 0
        %2397 = vmatpush2.bf16.xpose.msra.mxu0 0
        %2398 = vmatprep.subr.bf16.mxu0 0
        %2399 = vmatpush2.bf16.xpose.msra.mxu0 0
        %2400 = vmatprep.subr.bf16.mxu0 0
        %2401 = vmatpush2.bf16.xpose.msra.mxu0 0
        %2402 = vmatprep.subr.bf16.mxu0 0
        %2403 = vmatpush2.bf16.xpose.msra.mxu0 0
        %2404 = vmatprep.subr.bf16.mxu0 0
        %2405 = vmatpush2.bf16.xpose.msra.mxu0 0
        %2406 = vmatprep.mubr.bf16.mxu0 0
        %2407 = vmatmul.mubr.bf16.gmra.mxu0 %v2351
        %v2408 = vpop.f32.mrf.mxu0
        %v2409 = vadd.f32 %v2318, %v2408
        %v2410 = vpop.f32.mrf.mxu0
        %v2411 = vpop.f32.mrf.mxu0
        %v2412 = vadd.f32 %v2319, %v2411
        %v2413 = vpop.f32.mrf.mxu0
        %2414 = vmatprep.mubr.bf16.mxu0 0
        %2415 = vmatmul.mubr.bf16.gmra.mxu0 %v2354
        %v2416 = vpop.f32.mrf.mxu0
        %v2417 = vadd.f32 %v2320, %v2416
        %v2418 = vpop.f32.mrf.mxu0
        %v2419 = vpop.f32.mrf.mxu0
        %v2420 = vadd.f32 %v2321, %v2419
        %v2421 = vpop.f32.mrf.mxu0
        %2422 = vmatprep.mubr.bf16.mxu0 0
        %2423 = vmatmul.mubr.bf16.gmra.mxu0 %v2357
        %v2424 = vpop.f32.mrf.mxu0
        %v2425 = vadd.f32 %v2322, %v2424
        %v2426 = vpop.f32.mrf.mxu0
        %v2427 = vpop.f32.mrf.mxu0
        %v2428 = vadd.f32 %v2323, %v2427
        %v2429 = vpop.f32.mrf.mxu0
        %2430 = vmatprep.mubr.bf16.mxu0 0
        %2431 = vmatmul.mubr.bf16.gmra.mxu0 %v2360
        %v2432 = vpop.f32.mrf.mxu0
        %v2433 = vadd.f32 %v2324, %v2432
        %v2434 = vpop.f32.mrf.mxu0
        %v2435 = vpop.f32.mrf.mxu0
        %v2436 = vadd.f32 %v2325, %v2435
        %v2437 = vpop.f32.mrf.mxu0
        %2438 = vdwg.mxu0
        %v2439 = vsel %vm776, %v2409, -inf
        %2440 = vmax.xlane.f32.xlu0 %v2439
        %v2441 = vpop.xlane.xlu0 %2440
        %v2442 = vsel %vm776, %v2412, -inf
        %2443 = vmax.xlane.f32.xlu0 %v2442
        %v2444 = vpop.xlane.xlu0 %2443
        %v2445 = vsel %vm776, %v2417, -inf
        %2446 = vmax.xlane.f32.xlu0 %v2445
        %v2447 = vpop.xlane.xlu0 %2446
        %v2448 = vsel %vm776, %v2420, -inf
        %2449 = vmax.xlane.f32.xlu0 %v2448
        %v2450 = vpop.xlane.xlu0 %2449
        %v2451 = vsel %vm776, %v2425, -inf
        %2452 = vmax.xlane.f32.xlu0 %v2451
        %v2453 = vpop.xlane.xlu0 %2452
        %v2454 = vsel %vm776, %v2428, -inf
        %2455 = vmax.xlane.f32.xlu0 %v2454
        %v2456 = vpop.xlane.xlu0 %2455
        %v2457 = vsel %vm776, %v2433, -inf
        %2458 = vmax.xlane.f32.xlu0 %v2457
        %v2459 = vpop.xlane.xlu0 %2458
        %v2460 = vsel %vm776, %v2436, -inf
        %2461 = vmax.xlane.f32.xlu0 %v2460
        %v2462 = vpop.xlane.xlu0 %2461
        %v2463 = vsub.f32 %v2409, %v2441
        %v2464 = vsub.f32 %v2412, %v2444
        %v2465 = vsub.f32 %v2417, %v2447
        %v2466 = vsub.f32 %v2420, %v2450
        %v2467 = vsub.f32 %v2425, %v2453
        %v2468 = vsub.f32 %v2428, %v2456
        %v2469 = vsub.f32 %v2433, %v2459
        %v2470 = vsub.f32 %v2436, %v2462
        %v2471 = vmul.f32 %v2463, 1.442695
        %v2472 = vpow.pop %v2471
        %v2473 = vmul.f32 %v2464, 1.442695
        %v2474 = vpow.pop %v2473
        %v2475 = vmul.f32 %v2465, 1.442695
        %v2476 = vpow.pop %v2475
        %v2477 = vmul.f32 %v2466, 1.442695
        %v2478 = vpow.pop %v2477
        %v2479 = vmul.f32 %v2467, 1.442695
        %v2480 = vpow.pop %v2479
        %v2481 = vmul.f32 %v2468, 1.442695
        %v2482 = vpow.pop %v2481
        %v2483 = vmul.f32 %v2469, 1.442695
        %v2484 = vpow.pop %v2483
        %v2485 = vmul.f32 %v2470, 1.442695
        %v2486 = vpow.pop %v2485
        %v2487 = vsel %vm776, %v2472, 0.0
        %2488 = vadd.xlane.f32.xlu0 %v2487
        %v2489 = vpop.xlane.xlu0 %2488
        %v2490 = vsel %vm776, %v2474, 0.0
        %2491 = vadd.xlane.f32.xlu0 %v2490
        %v2492 = vpop.xlane.xlu0 %2491
        %v2493 = vsel %vm776, %v2476, 0.0
        %2494 = vadd.xlane.f32.xlu0 %v2493
        %v2495 = vpop.xlane.xlu0 %2494
        %v2496 = vsel %vm776, %v2478, 0.0
        %2497 = vadd.xlane.f32.xlu0 %v2496
        %v2498 = vpop.xlane.xlu0 %2497
        %v2499 = vsel %vm776, %v2480, 0.0
        %2500 = vadd.xlane.f32.xlu0 %v2499
        %v2501 = vpop.xlane.xlu0 %2500
        %v2502 = vsel %vm776, %v2482, 0.0
        %2503 = vadd.xlane.f32.xlu0 %v2502
        %v2504 = vpop.xlane.xlu0 %2503
        %v2505 = vsel %vm776, %v2484, 0.0
        %2506 = vadd.xlane.f32.xlu0 %v2505
        %v2507 = vpop.xlane.xlu0 %2506
        %v2508 = vsel %vm776, %v2486, 0.0
        %2509 = vadd.xlane.f32.xlu0 %v2508
        %v2510 = vpop.xlane.xlu0 %2509
        %v2511 = vrcp.pop %v2489
        %v2512 = vrcp.pop %v2492
        %v2513 = vrcp.pop %v2495
        %v2514 = vrcp.pop %v2498
        %v2515 = vrcp.pop %v2501
        %v2516 = vrcp.pop %v2504
        %v2517 = vrcp.pop %v2507
        %v2518 = vrcp.pop %v2510
        %v2519 = vmul.f32 %v2472, %v2511
        %v2520 = vmul.f32 %v2474, %v2512
        %v2521 = vmul.f32 %v2476, %v2513
        %v2522 = vmul.f32 %v2478, %v2514
        %v2523 = vmul.f32 %v2480, %v2515
        %v2524 = vmul.f32 %v2482, %v2516
        %v2525 = vmul.f32 %v2484, %v2517
        %v2526 = vmul.f32 %v2486, %v2518
        %v2527 = vpack.c.bf16 %v2520, %v2519
        %v2528 = vpack.c.bf16 %v2522, %v2521
        %v2529 = vpack.c.bf16 %v2524, %v2523
        %v2530 = vpack.c.bf16 %v2526, %v2525
        %2531 = vrot.lane.b32.xlu0 %v508, 40
        %v2532 = vpop.permute.xlu0 %2531
        %2533 = vrot.lane.b32.xlu0 %v509, 40
        %v2534 = vpop.permute.xlu0 %2533
        %2535 = vrot.lane.b32.xlu0 %v510, 40
        %v2536 = vpop.permute.xlu0 %2535
        %2537 = vrot.lane.b32.xlu0 %v511, 40
        %v2538 = vpop.permute.xlu0 %2537
        %v2544 = vsel %vm776, %v2527, 0
        %v2547 = vsel %vm776, %v2528, 0
        %v2550 = vsel %vm776, %v2529, 0
        %v2553 = vsel %vm776, %v2530, 0
        %2555 = vmatprep.subr.bf16.mxu0 0
        %2556 = vmatpush1.bf16.msra.mxu0 0
        %2557 = vmatprep.subr.bf16.mxu0 0
        %2558 = vmatpush1.bf16.msra.mxu0 0
        %2559 = vmatprep.subr.bf16.mxu0 0
        %2560 = vmatpush1.bf16.msra.mxu0 0
        %2561 = vmatprep.subr.bf16.mxu0 0
        %2562 = vmatpush1.bf16.msra.mxu0 0
        %2563 = vmatprep.subr.bf16.mxu0 0
        %2564 = vmatpush1.bf16.msra.mxu0 %v2538
        %2565 = vmatprep.subr.bf16.mxu0 0
        %2566 = vmatpush1.bf16.msra.mxu0 %v2536
        %2567 = vmatprep.subr.bf16.mxu0 0
        %2568 = vmatpush1.bf16.msra.mxu0 %v2534
        %2569 = vmatprep.subr.bf16.mxu0 0
        %2570 = vmatpush1.bf16.msra.mxu0 %v2532
        %2571 = vmatprep.subr.bf16.mxu0 0
        %2572 = vmatpush2.bf16.msra.mxu0 0
        %2573 = vmatprep.subr.bf16.mxu0 0
        %2574 = vmatpush2.bf16.msra.mxu0 0
        %2575 = vmatprep.subr.bf16.mxu0 0
        %2576 = vmatpush2.bf16.msra.mxu0 0
        %2577 = vmatprep.subr.bf16.mxu0 0
        %2578 = vmatpush2.bf16.msra.mxu0 0
        %2579 = vmatprep.subr.bf16.mxu0 0
        %2580 = vmatpush2.bf16.msra.mxu0 0
        %2581 = vmatprep.subr.bf16.mxu0 0
        %2582 = vmatpush2.bf16.msra.mxu0 0
        %2583 = vmatprep.subr.bf16.mxu0 0
        %2584 = vmatpush2.bf16.msra.mxu0 0
        %2585 = vmatprep.subr.bf16.mxu0 0
        %2586 = vmatpush2.bf16.msra.mxu0 0
        %2587 = vmatprep.mubr.bf16.mxu0 0
        %2588 = vmatmul.mubr.bf16.gmra.mxu0 %v2544
        %v2589 = vpop.f32.mrf.mxu0
        %v2590 = vadd.f32 0.0, %v2589
        %v2591 = vpop.f32.mrf.mxu0
        %v2592 = vpop.f32.mrf.mxu0
        %v2593 = vadd.f32 0.0, %v2592
        %v2594 = vpop.f32.mrf.mxu0
        %2595 = vmatprep.mubr.bf16.mxu0 0
        %2596 = vmatmul.mubr.bf16.gmra.mxu0 %v2547
        %v2597 = vpop.f32.mrf.mxu0
        %v2598 = vadd.f32 0.0, %v2597
        %v2599 = vpop.f32.mrf.mxu0
        %v2600 = vpop.f32.mrf.mxu0
        %v2601 = vadd.f32 0.0, %v2600
        %v2602 = vpop.f32.mrf.mxu0
        %2603 = vmatprep.mubr.bf16.mxu0 0
        %2604 = vmatmul.mubr.bf16.gmra.mxu0 %v2550
        %v2605 = vpop.f32.mrf.mxu0
        %v2606 = vadd.f32 0.0, %v2605
        %v2607 = vpop.f32.mrf.mxu0
        %v2608 = vpop.f32.mrf.mxu0
        %v2609 = vadd.f32 0.0, %v2608
        %v2610 = vpop.f32.mrf.mxu0
        %2611 = vmatprep.mubr.bf16.mxu0 0
        %2612 = vmatmul.mubr.bf16.gmra.mxu0 %v2553
        %v2613 = vpop.f32.mrf.mxu0
        %v2614 = vadd.f32 0.0, %v2613
        %v2615 = vpop.f32.mrf.mxu0
        %v2616 = vpop.f32.mrf.mxu0
        %v2617 = vadd.f32 0.0, %v2616
        %v2618 = vpop.f32.mrf.mxu0
        %2619 = vdwg.mxu0
        %v2620 = vpack.c.bf16 %v2593, %v2590
        %v2621 = vpack.c.bf16 %v2601, %v2598
        %v2622 = vpack.c.bf16 %v2609, %v2606
        %v2623 = vpack.c.bf16 %v2617, %v2614
        %v2624 = vld [vmem:[#allocation8 + $0xc] sm:$0xf]
        %v2626 = vsel %vm520, %v2620, 0
        %v2629 = vsel %vm520, %v2621, 0
        %v2632 = vsel %vm520, %v2622, 0
        %v2635 = vsel %vm520, %v2623, 0
        %v2638 = vsel %vm398, %v2624, 0
        %2640 = vmatprep.subr.bf16.mxu0 0
        %2641 = vmatpush1.bf16.msra.mxu0 0
        %2642 = vmatprep.subr.bf16.mxu0 0
        %2643 = vmatpush1.bf16.msra.mxu0 0
        %2644 = vmatprep.subr.bf16.mxu0 0
        %2645 = vmatpush1.bf16.msra.mxu0 0
        %2646 = vmatprep.subr.bf16.mxu0 0
        %2647 = vmatpush1.bf16.msra.mxu0 0
        %2648 = vmatprep.subr.bf16.mxu0 0
        %2649 = vmatpush1.bf16.msra.mxu0 0
        %2650 = vmatprep.subr.bf16.mxu0 0
        %2651 = vmatpush1.bf16.msra.mxu0 0
        %2652 = vmatprep.subr.bf16.mxu0 0
        %2653 = vmatpush1.bf16.msra.mxu0 0
        %2654 = vmatprep.subr.bf16.mxu0 0
        %2655 = vmatpush1.bf16.msra.mxu0 %v2638
        %2656 = vmatprep.subr.bf16.mxu0 0
        %2657 = vmatpush2.bf16.msra.mxu0 0
        %2658 = vmatprep.subr.bf16.mxu0 0
        %2659 = vmatpush2.bf16.msra.mxu0 0
        %2660 = vmatprep.subr.bf16.mxu0 0
        %2661 = vmatpush2.bf16.msra.mxu0 0
        %2662 = vmatprep.subr.bf16.mxu0 0
        %2663 = vmatpush2.bf16.msra.mxu0 0
        %2664 = vmatprep.subr.bf16.mxu0 0
        %2665 = vmatpush2.bf16.msra.mxu0 0
        %2666 = vmatprep.subr.bf16.mxu0 0
        %2667 = vmatpush2.bf16.msra.mxu0 0
        %2668 = vmatprep.subr.bf16.mxu0 0
        %2669 = vmatpush2.bf16.msra.mxu0 0
        %2670 = vmatprep.subr.bf16.mxu0 0
        %2671 = vmatpush2.bf16.msra.mxu0 0
        %2672 = vmatprep.mubr.bf16.mxu0 0
        %2673 = vmatmul.mubr.bf16.gmra.mxu0 %v2626
        %v2674 = vpop.f32.mrf.mxu0
        %v2675 = vadd.f32 0.0, %v2674
        %v2676 = vpop.f32.mrf.mxu0
        %v2677 = vpop.f32.mrf.mxu0
        %v2678 = vadd.f32 0.0, %v2677
        %v2679 = vpop.f32.mrf.mxu0
        %2680 = vmatprep.mubr.bf16.mxu0 0
        %2681 = vmatmul.mubr.bf16.gmra.mxu0 %v2629
        %v2682 = vpop.f32.mrf.mxu0
        %v2683 = vadd.f32 0.0, %v2682
        %v2684 = vpop.f32.mrf.mxu0
        %v2685 = vpop.f32.mrf.mxu0
        %v2686 = vadd.f32 0.0, %v2685
        %v2687 = vpop.f32.mrf.mxu0
        %2688 = vmatprep.mubr.bf16.mxu0 0
        %2689 = vmatmul.mubr.bf16.gmra.mxu0 %v2632
        %v2690 = vpop.f32.mrf.mxu0
        %v2691 = vadd.f32 0.0, %v2690
        %v2692 = vpop.f32.mrf.mxu0
        %v2693 = vpop.f32.mrf.mxu0
        %v2694 = vadd.f32 0.0, %v2693
        %v2695 = vpop.f32.mrf.mxu0
        %2696 = vmatprep.mubr.bf16.mxu0 0
        %2697 = vmatmul.mubr.bf16.gmra.mxu0 %v2635
        %v2698 = vpop.f32.mrf.mxu0
        %v2699 = vadd.f32 0.0, %v2698
        %v2700 = vpop.f32.mrf.mxu0
        %v2701 = vpop.f32.mrf.mxu0
        %v2702 = vadd.f32 0.0, %v2701
        %v2703 = vpop.f32.mrf.mxu0
        %2704 = vdwg.mxu0
        %v2705 = vadd.f32 %v2147, %v2675
        %v2706 = vadd.f32 %v2148, %v2678
        %v2707 = vadd.f32 %v2149, %v2683
        %v2708 = vadd.f32 %v2150, %v2686
        %v2709 = vadd.f32 %v2151, %v2691
        %v2710 = vadd.f32 %v2152, %v2694
        %v2711 = vadd.f32 %v2153, %v2699
        %v2712 = vadd.f32 %v2154, %v2702
        %v2713 = vld [vmem:[%s4] sm:$0x1]
        %v2715 = vlaneseq
        %v2716 = vshrl.u32 %v2715, 7
        %v2717 = vsub.s32 0, %v2716
        %v2718 = vrot.slane %v2713, %v2717
        %v2720 = vadd.f32 %v2705, %v2718
        %v2721 = vadd.f32 %v2706, %v2718
        %v2722 = vadd.f32 %v2707, %v2718
        %v2723 = vadd.f32 %v2708, %v2718
        %v2724 = vadd.f32 %v2709, %v2718
        %v2725 = vadd.f32 %v2710, %v2718
        %v2726 = vadd.f32 %v2711, %v2718
        %v2727 = vadd.f32 %v2712, %v2718
        %2728 = vst.msk [vmem:[%s378] sm:$0xff] %vm434, %v2720
        %2730 = vrot.lane.b32.xlu0 %v2721, 32
        %v2731 = vpop.permute.xlu0 %2730
        %vm2733 = vcmask 523520
        %2734 = vst.msk [vmem:[%s378] sm:$0xff] %vm2733, %v2731
        %2736 = vrot.lane.b32.xlu0 %v2722, 64
        %v2737 = vpop.permute.xlu0 %2736
        %vm2739 = vcmask 785920
        %2740 = vst.msk [vmem:[%s378] sm:$0xff] %vm2739, %v2737
        %2742 = vrot.lane.b32.xlu0 %v2723, 96
        %v2743 = vpop.permute.xlu0 %2742
        %vm2745 = vcmask 1048320
        %2746 = vst.msk [vmem:[%s378] sm:$0xff] %vm2745, %v2743
        %2747 = vst.msk [vmem:[%s378 + $0x8] sm:$0xff] %vm434, %v2724
        %2749 = vrot.lane.b32.xlu0 %v2725, 32
        %v2750 = vpop.permute.xlu0 %2749
        %2752 = vst.msk [vmem:[%s378 + $0x8] sm:$0xff] %vm2733, %v2750
        %2754 = vrot.lane.b32.xlu0 %v2726, 64
        %v2755 = vpop.permute.xlu0 %2754
        %2757 = vst.msk [vmem:[%s378 + $0x8] sm:$0xff] %vm2739, %v2755
        %2759 = vrot.lane.b32.xlu0 %v2727, 96
        %v2760 = vpop.permute.xlu0 %2759
        %2762 = vst.msk [vmem:[%s378 + $0x8] sm:$0xff] %vm2745, %v2760
        %s2763 = sand.u32 %s208, 1
        %s2764 = scalar_lea.sflag [#allocation4], %s2763
        %s2765 = sand.u32 %s208, 1
        %s2766 = smul.addr %s2765, 16
        %s2767 = scalar_lea.vmem [#allocation12], %s2766
        // Predicated region
        $region69: #{tpu_custom_call.1} parent=47 // pred_check
          %p2768 = pneg %p218
        $region70: #{tpu_custom_call.1} parent=47 // pred_check_branch
          %2770 = sbr.rel (%p2768) target = $region72
        $region71: #{tpu_custom_call.1} parent=47 // pred_region
          %s2772 = ssub.s32 256, 256
          %2773 = vsyncadd %s2764, %s2772
          %s2774 = smul.addr %s32, 2
          %s2775 = smul.addr %s31, 14
          %s2776 = sadd.s32 %s2774, %s2775
          %s2777 = smul.addr %s2776, 128
          %s2778 = scalar_lea.hbm %s7, %s2777
          %s2780 = sshll.u32 %s2767, 4
          %s2781 = int_to_ptr.vmem [resolvable:$true] %s2780
          %2783 = dma.vmem_to_hbm [thread:$0]  %s2781, 256, %s2778, %s2764
        $region72: #{tpu_custom_call.1} parent=47 // pred_fallthru
          _
      $region48: #{tpu_custom_call.1} parent=5 // pred_fallthru
        _
      %p2784 = scmp.le.s32.totalorder 2, %s22
      // Predicated region
      $region73: #{tpu_custom_call.1} parent=5 // pred_check
        %p2785 = pneg %p2784
      $region74: #{tpu_custom_call.1} parent=5 // pred_check_branch
        %2787 = sbr.rel (%p2785) target = $region76
      $region75: #{tpu_custom_call.1} parent=5 // pred_region
        %s2788 = ssub.s32 %s22, 2
        // Predicated region
        $region77: #{tpu_custom_call.1} parent=75 // pred_check
          %p2789 = pneg %p224
        $region78: #{tpu_custom_call.1} parent=75 // pred_check_branch
          %2791 = sbr.rel (%p2789) target = $region80
        $region79: #{tpu_custom_call.1} parent=75 // pred_region
          %s2792 = sand.u32 %s209, 1
          %s2793 = scalar_lea.sflag [#allocation4], %s2792
          %s2794 = sand.u32 %s209, 1
          %s2795 = smul.addr %s2794, 16
          %s2796 = scalar_lea.vmem [#allocation12], %s2795
          %2797 = dma.done %s2793, 256
        $region80: #{tpu_custom_call.1} parent=75 // pred_fallthru
          _
      $region76: #{tpu_custom_call.1} parent=5 // pred_fallthru
        _
    $region6: #{tpu_custom_call.1} parent=1 // loop_footer
      %s26 = sadd.s32 1, %s22
    $region7: #{tpu_custom_call.1} parent=1 // loop_footer_branch
      %21 = sbr.rel target = $region3
    $region8: #{tpu_custom_call.1} parent=1 // loop_exit
      _
    %2798 = vsyncpa [#allocation3], 1
    %s2799 = scalar_lea.sflag [#allocation3], 1
    %2800 = vsyncpa %s2799, 1
    %2801 = vsyncpa [#allocation7], 1
    %2802 = vsyncpa [#allocation11], 1
    %2803 = vsyncpa [#allocation4], 1
    %s2804 = scalar_lea.sflag [#allocation4], 1
    %2805 = vsyncpa %s2804, 1
    %2806 = vsyncpa [#allocation5], 1
    %s2807 = scalar_lea.sflag [#allocation5], 1
    %2808 = vsyncpa %s2807, 1

</llo_original>
